<compile_context>
chip_gen: v6e
topology: v6e:2x2x1
jax: 0.10.0
libtpu: 0.0.40
codegen_flags: <defaults>
</compile_context>

<pallas_src>
import math
from functools import partial

import jax
import jax.numpy as jnp
from jax import lax
from jax.experimental import pallas as pl
from jax.experimental.pallas import tpu as pltpu

LN_EPS = 1e-5  # torch.nn.LayerNorm default


# ------------------------------ kernel helpers ------------------------------

def _layernorm(x, g, b):
    mean = jnp.mean(x, axis=-1, keepdims=True)
    var = jnp.mean((x - mean) ** 2, axis=-1, keepdims=True)
    return (x - mean) * lax.rsqrt(var + LN_EPS) * g + b


def _mm(x_f32, w_bf16):
    # (N, Din) activations @ (Din, Dout) pre-transposed bf16 weights,
    # f32 accumulation on the MXU.
    return jnp.dot(x_f32.astype(jnp.bfloat16), w_bf16,
                   preferred_element_type=jnp.float32)


# ------------------------------ layer kernel --------------------------------

def _decoder_layer_kernel(
        tgt_ref, mem_ref, pos_s_ref, pos_t_ref,
        pre_g_ref, pre_b_ref, post_g_ref, post_b_ref, gamma_ref,
        sa_w_ref, sa_b_ref, sa_ow_ref, sa_ob_ref,
        ca_w_ref, ca_b_ref, ca_ow_ref, ca_ob_ref,
        ff_w1_ref, ff_b1_ref, ff_w2_ref, ff_b2_ref,
        fin_g_ref, fin_b_ref,
        out_ref,
        x_scr,
        *, H, D):
    l = pl.program_id(1)

    # First layer of this batch element: load the residual stream into scratch.
    @pl.when(l == 0)
    def _init():
        x_scr[...] = tgt_ref[0].astype(jnp.float32)

    hd = D // H
    scale = 1.0 / math.sqrt(hd)

    mem = mem_ref[0].astype(jnp.float32)          # (T, D), raw memory (= value)
    pos_s = pos_s_ref[...]                        # (S, D)
    k_mem = mem + pos_t_ref[...]                  # (T, D), memory + PE (keys)

    pre_g, pre_b = pre_g_ref[0], pre_b_ref[0]     # (1, D)  shared across 3 blocks
    post_g, post_b = post_g_ref[0], post_b_ref[0]
    gamma = gamma_ref[0]

    def mha(q_in, k_in, v_in, in_w, in_b, out_w, out_b):
        # in_w: (D, 3D) bf16 (pre-transposed [Wq|Wk|Wv]); in_b: (1, 3D) f32.
        Q = _mm(q_in, in_w[:, 0 * D:1 * D]) + in_b[:, 0 * D:1 * D]
        K = _mm(k_in, in_w[:, 1 * D:2 * D]) + in_b[:, 1 * D:2 * D]
        V = _mm(v_in, in_w[:, 2 * D:3 * D]) + in_b[:, 2 * D:3 * D]
        heads = []
        for h in range(H):                                   # static, small H
            sl = slice(h * hd, (h + 1) * hd)
            qh = Q[:, sl] * scale                            # (S, hd) f32
            s = lax.dot_general(qh.astype(jnp.bfloat16),
                                K[:, sl].astype(jnp.bfloat16),
                                (((1,), (1,)), ((), ())),
                                preferred_element_type=jnp.float32)   # (S, Lk)
            m = jnp.max(s, axis=-1, keepdims=True)
            p = jnp.exp(s - m)
            p = p * pl.reciprocal(jnp.sum(p, axis=-1, keepdims=True),
                                  approx=True)               # EUP reciprocal
            heads.append(_mm(p, V[:, sl].astype(jnp.bfloat16)))       # (S, hd)
        cat = jnp.concatenate(heads, axis=-1)                # (S, D), in vregs
        # Single full-D-contraction output projection (no per-head folds).
        return _mm(cat, out_w) + out_b

    x = x_scr[...]                                            # (S, D) f32

    # ---- self-attention block (value = pre-LN x, q/k = value + PE) ----
    v_in = _layernorm(x, pre_g, pre_b)
    qk_in = v_in + pos_s
    sa = mha(qk_in, qk_in, v_in,
             sa_w_ref[0], sa_b_ref[0], sa_ow_ref[0], sa_ob_ref[0])
    x = x + gamma * _layernorm(sa, post_g, post_b)

    # ---- cross-attention block (k = memory + PE, value = raw memory) ----
    q_in = _layernorm(x, pre_g, pre_b) + pos_s
    ca = mha(q_in, k_mem, mem,
             ca_w_ref[0], ca_b_ref[0], ca_ow_ref[0], ca_ob_ref[0])
    x = x + gamma * _layernorm(ca, post_g, post_b)

    # ---- feed-forward block ----
    h1 = jnp.maximum(
        _mm(_layernorm(x, pre_g, pre_b), ff_w1_ref[0]) + ff_b1_ref[0], 0.0)
    h2 = _mm(h1, ff_w2_ref[0]) + ff_b2_ref[0]
    x = x + gamma * _layernorm(h2, post_g, post_b)

    x_scr[...] = x

    # Last layer: apply the final decoder LayerNorm and emit the output block.
    @pl.when(l == pl.num_programs(1) - 1)
    def _final():
        out_ref[0] = _layernorm(x, fin_g_ref[...],
                                fin_b_ref[...]).astype(out_ref.dtype)


# ------------------------------- glue (JAX) ---------------------------------

def sinusoidal_pe(length, dim):
    pos = jnp.arange(length, dtype=jnp.float32)[:, None]
    div = jnp.exp(jnp.arange(0, dim, 2, dtype=jnp.float32)
                  * (-math.log(10000.0) / dim))
    pe = jnp.zeros((length, dim), jnp.float32)
    pe = pe.at[:, 0::2].set(jnp.sin(pos * div))
    pe = pe.at[:, 1::2].set(jnp.cos(pos * div))
    return pe  # (L, D)


@partial(jax.jit, static_argnums=(3,))
def trans_decoder(tgt, memory, params, head_num):
    B, S, D = tgt.shape
    T = memory.shape[1]
    layers = params["layers"]
    L = len(layers)
    DFF = layers[0]["ff_w1"].shape[0]

    pos_s = sinusoidal_pe(S, D)          # (S, D) — shared across batch
    pos_t = sinusoidal_pe(T, D)          # (T, D)

    def st(get, dtype=jnp.float32):
        return jnp.stack([get(p) for p in layers]).astype(dtype)

    args = (
        tgt,                                                    # (B, S, D)
        memory,                                                 # (B, T, D)
        pos_s, pos_t,
        st(lambda p: p["pre_ln_g"].reshape(1, D)),              # (L, 1, D)
        st(lambda p: p["pre_ln_b"].reshape(1, D)),
        st(lambda p: p["post_ln_g"].reshape(1, D)),
        st(lambda p: p["post_ln_b"].reshape(1, D)),
        st(lambda p: p["gamma"].reshape(1, D)),
        st(lambda p: p["self_attn"]["in_w"].T, jnp.bfloat16),   # (L, D, 3D)
        st(lambda p: p["self_attn"]["in_b"].reshape(1, 3 * D)), # (L, 1, 3D)
        st(lambda p: p["self_attn"]["out_w"].T, jnp.bfloat16),  # (L, D, D)
        st(lambda p: p["self_attn"]["out_b"].reshape(1, D)),
        st(lambda p: p["cross_attn"]["in_w"].T, jnp.bfloat16),
        st(lambda p: p["cross_attn"]["in_b"].reshape(1, 3 * D)),
        st(lambda p: p["cross_attn"]["out_w"].T, jnp.bfloat16),
        st(lambda p: p["cross_attn"]["out_b"].reshape(1, D)),
        st(lambda p: p["ff_w1"].T, jnp.bfloat16),               # (L, D, DFF)
        st(lambda p: p["ff_b1"].reshape(1, DFF)),               # (L, 1, DFF)
        st(lambda p: p["ff_w2"].T, jnp.bfloat16),               # (L, DFF, D)
        st(lambda p: p["ff_b2"].reshape(1, D)),
        params["final_ln_g"].reshape(1, D),
        params["final_ln_b"].reshape(1, D),
    )

    per_layer_vec = pl.BlockSpec((1, 1, D), lambda b, l: (l, 0, 0))
    in_specs = [
        pl.BlockSpec((1, S, D), lambda b, l: (b, 0, 0)),        # tgt
        pl.BlockSpec((1, T, D), lambda b, l: (b, 0, 0)),        # memory
        pl.BlockSpec((S, D), lambda b, l: (0, 0)),              # pos_s
        pl.BlockSpec((T, D), lambda b, l: (0, 0)),              # pos_t
        per_layer_vec, per_layer_vec,                           # pre_ln g/b
        per_layer_vec, per_layer_vec,                           # post_ln g/b
        per_layer_vec,                                          # gamma
        pl.BlockSpec((1, D, 3 * D), lambda b, l: (l, 0, 0)),    # sa in_w
        pl.BlockSpec((1, 1, 3 * D), lambda b, l: (l, 0, 0)),    # sa in_b
        pl.BlockSpec((1, D, D), lambda b, l: (l, 0, 0)),        # sa out_w
        per_layer_vec,                                          # sa out_b
        pl.BlockSpec((1, D, 3 * D), lambda b, l: (l, 0, 0)),    # ca in_w
        pl.BlockSpec((1, 1, 3 * D), lambda b, l: (l, 0, 0)),    # ca in_b
        pl.BlockSpec((1, D, D), lambda b, l: (l, 0, 0)),        # ca out_w
        per_layer_vec,                                          # ca out_b
        pl.BlockSpec((1, D, DFF), lambda b, l: (l, 0, 0)),      # ff_w1
        pl.BlockSpec((1, 1, DFF), lambda b, l: (l, 0, 0)),      # ff_b1
        pl.BlockSpec((1, DFF, D), lambda b, l: (l, 0, 0)),      # ff_w2
        per_layer_vec,                                          # ff_b2
        pl.BlockSpec((1, D), lambda b, l: (0, 0)),              # final_ln_g
        pl.BlockSpec((1, D), lambda b, l: (0, 0)),              # final_ln_b
    ]

    out = pl.pallas_call(
        partial(_decoder_layer_kernel, H=head_num, D=D),
        out_shape=jax.ShapeDtypeStruct((B, S, D), tgt.dtype),
        grid=(B, L),
        in_specs=in_specs,
        out_specs=pl.BlockSpec((1, S, D), lambda b, l: (b, 0, 0)),
        scratch_shapes=[pltpu.VMEM((S, D), jnp.float32)],       # residual stream
        compiler_params=pltpu.CompilerParams(
            dimension_semantics=("parallel", "arbitrary"),
            vmem_limit_bytes=32 * 1024 * 1024,
        ),
    )(*args)
    return out


# -------------------------- deterministic params ----------------------------

def init_mha_params(key, D):
    k1, k2 = jax.random.split(key)
    return {
        "in_w": 0.05 * jax.random.normal(k1, (3 * D, D), jnp.float32),
        "in_b": jnp.zeros((3 * D,), jnp.float32),
        "out_w": 0.05 * jax.random.normal(k2, (D, D), jnp.float32),
        "out_b": jnp.zeros((D,), jnp.float32),
    }


def init_params(key, D, dff, num_layers):
    layers = []
    for _ in range(num_layers):
        key, k_sa, k_ca, k_f1, k_f2 = jax.random.split(key, 5)
        layers.append({
            "pre_ln_g": jnp.ones((D,), jnp.float32),
            "pre_ln_b": jnp.zeros((D,), jnp.float32),
            "post_ln_g": jnp.ones((D,), jnp.float32),
            "post_ln_b": jnp.zeros((D,), jnp.float32),
            "gamma": 0.1 * jnp.ones((D,), jnp.float32),   # LayerScaleBlock init
            "self_attn": init_mha_params(k_sa, D),
            "cross_attn": init_mha_params(k_ca, D),
            "ff_w1": 0.05 * jax.random.normal(k_f1, (dff, D), jnp.float32),
            "ff_b1": jnp.zeros((dff,), jnp.float32),
            "ff_w2": 0.05 * jax.random.normal(k_f2, (D, dff), jnp.float32),
            "ff_b2": jnp.zeros((D,), jnp.float32),
        })
    return {
        "layers": layers,
        "final_ln_g": jnp.ones((D,), jnp.float32),
        "final_ln_b": jnp.zeros((D,), jnp.float32),
    }


# ---------------------------------- main -------------------------------------

if __name__ == "__main__":
    B, S, T = 2, 8, 16          # batch, tgt seq, memory seq
    D, H, DFF = 32, 4, 64       # model_dim, head_num, dim_feedforward
    NUM_LAYERS = 2

    key = jax.random.PRNGKey(0)
    k_tgt, k_mem, k_par = jax.random.split(key, 3)
    tgt = jax.random.normal(k_tgt, (B, S, D), jnp.float32)
    memory = jax.random.normal(k_mem, (B, T, D), jnp.float32)
    params = init_params(k_par, D, DFF, NUM_LAYERS)

    out = trans_decoder(tgt, memory, params, H)
    out = jax.block_until_ready(out)
    assert out.shape == (B, S, D) and out.dtype == jnp.float32
    assert bool(jnp.all(jnp.isfinite(out)))
    print("KERNEL_OK")
</pallas_src>

<mosaic_0001>
module attributes {stable_mosaic.version = 11 : i64} {
  func.func @_decoder_layer_kernel(%arg0: i32, %arg1: i32, %arg2: memref<1x8x32xf32, #tpu.memory_space<vmem>>, %arg3: memref<1x16x32xf32, #tpu.memory_space<vmem>>, %arg4: memref<8x32xf32, #tpu.memory_space<vmem>>, %arg5: memref<16x32xf32, #tpu.memory_space<vmem>>, %arg6: memref<1x1x32xf32, #tpu.memory_space<vmem>>, %arg7: memref<1x1x32xf32, #tpu.memory_space<vmem>>, %arg8: memref<1x1x32xf32, #tpu.memory_space<vmem>>, %arg9: memref<1x1x32xf32, #tpu.memory_space<vmem>>, %arg10: memref<1x1x32xf32, #tpu.memory_space<vmem>>, %arg11: memref<1x32x96xbf16, #tpu.memory_space<vmem>>, %arg12: memref<1x1x96xf32, #tpu.memory_space<vmem>>, %arg13: memref<1x32x32xbf16, #tpu.memory_space<vmem>>, %arg14: memref<1x1x32xf32, #tpu.memory_space<vmem>>, %arg15: memref<1x32x96xbf16, #tpu.memory_space<vmem>>, %arg16: memref<1x1x96xf32, #tpu.memory_space<vmem>>, %arg17: memref<1x32x32xbf16, #tpu.memory_space<vmem>>, %arg18: memref<1x1x32xf32, #tpu.memory_space<vmem>>, %arg19: memref<1x32x64xbf16, #tpu.memory_space<vmem>>, %arg20: memref<1x1x64xf32, #tpu.memory_space<vmem>>, %arg21: memref<1x64x32xbf16, #tpu.memory_space<vmem>>, %arg22: memref<1x1x32xf32, #tpu.memory_space<vmem>>, %arg23: memref<1x32xf32, #tpu.memory_space<vmem>>, %arg24: memref<1x32xf32, #tpu.memory_space<vmem>>, %arg25: memref<1x8x32xf32, #tpu.memory_space<vmem>>, %arg26: memref<8x32xf32, #tpu.memory_space<vmem>>) attributes {dimension_semantics = [#tpu.dimension_semantics<parallel>, #tpu.dimension_semantics<arbitrary>], iteration_bounds = array<i64: 2, 2>, scalar_prefetch = 0 : i64, scratch_operands = 1 : i64, tpu.core_type = #tpu.core_type<tc>, window_params = [{transform_indices = @transform_0, window_bounds = array<i64: 1, 8, 32>}, {transform_indices = @transform_1, window_bounds = array<i64: 1, 16, 32>}, {pipeline_mode = #tpu.pipeline_mode<synchronous>, transform_indices = @transform_2, window_bounds = array<i64: 8, 32>}, {pipeline_mode = #tpu.pipeline_mode<synchronous>, transform_indices = @transform_3, window_bounds = array<i64: 16, 32>}, {transform_indices = @transform_4, window_bounds = array<i64: 1, 1, 32>}, {transform_indices = @transform_5, window_bounds = array<i64: 1, 1, 32>}, {transform_indices = @transform_6, window_bounds = array<i64: 1, 1, 32>}, {transform_indices = @transform_7, window_bounds = array<i64: 1, 1, 32>}, {transform_indices = @transform_8, window_bounds = array<i64: 1, 1, 32>}, {transform_indices = @transform_9, window_bounds = array<i64: 1, 32, 96>}, {transform_indices = @transform_10, window_bounds = array<i64: 1, 1, 96>}, {transform_indices = @transform_11, window_bounds = array<i64: 1, 32, 32>}, {transform_indices = @transform_12, window_bounds = array<i64: 1, 1, 32>}, {transform_indices = @transform_13, window_bounds = array<i64: 1, 32, 96>}, {transform_indices = @transform_14, window_bounds = array<i64: 1, 1, 96>}, {transform_indices = @transform_15, window_bounds = array<i64: 1, 32, 32>}, {transform_indices = @transform_16, window_bounds = array<i64: 1, 1, 32>}, {transform_indices = @transform_17, window_bounds = array<i64: 1, 32, 64>}, {transform_indices = @transform_18, window_bounds = array<i64: 1, 1, 64>}, {transform_indices = @transform_19, window_bounds = array<i64: 1, 64, 32>}, {transform_indices = @transform_20, window_bounds = array<i64: 1, 1, 32>}, {pipeline_mode = #tpu.pipeline_mode<synchronous>, transform_indices = @transform_21, window_bounds = array<i64: 1, 32>}, {pipeline_mode = #tpu.pipeline_mode<synchronous>, transform_indices = @transform_22, window_bounds = array<i64: 1, 32>}, {transform_indices = @transform_23, window_bounds = array<i64: 1, 8, 32>}]} {
    %c0_i32 = arith.constant 0 : i32
    %0 = arith.cmpi eq, %arg1, %c0_i32 : i32
    %1 = arith.extui %0 : i1 to i32
    %c0_i32_0 = arith.constant 0 : i32
    %2 = arith.cmpi ne, %1, %c0_i32_0 : i32
    scf.if %2 {
      %c0_143 = arith.constant 0 : index
      %c0_144 = arith.constant 0 : index
      %c0_145 = arith.constant 0 : index
      %414 = vector.load %arg2[%c0_143, %c0_144, %c0_145] : memref<1x8x32xf32, #tpu.memory_space<vmem>>, vector<1x8x32xf32>
      %415 = vector.shape_cast %414 : vector<1x8x32xf32> to vector<8x32xf32>
      %c0_146 = arith.constant 0 : index
      %c0_147 = arith.constant 0 : index
      %416 = vector.load %arg26[%c0_146, %c0_147] : memref<8x32xf32, #tpu.memory_space<vmem>>, vector<8x32xf32>
      tpu.vector_store %arg26[%c0_146, %c0_147], %415 {strides = array<i32>} : memref<8x32xf32, #tpu.memory_space<vmem>>, vector<8x32xf32>,
    } else {
    }
    %c0 = arith.constant 0 : index
    %c0_1 = arith.constant 0 : index
    %c0_2 = arith.constant 0 : index
    %3 = vector.load %arg3[%c0, %c0_1, %c0_2] : memref<1x16x32xf32, #tpu.memory_space<vmem>>, vector<1x16x32xf32>
    %4 = vector.shape_cast %3 : vector<1x16x32xf32> to vector<16x32xf32>
    %c0_3 = arith.constant 0 : index
    %c0_4 = arith.constant 0 : index
    %5 = vector.load %arg4[%c0_3, %c0_4] : memref<8x32xf32, #tpu.memory_space<vmem>>, vector<8x32xf32>
    %c0_5 = arith.constant 0 : index
    %c0_6 = arith.constant 0 : index
    %6 = vector.load %arg5[%c0_5, %c0_6] : memref<16x32xf32, #tpu.memory_space<vmem>>, vector<16x32xf32>
    %7 = arith.addf %4, %6 : vector<16x32xf32>
    %c0_7 = arith.constant 0 : index
    %c0_8 = arith.constant 0 : index
    %c0_9 = arith.constant 0 : index
    %8 = vector.load %arg6[%c0_7, %c0_8, %c0_9] : memref<1x1x32xf32, #tpu.memory_space<vmem>>, vector<1x1x32xf32>
    %9 = vector.shape_cast %8 : vector<1x1x32xf32> to vector<1x32xf32>
    %c0_10 = arith.constant 0 : index
    %c0_11 = arith.constant 0 : index
    %c0_12 = arith.constant 0 : index
    %10 = vector.load %arg7[%c0_10, %c0_11, %c0_12] : memref<1x1x32xf32, #tpu.memory_space<vmem>>, vector<1x1x32xf32>
    %11 = vector.shape_cast %10 : vector<1x1x32xf32> to vector<1x32xf32>
    %c0_13 = arith.constant 0 : index
    %c0_14 = arith.constant 0 : index
    %c0_15 = arith.constant 0 : index
    %12 = vector.load %arg8[%c0_13, %c0_14, %c0_15] : memref<1x1x32xf32, #tpu.memory_space<vmem>>, vector<1x1x32xf32>
    %13 = vector.shape_cast %12 : vector<1x1x32xf32> to vector<1x32xf32>
    %c0_16 = arith.constant 0 : index
    %c0_17 = arith.constant 0 : index
    %c0_18 = arith.constant 0 : index
    %14 = vector.load %arg9[%c0_16, %c0_17, %c0_18] : memref<1x1x32xf32, #tpu.memory_space<vmem>>, vector<1x1x32xf32>
    %15 = vector.shape_cast %14 : vector<1x1x32xf32> to vector<1x32xf32>
    %c0_19 = arith.constant 0 : index
    %c0_20 = arith.constant 0 : index
    %c0_21 = arith.constant 0 : index
    %16 = vector.load %arg10[%c0_19, %c0_20, %c0_21] : memref<1x1x32xf32, #tpu.memory_space<vmem>>, vector<1x1x32xf32>
    %17 = vector.shape_cast %16 : vector<1x1x32xf32> to vector<1x32xf32>
    %c0_22 = arith.constant 0 : index
    %c0_23 = arith.constant 0 : index
    %18 = vector.load %arg26[%c0_22, %c0_23] : memref<8x32xf32, #tpu.memory_space<vmem>>, vector<8x32xf32>
    %cst = arith.constant dense<0.000000e+00> : vector<8xf32>
    %19 = vector.multi_reduction <add>, %18, %cst [1] : vector<8x32xf32> to vector<8xf32>
    %20 = vector.shape_cast %19 : vector<8xf32> to vector<8x1xf32>
    %cst_24 = arith.constant 3.200000e+01 : f32
    %21 = vector.broadcast %cst_24 : f32 to vector<8x1xf32>
    %22 = arith.divf %20, %21 : vector<8x1xf32>
    %23 = vector.broadcast %22 : vector<8x1xf32> to vector<8x32xf32>
    %24 = arith.subf %18, %23 : vector<8x32xf32>
    %25 = arith.mulf %24, %24 : vector<8x32xf32>
    %cst_25 = arith.constant dense<0.000000e+00> : vector<8xf32>
    %26 = vector.multi_reduction <add>, %25, %cst_25 [1] : vector<8x32xf32> to vector<8xf32>
    %27 = vector.shape_cast %26 : vector<8xf32> to vector<8x1xf32>
    %cst_26 = arith.constant 3.200000e+01 : f32
    %28 = vector.broadcast %cst_26 : f32 to vector<8x1xf32>
    %29 = arith.divf %27, %28 : vector<8x1xf32>
    %30 = vector.broadcast %22 : vector<8x1xf32> to vector<8x32xf32>
    %31 = arith.subf %18, %30 : vector<8x32xf32>
    %cst_27 = arith.constant 9.99999974E-6 : f32
    %32 = vector.broadcast %cst_27 : f32 to vector<8x1xf32>
    %33 = arith.addf %29, %32 : vector<8x1xf32>
    %34 = math.rsqrt %33 : vector<8x1xf32>
    %35 = vector.broadcast %34 : vector<8x1xf32> to vector<8x32xf32>
    %36 = arith.mulf %31, %35 : vector<8x32xf32>
    %37 = vector.broadcast %9 : vector<1x32xf32> to vector<8x32xf32>
    %38 = arith.mulf %36, %37 : vector<8x32xf32>
    %39 = vector.broadcast %11 : vector<1x32xf32> to vector<8x32xf32>
    %40 = arith.addf %38, %39 : vector<8x32xf32>
    %41 = arith.addf %40, %5 : vector<8x32xf32>
    %c0_28 = arith.constant 0 : index
    %c0_29 = arith.constant 0 : index
    %c0_30 = arith.constant 0 : index
    %42 = vector.load %arg11[%c0_28, %c0_29, %c0_30] : memref<1x32x96xbf16, #tpu.memory_space<vmem>>, vector<1x32x96xbf16>
    %43 = vector.shape_cast %42 : vector<1x32x96xbf16> to vector<32x96xbf16>
    %c0_31 = arith.constant 0 : index
    %c0_32 = arith.constant 0 : index
    %c0_33 = arith.constant 0 : index
    %44 = vector.load %arg12[%c0_31, %c0_32, %c0_33] : memref<1x1x96xf32, #tpu.memory_space<vmem>>, vector<1x1x96xf32>
    %45 = vector.shape_cast %44 : vector<1x1x96xf32> to vector<1x96xf32>
    %c0_34 = arith.constant 0 : index
    %c0_35 = arith.constant 0 : index
    %c0_36 = arith.constant 0 : index
    %46 = vector.load %arg13[%c0_34, %c0_35, %c0_36] : memref<1x32x32xbf16, #tpu.memory_space<vmem>>, vector<1x32x32xbf16>
    %47 = vector.shape_cast %46 : vector<1x32x32xbf16> to vector<32x32xbf16>
    %c0_37 = arith.constant 0 : index
    %c0_38 = arith.constant 0 : index
    %c0_39 = arith.constant 0 : index
    %48 = vector.load %arg14[%c0_37, %c0_38, %c0_39] : memref<1x1x32xf32, #tpu.memory_space<vmem>>, vector<1x1x32xf32>
    %49 = vector.shape_cast %48 : vector<1x1x32xf32> to vector<1x32xf32>
    %50 = vector.extract_strided_slice %43 {offsets = [0, 0], sizes = [32, 32], strides = [1, 1]} : vector<32x96xbf16> to vector<32x32xbf16>
    %51 = arith.truncf %41 : vector<8x32xf32> to vector<8x32xbf16>
    %cst_40 = arith.constant dense<0.000000e+00> : vector<8x32xf32>
    %52 = tpu.matmul %51, %50, %cst_40 {dimension_numbers = #tpu.dot_dimension_numbers<[1], [0], [0], [1], [0, 0, 1, 1], [], []>} : vector<8x32xbf16>, vector<32x32xbf16>, vector<8x32xf32> -> vector<8x32xf32>
    %53 = vector.extract_strided_slice %45 {offsets = [0, 0], sizes = [1, 32], strides = [1, 1]} : vector<1x96xf32> to vector<1x32xf32>
    %54 = vector.broadcast %53 : vector<1x32xf32> to vector<8x32xf32>
    %55 = arith.addf %52, %54 : vector<8x32xf32>
    %56 = vector.extract_strided_slice %43 {offsets = [0, 32], sizes = [32, 32], strides = [1, 1]} : vector<32x96xbf16> to vector<32x32xbf16>
    %57 = arith.truncf %41 : vector<8x32xf32> to vector<8x32xbf16>
    %cst_41 = arith.constant dense<0.000000e+00> : vector<8x32xf32>
    %58 = tpu.matmul %57, %56, %cst_41 {dimension_numbers = #tpu.dot_dimension_numbers<[1], [0], [0], [1], [0, 0, 1, 1], [], []>} : vector<8x32xbf16>, vector<32x32xbf16>, vector<8x32xf32> -> vector<8x32xf32>
    %59 = vector.extract_strided_slice %45 {offsets = [0, 32], sizes = [1, 32], strides = [1, 1]} : vector<1x96xf32> to vector<1x32xf32>
    %60 = vector.broadcast %59 : vector<1x32xf32> to vector<8x32xf32>
    %61 = arith.addf %58, %60 : vector<8x32xf32>
    %62 = vector.extract_strided_slice %43 {offsets = [0, 64], sizes = [32, 32], strides = [1, 1]} : vector<32x96xbf16> to vector<32x32xbf16>
    %63 = arith.truncf %40 : vector<8x32xf32> to vector<8x32xbf16>
    %cst_42 = arith.constant dense<0.000000e+00> : vector<8x32xf32>
    %64 = tpu.matmul %63, %62, %cst_42 {dimension_numbers = #tpu.dot_dimension_numbers<[1], [0], [0], [1], [0, 0, 1, 1], [], []>} : vector<8x32xbf16>, vector<32x32xbf16>, vector<8x32xf32> -> vector<8x32xf32>
    %65 = vector.extract_strided_slice %45 {offsets = [0, 64], sizes = [1, 32], strides = [1, 1]} : vector<1x96xf32> to vector<1x32xf32>
    %66 = vector.broadcast %65 : vector<1x32xf32> to vector<8x32xf32>
    %67 = arith.addf %64, %66 : vector<8x32xf32>
    %68 = vector.extract_strided_slice %55 {offsets = [0, 0], sizes = [8, 8], strides = [1, 1]} : vector<8x32xf32> to vector<8x8xf32>
    %cst_43 = arith.constant 0.353553385 : f32
    %69 = vector.broadcast %cst_43 : f32 to vector<8x8xf32>
    %70 = arith.mulf %68, %69 : vector<8x8xf32>
    %71 = arith.truncf %70 : vector<8x8xf32> to vector<8x8xbf16>
    %72 = vector.extract_strided_slice %61 {offsets = [0, 0], sizes = [8, 8], strides = [1, 1]} : vector<8x32xf32> to vector<8x8xf32>
    %73 = arith.truncf %72 : vector<8x8xf32> to vector<8x8xbf16>
    %cst_44 = arith.constant dense<0.000000e+00> : vector<8x8xf32>
    %74 = tpu.matmul %71, %73, %cst_44 {dimension_numbers = #tpu.dot_dimension_numbers<[1], [1], [0], [0], [0, 0, 1, 0], [], []>} : vector<8x8xbf16>, vector<8x8xbf16>, vector<8x8xf32> -> vector<8x8xf32>
    %cst_45 = arith.constant dense<0xFF800000> : vector<8xf32>
    %75 = vector.multi_reduction <maximumf>, %74, %cst_45 [1] : vector<8x8xf32> to vector<8xf32>
    %76 = vector.shape_cast %75 : vector<8xf32> to vector<8x1xf32>
    %77 = vector.broadcast %76 : vector<8x1xf32> to vector<8x8xf32>
    %78 = arith.subf %74, %77 : vector<8x8xf32>
    %79 = math.exp %78 : vector<8x8xf32>
    %cst_46 = arith.constant dense<0.000000e+00> : vector<8xf32>
    %80 = vector.multi_reduction <add>, %79, %cst_46 [1] : vector<8x8xf32> to vector<8xf32>
    %81 = vector.shape_cast %80 : vector<8xf32> to vector<8x1xf32>
    %82 = tpu.reciprocal %81 {approx = true} : vector<8x1xf32> -> vector<8x1xf32>
    %83 = vector.broadcast %82 : vector<8x1xf32> to vector<8x8xf32>
    %84 = arith.mulf %79, %83 : vector<8x8xf32>
    %85 = vector.extract_strided_slice %67 {offsets = [0, 0], sizes = [8, 8], strides = [1, 1]} : vector<8x32xf32> to vector<8x8xf32>
    %86 = arith.truncf %85 : vector<8x8xf32> to vector<8x8xbf16>
    %87 = arith.truncf %84 : vector<8x8xf32> to vector<8x8xbf16>
    %cst_47 = arith.constant dense<0.000000e+00> : vector<8x8xf32>
    %88 = tpu.matmul %87, %86, %cst_47 {dimension_numbers = #tpu.dot_dimension_numbers<[1], [0], [0], [1], [0, 0, 1, 1], [], []>} : vector<8x8xbf16>, vector<8x8xbf16>, vector<8x8xf32> -> vector<8x8xf32>
    %89 = vector.extract_strided_slice %55 {offsets = [0, 8], sizes = [8, 8], strides = [1, 1]} : vector<8x32xf32> to vector<8x8xf32>
    %cst_48 = arith.constant 0.353553385 : f32
    %90 = vector.broadcast %cst_48 : f32 to vector<8x8xf32>
    %91 = arith.mulf %89, %90 : vector<8x8xf32>
    %92 = arith.truncf %91 : vector<8x8xf32> to vector<8x8xbf16>
    %93 = vector.extract_strided_slice %61 {offsets = [0, 8], sizes = [8, 8], strides = [1, 1]} : vector<8x32xf32> to vector<8x8xf32>
    %94 = arith.truncf %93 : vector<8x8xf32> to vector<8x8xbf16>
    %cst_49 = arith.constant dense<0.000000e+00> : vector<8x8xf32>
    %95 = tpu.matmul %92, %94, %cst_49 {dimension_numbers = #tpu.dot_dimension_numbers<[1], [1], [0], [0], [0, 0, 1, 0], [], []>} : vector<8x8xbf16>, vector<8x8xbf16>, vector<8x8xf32> -> vector<8x8xf32>
    %cst_50 = arith.constant dense<0xFF800000> : vector<8xf32>
    %96 = vector.multi_reduction <maximumf>, %95, %cst_50 [1] : vector<8x8xf32> to vector<8xf32>
    %97 = vector.shape_cast %96 : vector<8xf32> to vector<8x1xf32>
    %98 = vector.broadcast %97 : vector<8x1xf32> to vector<8x8xf32>
    %99 = arith.subf %95, %98 : vector<8x8xf32>
    %100 = math.exp %99 : vector<8x8xf32>
    %cst_51 = arith.constant dense<0.000000e+00> : vector<8xf32>
    %101 = vector.multi_reduction <add>, %100, %cst_51 [1] : vector<8x8xf32> to vector<8xf32>
    %102 = vector.shape_cast %101 : vector<8xf32> to vector<8x1xf32>
    %103 = tpu.reciprocal %102 {approx = true} : vector<8x1xf32> -> vector<8x1xf32>
    %104 = vector.broadcast %103 : vector<8x1xf32> to vector<8x8xf32>
    %105 = arith.mulf %100, %104 : vector<8x8xf32>
    %106 = vector.extract_strided_slice %67 {offsets = [0, 8], sizes = [8, 8], strides = [1, 1]} : vector<8x32xf32> to vector<8x8xf32>
    %107 = arith.truncf %106 : vector<8x8xf32> to vector<8x8xbf16>
    %108 = arith.truncf %105 : vector<8x8xf32> to vector<8x8xbf16>
    %cst_52 = arith.constant dense<0.000000e+00> : vector<8x8xf32>
    %109 = tpu.matmul %108, %107, %cst_52 {dimension_numbers = #tpu.dot_dimension_numbers<[1], [0], [0], [1], [0, 0, 1, 1], [], []>} : vector<8x8xbf16>, vector<8x8xbf16>, vector<8x8xf32> -> vector<8x8xf32>
    %110 = vector.extract_strided_slice %55 {offsets = [0, 16], sizes = [8, 8], strides = [1, 1]} : vector<8x32xf32> to vector<8x8xf32>
    %cst_53 = arith.constant 0.353553385 : f32
    %111 = vector.broadcast %cst_53 : f32 to vector<8x8xf32>
    %112 = arith.mulf %110, %111 : vector<8x8xf32>
    %113 = arith.truncf %112 : vector<8x8xf32> to vector<8x8xbf16>
    %114 = vector.extract_strided_slice %61 {offsets = [0, 16], sizes = [8, 8], strides = [1, 1]} : vector<8x32xf32> to vector<8x8xf32>
    %115 = arith.truncf %114 : vector<8x8xf32> to vector<8x8xbf16>
    %cst_54 = arith.constant dense<0.000000e+00> : vector<8x8xf32>
    %116 = tpu.matmul %113, %115, %cst_54 {dimension_numbers = #tpu.dot_dimension_numbers<[1], [1], [0], [0], [0, 0, 1, 0], [], []>} : vector<8x8xbf16>, vector<8x8xbf16>, vector<8x8xf32> -> vector<8x8xf32>
    %cst_55 = arith.constant dense<0xFF800000> : vector<8xf32>
    %117 = vector.multi_reduction <maximumf>, %116, %cst_55 [1] : vector<8x8xf32> to vector<8xf32>
    %118 = vector.shape_cast %117 : vector<8xf32> to vector<8x1xf32>
    %119 = vector.broadcast %118 : vector<8x1xf32> to vector<8x8xf32>
    %120 = arith.subf %116, %119 : vector<8x8xf32>
    %121 = math.exp %120 : vector<8x8xf32>
    %cst_56 = arith.constant dense<0.000000e+00> : vector<8xf32>
    %122 = vector.multi_reduction <add>, %121, %cst_56 [1] : vector<8x8xf32> to vector<8xf32>
    %123 = vector.shape_cast %122 : vector<8xf32> to vector<8x1xf32>
    %124 = tpu.reciprocal %123 {approx = true} : vector<8x1xf32> -> vector<8x1xf32>
    %125 = vector.broadcast %124 : vector<8x1xf32> to vector<8x8xf32>
    %126 = arith.mulf %121, %125 : vector<8x8xf32>
    %127 = vector.extract_strided_slice %67 {offsets = [0, 16], sizes = [8, 8], strides = [1, 1]} : vector<8x32xf32> to vector<8x8xf32>
    %128 = arith.truncf %127 : vector<8x8xf32> to vector<8x8xbf16>
    %129 = arith.truncf %126 : vector<8x8xf32> to vector<8x8xbf16>
    %cst_57 = arith.constant dense<0.000000e+00> : vector<8x8xf32>
    %130 = tpu.matmul %129, %128, %cst_57 {dimension_numbers = #tpu.dot_dimension_numbers<[1], [0], [0], [1], [0, 0, 1, 1], [], []>} : vector<8x8xbf16>, vector<8x8xbf16>, vector<8x8xf32> -> vector<8x8xf32>
    %131 = vector.extract_strided_slice %55 {offsets = [0, 24], sizes = [8, 8], strides = [1, 1]} : vector<8x32xf32> to vector<8x8xf32>
    %cst_58 = arith.constant 0.353553385 : f32
    %132 = vector.broadcast %cst_58 : f32 to vector<8x8xf32>
    %133 = arith.mulf %131, %132 : vector<8x8xf32>
    %134 = arith.truncf %133 : vector<8x8xf32> to vector<8x8xbf16>
    %135 = vector.extract_strided_slice %61 {offsets = [0, 24], sizes = [8, 8], strides = [1, 1]} : vector<8x32xf32> to vector<8x8xf32>
    %136 = arith.truncf %135 : vector<8x8xf32> to vector<8x8xbf16>
    %cst_59 = arith.constant dense<0.000000e+00> : vector<8x8xf32>
    %137 = tpu.matmul %134, %136, %cst_59 {dimension_numbers = #tpu.dot_dimension_numbers<[1], [1], [0], [0], [0, 0, 1, 0], [], []>} : vector<8x8xbf16>, vector<8x8xbf16>, vector<8x8xf32> -> vector<8x8xf32>
    %cst_60 = arith.constant dense<0xFF800000> : vector<8xf32>
    %138 = vector.multi_reduction <maximumf>, %137, %cst_60 [1] : vector<8x8xf32> to vector<8xf32>
    %139 = vector.shape_cast %138 : vector<8xf32> to vector<8x1xf32>
    %140 = vector.broadcast %139 : vector<8x1xf32> to vector<8x8xf32>
    %141 = arith.subf %137, %140 : vector<8x8xf32>
    %142 = math.exp %141 : vector<8x8xf32>
    %cst_61 = arith.constant dense<0.000000e+00> : vector<8xf32>
    %143 = vector.multi_reduction <add>, %142, %cst_61 [1] : vector<8x8xf32> to vector<8xf32>
    %144 = vector.shape_cast %143 : vector<8xf32> to vector<8x1xf32>
    %145 = tpu.reciprocal %144 {approx = true} : vector<8x1xf32> -> vector<8x1xf32>
    %146 = vector.broadcast %145 : vector<8x1xf32> to vector<8x8xf32>
    %147 = arith.mulf %142, %146 : vector<8x8xf32>
    %148 = vector.extract_strided_slice %67 {offsets = [0, 24], sizes = [8, 8], strides = [1, 1]} : vector<8x32xf32> to vector<8x8xf32>
    %149 = arith.truncf %148 : vector<8x8xf32> to vector<8x8xbf16>
    %150 = arith.truncf %147 : vector<8x8xf32> to vector<8x8xbf16>
    %cst_62 = arith.constant dense<0.000000e+00> : vector<8x8xf32>
    %151 = tpu.matmul %150, %149, %cst_62 {dimension_numbers = #tpu.dot_dimension_numbers<[1], [0], [0], [1], [0, 0, 1, 1], [], []>} : vector<8x8xbf16>, vector<8x8xbf16>, vector<8x8xf32> -> vector<8x8xf32>
    %152 = tpu.concatenate %88, %109, %130, %151 in 1 : vector<8x8xf32>, vector<8x8xf32>, vector<8x8xf32>, vector<8x8xf32> -> vector<8x32xf32>
    %153 = arith.truncf %152 : vector<8x32xf32> to vector<8x32xbf16>
    %cst_63 = arith.constant dense<0.000000e+00> : vector<8x32xf32>
    %154 = tpu.matmul %153, %47, %cst_63 {dimension_numbers = #tpu.dot_dimension_numbers<[1], [0], [0], [1], [0, 0, 1, 1], [], []>} : vector<8x32xbf16>, vector<32x32xbf16>, vector<8x32xf32> -> vector<8x32xf32>
    %155 = vector.broadcast %49 : vector<1x32xf32> to vector<8x32xf32>
    %156 = arith.addf %154, %155 : vector<8x32xf32>
    %cst_64 = arith.constant dense<0.000000e+00> : vector<8xf32>
    %157 = vector.multi_reduction <add>, %156, %cst_64 [1] : vector<8x32xf32> to vector<8xf32>
    %158 = vector.shape_cast %157 : vector<8xf32> to vector<8x1xf32>
    %cst_65 = arith.constant 3.200000e+01 : f32
    %159 = vector.broadcast %cst_65 : f32 to vector<8x1xf32>
    %160 = arith.divf %158, %159 : vector<8x1xf32>
    %161 = vector.broadcast %160 : vector<8x1xf32> to vector<8x32xf32>
    %162 = arith.subf %156, %161 : vector<8x32xf32>
    %163 = arith.mulf %162, %162 : vector<8x32xf32>
    %cst_66 = arith.constant dense<0.000000e+00> : vector<8xf32>
    %164 = vector.multi_reduction <add>, %163, %cst_66 [1] : vector<8x32xf32> to vector<8xf32>
    %165 = vector.shape_cast %164 : vector<8xf32> to vector<8x1xf32>
    %cst_67 = arith.constant 3.200000e+01 : f32
    %166 = vector.broadcast %cst_67 : f32 to vector<8x1xf32>
    %167 = arith.divf %165, %166 : vector<8x1xf32>
    %168 = vector.broadcast %160 : vector<8x1xf32> to vector<8x32xf32>
    %169 = arith.subf %156, %168 : vector<8x32xf32>
    %cst_68 = arith.constant 9.99999974E-6 : f32
    %170 = vector.broadcast %cst_68 : f32 to vector<8x1xf32>
    %171 = arith.addf %167, %170 : vector<8x1xf32>
    %172 = math.rsqrt %171 : vector<8x1xf32>
    %173 = vector.broadcast %172 : vector<8x1xf32> to vector<8x32xf32>
    %174 = arith.mulf %169, %173 : vector<8x32xf32>
    %175 = vector.broadcast %13 : vector<1x32xf32> to vector<8x32xf32>
    %176 = arith.mulf %174, %175 : vector<8x32xf32>
    %177 = vector.broadcast %15 : vector<1x32xf32> to vector<8x32xf32>
    %178 = arith.addf %176, %177 : vector<8x32xf32>
    %179 = vector.broadcast %17 : vector<1x32xf32> to vector<8x32xf32>
    %180 = arith.mulf %179, %178 : vector<8x32xf32>
    %181 = arith.addf %18, %180 : vector<8x32xf32>
    %cst_69 = arith.constant dense<0.000000e+00> : vector<8xf32>
    %182 = vector.multi_reduction <add>, %181, %cst_69 [1] : vector<8x32xf32> to vector<8xf32>
    %183 = vector.shape_cast %182 : vector<8xf32> to vector<8x1xf32>
    %cst_70 = arith.constant 3.200000e+01 : f32
    %184 = vector.broadcast %cst_70 : f32 to vector<8x1xf32>
    %185 = arith.divf %183, %184 : vector<8x1xf32>
    %186 = vector.broadcast %185 : vector<8x1xf32> to vector<8x32xf32>
    %187 = arith.subf %181, %186 : vector<8x32xf32>
    %188 = arith.mulf %187, %187 : vector<8x32xf32>
    %cst_71 = arith.constant dense<0.000000e+00> : vector<8xf32>
    %189 = vector.multi_reduction <add>, %188, %cst_71 [1] : vector<8x32xf32> to vector<8xf32>
    %190 = vector.shape_cast %189 : vector<8xf32> to vector<8x1xf32>
    %cst_72 = arith.constant 3.200000e+01 : f32
    %191 = vector.broadcast %cst_72 : f32 to vector<8x1xf32>
    %192 = arith.divf %190, %191 : vector<8x1xf32>
    %193 = vector.broadcast %185 : vector<8x1xf32> to vector<8x32xf32>
    %194 = arith.subf %181, %193 : vector<8x32xf32>
    %cst_73 = arith.constant 9.99999974E-6 : f32
    %195 = vector.broadcast %cst_73 : f32 to vector<8x1xf32>
    %196 = arith.addf %192, %195 : vector<8x1xf32>
    %197 = math.rsqrt %196 : vector<8x1xf32>
    %198 = vector.broadcast %197 : vector<8x1xf32> to vector<8x32xf32>
    %199 = arith.mulf %194, %198 : vector<8x32xf32>
    %200 = vector.broadcast %9 : vector<1x32xf32> to vector<8x32xf32>
    %201 = arith.mulf %199, %200 : vector<8x32xf32>
    %202 = vector.broadcast %11 : vector<1x32xf32> to vector<8x32xf32>
    %203 = arith.addf %201, %202 : vector<8x32xf32>
    %204 = arith.addf %203, %5 : vector<8x32xf32>
    %c0_74 = arith.constant 0 : index
    %c0_75 = arith.constant 0 : index
    %c0_76 = arith.constant 0 : index
    %205 = vector.load %arg15[%c0_74, %c0_75, %c0_76] : memref<1x32x96xbf16, #tpu.memory_space<vmem>>, vector<1x32x96xbf16>
    %206 = vector.shape_cast %205 : vector<1x32x96xbf16> to vector<32x96xbf16>
    %c0_77 = arith.constant 0 : index
    %c0_78 = arith.constant 0 : index
    %c0_79 = arith.constant 0 : index
    %207 = vector.load %arg16[%c0_77, %c0_78, %c0_79] : memref<1x1x96xf32, #tpu.memory_space<vmem>>, vector<1x1x96xf32>
    %208 = vector.shape_cast %207 : vector<1x1x96xf32> to vector<1x96xf32>
    %c0_80 = arith.constant 0 : index
    %c0_81 = arith.constant 0 : index
    %c0_82 = arith.constant 0 : index
    %209 = vector.load %arg17[%c0_80, %c0_81, %c0_82] : memref<1x32x32xbf16, #tpu.memory_space<vmem>>, vector<1x32x32xbf16>
    %210 = vector.shape_cast %209 : vector<1x32x32xbf16> to vector<32x32xbf16>
    %c0_83 = arith.constant 0 : index
    %c0_84 = arith.constant 0 : index
    %c0_85 = arith.constant 0 : index
    %211 = vector.load %arg18[%c0_83, %c0_84, %c0_85] : memref<1x1x32xf32, #tpu.memory_space<vmem>>, vector<1x1x32xf32>
    %212 = vector.shape_cast %211 : vector<1x1x32xf32> to vector<1x32xf32>
    %213 = vector.extract_strided_slice %206 {offsets = [0, 0], sizes = [32, 32], strides = [1, 1]} : vector<32x96xbf16> to vector<32x32xbf16>
    %214 = arith.truncf %204 : vector<8x32xf32> to vector<8x32xbf16>
    %cst_86 = arith.constant dense<0.000000e+00> : vector<8x32xf32>
    %215 = tpu.matmul %214, %213, %cst_86 {dimension_numbers = #tpu.dot_dimension_numbers<[1], [0], [0], [1], [0, 0, 1, 1], [], []>} : vector<8x32xbf16>, vector<32x32xbf16>, vector<8x32xf32> -> vector<8x32xf32>
    %216 = vector.extract_strided_slice %208 {offsets = [0, 0], sizes = [1, 32], strides = [1, 1]} : vector<1x96xf32> to vector<1x32xf32>
    %217 = vector.broadcast %216 : vector<1x32xf32> to vector<8x32xf32>
    %218 = arith.addf %215, %217 : vector<8x32xf32>
    %219 = vector.extract_strided_slice %206 {offsets = [0, 32], sizes = [32, 32], strides = [1, 1]} : vector<32x96xbf16> to vector<32x32xbf16>
    %220 = arith.truncf %7 : vector<16x32xf32> to vector<16x32xbf16>
    %cst_87 = arith.constant dense<0.000000e+00> : vector<16x32xf32>
    %221 = tpu.matmul %220, %219, %cst_87 {dimension_numbers = #tpu.dot_dimension_numbers<[1], [0], [0], [1], [0, 0, 1, 1], [], []>} : vector<16x32xbf16>, vector<32x32xbf16>, vector<16x32xf32> -> vector<16x32xf32>
    %222 = vector.extract_strided_slice %208 {offsets = [0, 32], sizes = [1, 32], strides = [1, 1]} : vector<1x96xf32> to vector<1x32xf32>
    %223 = vector.broadcast %222 : vector<1x32xf32> to vector<16x32xf32>
    %224 = arith.addf %221, %223 : vector<16x32xf32>
    %225 = vector.extract_strided_slice %206 {offsets = [0, 64], sizes = [32, 32], strides = [1, 1]} : vector<32x96xbf16> to vector<32x32xbf16>
    %226 = arith.truncf %4 : vector<16x32xf32> to vector<16x32xbf16>
    %cst_88 = arith.constant dense<0.000000e+00> : vector<16x32xf32>
    %227 = tpu.matmul %226, %225, %cst_88 {dimension_numbers = #tpu.dot_dimension_numbers<[1], [0], [0], [1], [0, 0, 1, 1], [], []>} : vector<16x32xbf16>, vector<32x32xbf16>, vector<16x32xf32> -> vector<16x32xf32>
    %228 = vector.extract_strided_slice %208 {offsets = [0, 64], sizes = [1, 32], strides = [1, 1]} : vector<1x96xf32> to vector<1x32xf32>
    %229 = vector.broadcast %228 : vector<1x32xf32> to vector<16x32xf32>
    %230 = arith.addf %227, %229 : vector<16x32xf32>
    %231 = vector.extract_strided_slice %218 {offsets = [0, 0], sizes = [8, 8], strides = [1, 1]} : vector<8x32xf32> to vector<8x8xf32>
    %cst_89 = arith.constant 0.353553385 : f32
    %232 = vector.broadcast %cst_89 : f32 to vector<8x8xf32>
    %233 = arith.mulf %231, %232 : vector<8x8xf32>
    %234 = arith.truncf %233 : vector<8x8xf32> to vector<8x8xbf16>
    %235 = vector.extract_strided_slice %224 {offsets = [0, 0], sizes = [16, 8], strides = [1, 1]} : vector<16x32xf32> to vector<16x8xf32>
    %236 = arith.truncf %235 : vector<16x8xf32> to vector<16x8xbf16>
    %cst_90 = arith.constant dense<0.000000e+00> : vector<8x16xf32>
    %237 = tpu.matmul %234, %236, %cst_90 {dimension_numbers = #tpu.dot_dimension_numbers<[1], [1], [0], [0], [0, 0, 1, 0], [], []>} : vector<8x8xbf16>, vector<16x8xbf16>, vector<8x16xf32> -> vector<8x16xf32>
    %cst_91 = arith.constant dense<0xFF800000> : vector<8xf32>
    %238 = vector.multi_reduction <maximumf>, %237, %cst_91 [1] : vector<8x16xf32> to vector<8xf32>
    %239 = vector.shape_cast %238 : vector<8xf32> to vector<8x1xf32>
    %240 = vector.broadcast %239 : vector<8x1xf32> to vector<8x16xf32>
    %241 = arith.subf %237, %240 : vector<8x16xf32>
    %242 = math.exp %241 : vector<8x16xf32>
    %cst_92 = arith.constant dense<0.000000e+00> : vector<8xf32>
    %243 = vector.multi_reduction <add>, %242, %cst_92 [1] : vector<8x16xf32> to vector<8xf32>
    %244 = vector.shape_cast %243 : vector<8xf32> to vector<8x1xf32>
    %245 = tpu.reciprocal %244 {approx = true} : vector<8x1xf32> -> vector<8x1xf32>
    %246 = vector.broadcast %245 : vector<8x1xf32> to vector<8x16xf32>
    %247 = arith.mulf %242, %246 : vector<8x16xf32>
    %248 = vector.extract_strided_slice %230 {offsets = [0, 0], sizes = [16, 8], strides = [1, 1]} : vector<16x32xf32> to vector<16x8xf32>
    %249 = arith.truncf %248 : vector<16x8xf32> to vector<16x8xbf16>
    %250 = arith.truncf %247 : vector<8x16xf32> to vector<8x16xbf16>
    %cst_93 = arith.constant dense<0.000000e+00> : vector<8x8xf32>
    %251 = tpu.matmul %250, %249, %cst_93 {dimension_numbers = #tpu.dot_dimension_numbers<[1], [0], [0], [1], [0, 0, 1, 1], [], []>} : vector<8x16xbf16>, vector<16x8xbf16>, vector<8x8xf32> -> vector<8x8xf32>
    %252 = vector.extract_strided_slice %218 {offsets = [0, 8], sizes = [8, 8], strides = [1, 1]} : vector<8x32xf32> to vector<8x8xf32>
    %cst_94 = arith.constant 0.353553385 : f32
    %253 = vector.broadcast %cst_94 : f32 to vector<8x8xf32>
    %254 = arith.mulf %252, %253 : vector<8x8xf32>
    %255 = arith.truncf %254 : vector<8x8xf32> to vector<8x8xbf16>
    %256 = vector.extract_strided_slice %224 {offsets = [0, 8], sizes = [16, 8], strides = [1, 1]} : vector<16x32xf32> to vector<16x8xf32>
    %257 = arith.truncf %256 : vector<16x8xf32> to vector<16x8xbf16>
    %cst_95 = arith.constant dense<0.000000e+00> : vector<8x16xf32>
    %258 = tpu.matmul %255, %257, %cst_95 {dimension_numbers = #tpu.dot_dimension_numbers<[1], [1], [0], [0], [0, 0, 1, 0], [], []>} : vector<8x8xbf16>, vector<16x8xbf16>, vector<8x16xf32> -> vector<8x16xf32>
    %cst_96 = arith.constant dense<0xFF800000> : vector<8xf32>
    %259 = vector.multi_reduction <maximumf>, %258, %cst_96 [1] : vector<8x16xf32> to vector<8xf32>
    %260 = vector.shape_cast %259 : vector<8xf32> to vector<8x1xf32>
    %261 = vector.broadcast %260 : vector<8x1xf32> to vector<8x16xf32>
    %262 = arith.subf %258, %261 : vector<8x16xf32>
    %263 = math.exp %262 : vector<8x16xf32>
    %cst_97 = arith.constant dense<0.000000e+00> : vector<8xf32>
    %264 = vector.multi_reduction <add>, %263, %cst_97 [1] : vector<8x16xf32> to vector<8xf32>
    %265 = vector.shape_cast %264 : vector<8xf32> to vector<8x1xf32>
    %266 = tpu.reciprocal %265 {approx = true} : vector<8x1xf32> -> vector<8x1xf32>
    %267 = vector.broadcast %266 : vector<8x1xf32> to vector<8x16xf32>
    %268 = arith.mulf %263, %267 : vector<8x16xf32>
    %269 = vector.extract_strided_slice %230 {offsets = [0, 8], sizes = [16, 8], strides = [1, 1]} : vector<16x32xf32> to vector<16x8xf32>
    %270 = arith.truncf %269 : vector<16x8xf32> to vector<16x8xbf16>
    %271 = arith.truncf %268 : vector<8x16xf32> to vector<8x16xbf16>
    %cst_98 = arith.constant dense<0.000000e+00> : vector<8x8xf32>
    %272 = tpu.matmul %271, %270, %cst_98 {dimension_numbers = #tpu.dot_dimension_numbers<[1], [0], [0], [1], [0, 0, 1, 1], [], []>} : vector<8x16xbf16>, vector<16x8xbf16>, vector<8x8xf32> -> vector<8x8xf32>
    %273 = vector.extract_strided_slice %218 {offsets = [0, 16], sizes = [8, 8], strides = [1, 1]} : vector<8x32xf32> to vector<8x8xf32>
    %cst_99 = arith.constant 0.353553385 : f32
    %274 = vector.broadcast %cst_99 : f32 to vector<8x8xf32>
    %275 = arith.mulf %273, %274 : vector<8x8xf32>
    %276 = arith.truncf %275 : vector<8x8xf32> to vector<8x8xbf16>
    %277 = vector.extract_strided_slice %224 {offsets = [0, 16], sizes = [16, 8], strides = [1, 1]} : vector<16x32xf32> to vector<16x8xf32>
    %278 = arith.truncf %277 : vector<16x8xf32> to vector<16x8xbf16>
    %cst_100 = arith.constant dense<0.000000e+00> : vector<8x16xf32>
    %279 = tpu.matmul %276, %278, %cst_100 {dimension_numbers = #tpu.dot_dimension_numbers<[1], [1], [0], [0], [0, 0, 1, 0], [], []>} : vector<8x8xbf16>, vector<16x8xbf16>, vector<8x16xf32> -> vector<8x16xf32>
    %cst_101 = arith.constant dense<0xFF800000> : vector<8xf32>
    %280 = vector.multi_reduction <maximumf>, %279, %cst_101 [1] : vector<8x16xf32> to vector<8xf32>
    %281 = vector.shape_cast %280 : vector<8xf32> to vector<8x1xf32>
    %282 = vector.broadcast %281 : vector<8x1xf32> to vector<8x16xf32>
    %283 = arith.subf %279, %282 : vector<8x16xf32>
    %284 = math.exp %283 : vector<8x16xf32>
    %cst_102 = arith.constant dense<0.000000e+00> : vector<8xf32>
    %285 = vector.multi_reduction <add>, %284, %cst_102 [1] : vector<8x16xf32> to vector<8xf32>
    %286 = vector.shape_cast %285 : vector<8xf32> to vector<8x1xf32>
    %287 = tpu.reciprocal %286 {approx = true} : vector<8x1xf32> -> vector<8x1xf32>
    %288 = vector.broadcast %287 : vector<8x1xf32> to vector<8x16xf32>
    %289 = arith.mulf %284, %288 : vector<8x16xf32>
    %290 = vector.extract_strided_slice %230 {offsets = [0, 16], sizes = [16, 8], strides = [1, 1]} : vector<16x32xf32> to vector<16x8xf32>
    %291 = arith.truncf %290 : vector<16x8xf32> to vector<16x8xbf16>
    %292 = arith.truncf %289 : vector<8x16xf32> to vector<8x16xbf16>
    %cst_103 = arith.constant dense<0.000000e+00> : vector<8x8xf32>
    %293 = tpu.matmul %292, %291, %cst_103 {dimension_numbers = #tpu.dot_dimension_numbers<[1], [0], [0], [1], [0, 0, 1, 1], [], []>} : vector<8x16xbf16>, vector<16x8xbf16>, vector<8x8xf32> -> vector<8x8xf32>
    %294 = vector.extract_strided_slice %218 {offsets = [0, 24], sizes = [8, 8], strides = [1, 1]} : vector<8x32xf32> to vector<8x8xf32>
    %cst_104 = arith.constant 0.353553385 : f32
    %295 = vector.broadcast %cst_104 : f32 to vector<8x8xf32>
    %296 = arith.mulf %294, %295 : vector<8x8xf32>
    %297 = arith.truncf %296 : vector<8x8xf32> to vector<8x8xbf16>
    %298 = vector.extract_strided_slice %224 {offsets = [0, 24], sizes = [16, 8], strides = [1, 1]} : vector<16x32xf32> to vector<16x8xf32>
    %299 = arith.truncf %298 : vector<16x8xf32> to vector<16x8xbf16>
    %cst_105 = arith.constant dense<0.000000e+00> : vector<8x16xf32>
    %300 = tpu.matmul %297, %299, %cst_105 {dimension_numbers = #tpu.dot_dimension_numbers<[1], [1], [0], [0], [0, 0, 1, 0], [], []>} : vector<8x8xbf16>, vector<16x8xbf16>, vector<8x16xf32> -> vector<8x16xf32>
    %cst_106 = arith.constant dense<0xFF800000> : vector<8xf32>
    %301 = vector.multi_reduction <maximumf>, %300, %cst_106 [1] : vector<8x16xf32> to vector<8xf32>
    %302 = vector.shape_cast %301 : vector<8xf32> to vector<8x1xf32>
    %303 = vector.broadcast %302 : vector<8x1xf32> to vector<8x16xf32>
    %304 = arith.subf %300, %303 : vector<8x16xf32>
    %305 = math.exp %304 : vector<8x16xf32>
    %cst_107 = arith.constant dense<0.000000e+00> : vector<8xf32>
    %306 = vector.multi_reduction <add>, %305, %cst_107 [1] : vector<8x16xf32> to vector<8xf32>
    %307 = vector.shape_cast %306 : vector<8xf32> to vector<8x1xf32>
    %308 = tpu.reciprocal %307 {approx = true} : vector<8x1xf32> -> vector<8x1xf32>
    %309 = vector.broadcast %308 : vector<8x1xf32> to vector<8x16xf32>
    %310 = arith.mulf %305, %309 : vector<8x16xf32>
    %311 = vector.extract_strided_slice %230 {offsets = [0, 24], sizes = [16, 8], strides = [1, 1]} : vector<16x32xf32> to vector<16x8xf32>
    %312 = arith.truncf %311 : vector<16x8xf32> to vector<16x8xbf16>
    %313 = arith.truncf %310 : vector<8x16xf32> to vector<8x16xbf16>
    %cst_108 = arith.constant dense<0.000000e+00> : vector<8x8xf32>
    %314 = tpu.matmul %313, %312, %cst_108 {dimension_numbers = #tpu.dot_dimension_numbers<[1], [0], [0], [1], [0, 0, 1, 1], [], []>} : vector<8x16xbf16>, vector<16x8xbf16>, vector<8x8xf32> -> vector<8x8xf32>
    %315 = tpu.concatenate %251, %272, %293, %314 in 1 : vector<8x8xf32>, vector<8x8xf32>, vector<8x8xf32>, vector<8x8xf32> -> vector<8x32xf32>
    %316 = arith.truncf %315 : vector<8x32xf32> to vector<8x32xbf16>
    %cst_109 = arith.constant dense<0.000000e+00> : vector<8x32xf32>
    %317 = tpu.matmul %316, %210, %cst_109 {dimension_numbers = #tpu.dot_dimension_numbers<[1], [0], [0], [1], [0, 0, 1, 1], [], []>} : vector<8x32xbf16>, vector<32x32xbf16>, vector<8x32xf32> -> vector<8x32xf32>
    %318 = vector.broadcast %212 : vector<1x32xf32> to vector<8x32xf32>
    %319 = arith.addf %317, %318 : vector<8x32xf32>
    %cst_110 = arith.constant dense<0.000000e+00> : vector<8xf32>
    %320 = vector.multi_reduction <add>, %319, %cst_110 [1] : vector<8x32xf32> to vector<8xf32>
    %321 = vector.shape_cast %320 : vector<8xf32> to vector<8x1xf32>
    %cst_111 = arith.constant 3.200000e+01 : f32
    %322 = vector.broadcast %cst_111 : f32 to vector<8x1xf32>
    %323 = arith.divf %321, %322 : vector<8x1xf32>
    %324 = vector.broadcast %323 : vector<8x1xf32> to vector<8x32xf32>
    %325 = arith.subf %319, %324 : vector<8x32xf32>
    %326 = arith.mulf %325, %325 : vector<8x32xf32>
    %cst_112 = arith.constant dense<0.000000e+00> : vector<8xf32>
    %327 = vector.multi_reduction <add>, %326, %cst_112 [1] : vector<8x32xf32> to vector<8xf32>
    %328 = vector.shape_cast %327 : vector<8xf32> to vector<8x1xf32>
    %cst_113 = arith.constant 3.200000e+01 : f32
    %329 = vector.broadcast %cst_113 : f32 to vector<8x1xf32>
    %330 = arith.divf %328, %329 : vector<8x1xf32>
    %331 = vector.broadcast %323 : vector<8x1xf32> to vector<8x32xf32>
    %332 = arith.subf %319, %331 : vector<8x32xf32>
    %cst_114 = arith.constant 9.99999974E-6 : f32
    %333 = vector.broadcast %cst_114 : f32 to vector<8x1xf32>
    %334 = arith.addf %330, %333 : vector<8x1xf32>
    %335 = math.rsqrt %334 : vector<8x1xf32>
    %336 = vector.broadcast %335 : vector<8x1xf32> to vector<8x32xf32>
    %337 = arith.mulf %332, %336 : vector<8x32xf32>
    %338 = vector.broadcast %13 : vector<1x32xf32> to vector<8x32xf32>
    %339 = arith.mulf %337, %338 : vector<8x32xf32>
    %340 = vector.broadcast %15 : vector<1x32xf32> to vector<8x32xf32>
    %341 = arith.addf %339, %340 : vector<8x32xf32>
    %342 = vector.broadcast %17 : vector<1x32xf32> to vector<8x32xf32>
    %343 = arith.mulf %342, %341 : vector<8x32xf32>
    %344 = arith.addf %181, %343 : vector<8x32xf32>
    %cst_115 = arith.constant dense<0.000000e+00> : vector<8xf32>
    %345 = vector.multi_reduction <add>, %344, %cst_115 [1] : vector<8x32xf32> to vector<8xf32>
    %346 = vector.shape_cast %345 : vector<8xf32> to vector<8x1xf32>
    %cst_116 = arith.constant 3.200000e+01 : f32
    %347 = vector.broadcast %cst_116 : f32 to vector<8x1xf32>
    %348 = arith.divf %346, %347 : vector<8x1xf32>
    %349 = vector.broadcast %348 : vector<8x1xf32> to vector<8x32xf32>
    %350 = arith.subf %344, %349 : vector<8x32xf32>
    %351 = arith.mulf %350, %350 : vector<8x32xf32>
    %cst_117 = arith.constant dense<0.000000e+00> : vector<8xf32>
    %352 = vector.multi_reduction <add>, %351, %cst_117 [1] : vector<8x32xf32> to vector<8xf32>
    %353 = vector.shape_cast %352 : vector<8xf32> to vector<8x1xf32>
    %cst_118 = arith.constant 3.200000e+01 : f32
    %354 = vector.broadcast %cst_118 : f32 to vector<8x1xf32>
    %355 = arith.divf %353, %354 : vector<8x1xf32>
    %356 = vector.broadcast %348 : vector<8x1xf32> to vector<8x32xf32>
    %357 = arith.subf %344, %356 : vector<8x32xf32>
    %cst_119 = arith.constant 9.99999974E-6 : f32
    %358 = vector.broadcast %cst_119 : f32 to vector<8x1xf32>
    %359 = arith.addf %355, %358 : vector<8x1xf32>
    %360 = math.rsqrt %359 : vector<8x1xf32>
    %361 = vector.broadcast %360 : vector<8x1xf32> to vector<8x32xf32>
    %362 = arith.mulf %357, %361 : vector<8x32xf32>
    %363 = vector.broadcast %9 : vector<1x32xf32> to vector<8x32xf32>
    %364 = arith.mulf %362, %363 : vector<8x32xf32>
    %365 = vector.broadcast %11 : vector<1x32xf32> to vector<8x32xf32>
    %366 = arith.addf %364, %365 : vector<8x32xf32>
    %c0_120 = arith.constant 0 : index
    %c0_121 = arith.constant 0 : index
    %c0_122 = arith.constant 0 : index
    %367 = vector.load %arg19[%c0_120, %c0_121, %c0_122] : memref<1x32x64xbf16, #tpu.memory_space<vmem>>, vector<1x32x64xbf16>
    %368 = vector.shape_cast %367 : vector<1x32x64xbf16> to vector<32x64xbf16>
    %369 = arith.truncf %366 : vector<8x32xf32> to vector<8x32xbf16>
    %cst_123 = arith.constant dense<0.000000e+00> : vector<8x64xf32>
    %370 = tpu.matmul %369, %368, %cst_123 {dimension_numbers = #tpu.dot_dimension_numbers<[1], [0], [0], [1], [0, 0, 1, 1], [], []>} : vector<8x32xbf16>, vector<32x64xbf16>, vector<8x64xf32> -> vector<8x64xf32>
    %c0_124 = arith.constant 0 : index
    %c0_125 = arith.constant 0 : index
    %c0_126 = arith.constant 0 : index
    %371 = vector.load %arg20[%c0_124, %c0_125, %c0_126] : memref<1x1x64xf32, #tpu.memory_space<vmem>>, vector<1x1x64xf32>
    %372 = vector.shape_cast %371 : vector<1x1x64xf32> to vector<1x64xf32>
    %373 = vector.broadcast %372 : vector<1x64xf32> to vector<8x64xf32>
    %374 = arith.addf %370, %373 : vector<8x64xf32>
    %cst_127 = arith.constant 0.000000e+00 : f32
    %375 = vector.broadcast %cst_127 : f32 to vector<8x64xf32>
    %376 = arith.maximumf %374, %375 : vector<8x64xf32>
    %c0_128 = arith.constant 0 : index
    %c0_129 = arith.constant 0 : index
    %c0_130 = arith.constant 0 : index
    %377 = vector.load %arg21[%c0_128, %c0_129, %c0_130] : memref<1x64x32xbf16, #tpu.memory_space<vmem>>, vector<1x64x32xbf16>
    %378 = vector.shape_cast %377 : vector<1x64x32xbf16> to vector<64x32xbf16>
    %379 = arith.truncf %376 : vector<8x64xf32> to vector<8x64xbf16>
    %cst_131 = arith.constant dense<0.000000e+00> : vector<8x32xf32>
    %380 = tpu.matmul %379, %378, %cst_131 {dimension_numbers = #tpu.dot_dimension_numbers<[1], [0], [0], [1], [0, 0, 1, 1], [], []>} : vector<8x64xbf16>, vector<64x32xbf16>, vector<8x32xf32> -> vector<8x32xf32>
    %c0_132 = arith.constant 0 : index
    %c0_133 = arith.constant 0 : index
    %c0_134 = arith.constant 0 : index
    %381 = vector.load %arg22[%c0_132, %c0_133, %c0_134] : memref<1x1x32xf32, #tpu.memory_space<vmem>>, vector<1x1x32xf32>
    %382 = vector.shape_cast %381 : vector<1x1x32xf32> to vector<1x32xf32>
    %383 = vector.broadcast %382 : vector<1x32xf32> to vector<8x32xf32>
    %384 = arith.addf %380, %383 : vector<8x32xf32>
    %cst_135 = arith.constant dense<0.000000e+00> : vector<8xf32>
    %385 = vector.multi_reduction <add>, %384, %cst_135 [1] : vector<8x32xf32> to vector<8xf32>
    %386 = vector.shape_cast %385 : vector<8xf32> to vector<8x1xf32>
    %cst_136 = arith.constant 3.200000e+01 : f32
    %387 = vector.broadcast %cst_136 : f32 to vector<8x1xf32>
    %388 = arith.divf %386, %387 : vector<8x1xf32>
    %389 = vector.broadcast %388 : vector<8x1xf32> to vector<8x32xf32>
    %390 = arith.subf %384, %389 : vector<8x32xf32>
    %391 = arith.mulf %390, %390 : vector<8x32xf32>
    %cst_137 = arith.constant dense<0.000000e+00> : vector<8xf32>
    %392 = vector.multi_reduction <add>, %391, %cst_137 [1] : vector<8x32xf32> to vector<8xf32>
    %393 = vector.shape_cast %392 : vector<8xf32> to vector<8x1xf32>
    %cst_138 = arith.constant 3.200000e+01 : f32
    %394 = vector.broadcast %cst_138 : f32 to vector<8x1xf32>
    %395 = arith.divf %393, %394 : vector<8x1xf32>
    %396 = vector.broadcast %388 : vector<8x1xf32> to vector<8x32xf32>
    %397 = arith.subf %384, %396 : vector<8x32xf32>
    %cst_139 = arith.constant 9.99999974E-6 : f32
    %398 = vector.broadcast %cst_139 : f32 to vector<8x1xf32>
    %399 = arith.addf %395, %398 : vector<8x1xf32>
    %400 = math.rsqrt %399 : vector<8x1xf32>
    %401 = vector.broadcast %400 : vector<8x1xf32> to vector<8x32xf32>
    %402 = arith.mulf %397, %401 : vector<8x32xf32>
    %403 = vector.broadcast %13 : vector<1x32xf32> to vector<8x32xf32>
    %404 = arith.mulf %402, %403 : vector<8x32xf32>
    %405 = vector.broadcast %15 : vector<1x32xf32> to vector<8x32xf32>
    %406 = arith.addf %404, %405 : vector<8x32xf32>
    %407 = vector.broadcast %17 : vector<1x32xf32> to vector<8x32xf32>
    %408 = arith.mulf %407, %406 : vector<8x32xf32>
    %409 = arith.addf %344, %408 : vector<8x32xf32>
    %c0_140 = arith.constant 0 : index
    %c0_141 = arith.constant 0 : index
    %410 = vector.load %arg26[%c0_140, %c0_141] : memref<8x32xf32, #tpu.memory_space<vmem>>, vector<8x32xf32>
    tpu.vector_store %arg26[%c0_140, %c0_141], %409 {strides = array<i32>} : memref<8x32xf32, #tpu.memory_space<vmem>>, vector<8x32xf32>,
    %c1_i32 = arith.constant 1 : i32
    %411 = arith.cmpi eq, %arg1, %c1_i32 : i32
    %412 = arith.extui %411 : i1 to i32
    %c0_i32_142 = arith.constant 0 : i32
    %413 = arith.cmpi ne, %412, %c0_i32_142 : i32
    scf.if %413 {
      %c0_143 = arith.constant 0 : index
      %c0_144 = arith.constant 0 : index
      %414 = vector.load %arg23[%c0_143, %c0_144] : memref<1x32xf32, #tpu.memory_space<vmem>>, vector<1x32xf32>
      %c0_145 = arith.constant 0 : index
      %c0_146 = arith.constant 0 : index
      %415 = vector.load %arg24[%c0_145, %c0_146] : memref<1x32xf32, #tpu.memory_space<vmem>>, vector<1x32xf32>
      %cst_147 = arith.constant dense<0.000000e+00> : vector<8xf32>
      %416 = vector.multi_reduction <add>, %409, %cst_147 [1] : vector<8x32xf32> to vector<8xf32>
      %417 = vector.shape_cast %416 : vector<8xf32> to vector<8x1xf32>
      %cst_148 = arith.constant 3.200000e+01 : f32
      %418 = vector.broadcast %cst_148 : f32 to vector<8x1xf32>
      %419 = arith.divf %417, %418 : vector<8x1xf32>
      %420 = vector.broadcast %419 : vector<8x1xf32> to vector<8x32xf32>
      %421 = arith.subf %409, %420 : vector<8x32xf32>
      %422 = arith.mulf %421, %421 : vector<8x32xf32>
      %cst_149 = arith.constant dense<0.000000e+00> : vector<8xf32>
      %423 = vector.multi_reduction <add>, %422, %cst_149 [1] : vector<8x32xf32> to vector<8xf32>
      %424 = vector.shape_cast %423 : vector<8xf32> to vector<8x1xf32>
      %cst_150 = arith.constant 3.200000e+01 : f32
      %425 = vector.broadcast %cst_150 : f32 to vector<8x1xf32>
      %426 = arith.divf %424, %425 : vector<8x1xf32>
      %427 = vector.broadcast %419 : vector<8x1xf32> to vector<8x32xf32>
      %428 = arith.subf %409, %427 : vector<8x32xf32>
      %cst_151 = arith.constant 9.99999974E-6 : f32
      %429 = vector.broadcast %cst_151 : f32 to vector<8x1xf32>
      %430 = arith.addf %426, %429 : vector<8x1xf32>
      %431 = math.rsqrt %430 : vector<8x1xf32>
      %432 = vector.broadcast %431 : vector<8x1xf32> to vector<8x32xf32>
      %433 = arith.mulf %428, %432 : vector<8x32xf32>
      %434 = vector.broadcast %414 : vector<1x32xf32> to vector<8x32xf32>
      %435 = arith.mulf %433, %434 : vector<8x32xf32>
      %436 = vector.broadcast %415 : vector<1x32xf32> to vector<8x32xf32>
      %437 = arith.addf %435, %436 : vector<8x32xf32>
      %c0_152 = arith.constant 0 : index
      %c0_153 = arith.constant 0 : index
      %c0_154 = arith.constant 0 : index
      %438 = vector.load %arg25[%c0_152, %c0_153, %c0_154] : memref<1x8x32xf32, #tpu.memory_space<vmem>>, vector<1x8x32xf32>
      %439 = vector.shape_cast %438 : vector<1x8x32xf32> to vector<8x32xf32>
      %440 = vector.shape_cast %437 : vector<8x32xf32> to vector<1x8x32xf32>
      tpu.vector_store %arg25[%c0_152, %c0_153, %c0_154], %440 {strides = array<i32>} : memref<1x8x32xf32, #tpu.memory_space<vmem>>, vector<1x8x32xf32>,
    } else {
    }
    return
  }
  func.func @transform_0(%arg0: i32, %arg1: i32) -> (i32, i32, i32) {
    %c0_i32 = arith.constant 0 : i32
    %c0_i32_0 = arith.constant 0 : i32
    %c0_i32_1 = arith.constant 0 : i32
    return %arg0, %c0_i32, %c0_i32_0 : i32, i32, i32
  }
  func.func @transform_1(%arg0: i32, %arg1: i32) -> (i32, i32, i32) {
    %c0_i32 = arith.constant 0 : i32
    %c0_i32_0 = arith.constant 0 : i32
    %c0_i32_1 = arith.constant 0 : i32
    return %arg0, %c0_i32, %c0_i32_0 : i32, i32, i32
  }
  func.func @transform_2(%arg0: i32, %arg1: i32) -> (i32, i32) {
    %c0_i32 = arith.constant 0 : i32
    %c0_i32_0 = arith.constant 0 : i32
    %c0_i32_1 = arith.constant 0 : i32
    return %c0_i32, %c0_i32_0 : i32, i32
  }
  func.func @transform_3(%arg0: i32, %arg1: i32) -> (i32, i32) {
    %c0_i32 = arith.constant 0 : i32
    %c0_i32_0 = arith.constant 0 : i32
    %c0_i32_1 = arith.constant 0 : i32
    return %c0_i32, %c0_i32_0 : i32, i32
  }
  func.func @transform_4(%arg0: i32, %arg1: i32) -> (i32, i32, i32) {
    %c0_i32 = arith.constant 0 : i32
    %c0_i32_0 = arith.constant 0 : i32
    %c0_i32_1 = arith.constant 0 : i32
    return %arg1, %c0_i32, %c0_i32_0 : i32, i32, i32
  }
  func.func @transform_5(%arg0: i32, %arg1: i32) -> (i32, i32, i32) {
    %c0_i32 = arith.constant 0 : i32
    %c0_i32_0 = arith.constant 0 : i32
    %c0_i32_1 = arith.constant 0 : i32
    return %arg1, %c0_i32, %c0_i32_0 : i32, i32, i32
  }
  func.func @transform_6(%arg0: i32, %arg1: i32) -> (i32, i32, i32) {
    %c0_i32 = arith.constant 0 : i32
    %c0_i32_0 = arith.constant 0 : i32
    %c0_i32_1 = arith.constant 0 : i32
    return %arg1, %c0_i32, %c0_i32_0 : i32, i32, i32
  }
  func.func @transform_7(%arg0: i32, %arg1: i32) -> (i32, i32, i32) {
    %c0_i32 = arith.constant 0 : i32
    %c0_i32_0 = arith.constant 0 : i32
    %c0_i32_1 = arith.constant 0 : i32
    return %arg1, %c0_i32, %c0_i32_0 : i32, i32, i32
  }
  func.func @transform_8(%arg0: i32, %arg1: i32) -> (i32, i32, i32) {
    %c0_i32 = arith.constant 0 : i32
    %c0_i32_0 = arith.constant 0 : i32
    %c0_i32_1 = arith.constant 0 : i32
    return %arg1, %c0_i32, %c0_i32_0 : i32, i32, i32
  }
  func.func @transform_9(%arg0: i32, %arg1: i32) -> (i32, i32, i32) {
    %c0_i32 = arith.constant 0 : i32
    %c0_i32_0 = arith.constant 0 : i32
    %c0_i32_1 = arith.constant 0 : i32
    return %arg1, %c0_i32, %c0_i32_0 : i32, i32, i32
  }
  func.func @transform_10(%arg0: i32, %arg1: i32) -> (i32, i32, i32) {
    %c0_i32 = arith.constant 0 : i32
    %c0_i32_0 = arith.constant 0 : i32
    %c0_i32_1 = arith.constant 0 : i32
    return %arg1, %c0_i32, %c0_i32_0 : i32, i32, i32
  }
  func.func @transform_11(%arg0: i32, %arg1: i32) -> (i32, i32, i32) {
    %c0_i32 = arith.constant 0 : i32
    %c0_i32_0 = arith.constant 0 : i32
    %c0_i32_1 = arith.constant 0 : i32
    return %arg1, %c0_i32, %c0_i32_0 : i32, i32, i32
  }
  func.func @transform_12(%arg0: i32, %arg1: i32) -> (i32, i32, i32) {
    %c0_i32 = arith.constant 0 : i32
    %c0_i32_0 = arith.constant 0 : i32
    %c0_i32_1 = arith.constant 0 : i32
    return %arg1, %c0_i32, %c0_i32_0 : i32, i32, i32
  }
  func.func @transform_13(%arg0: i32, %arg1: i32) -> (i32, i32, i32) {
    %c0_i32 = arith.constant 0 : i32
    %c0_i32_0 = arith.constant 0 : i32
    %c0_i32_1 = arith.constant 0 : i32
    return %arg1, %c0_i32, %c0_i32_0 : i32, i32, i32
  }
  func.func @transform_14(%arg0: i32, %arg1: i32) -> (i32, i32, i32) {
    %c0_i32 = arith.constant 0 : i32
    %c0_i32_0 = arith.constant 0 : i32
    %c0_i32_1 = arith.constant 0 : i32
    return %arg1, %c0_i32, %c0_i32_0 : i32, i32, i32
  }
  func.func @transform_15(%arg0: i32, %arg1: i32) -> (i32, i32, i32) {
    %c0_i32 = arith.constant 0 : i32
    %c0_i32_0 = arith.constant 0 : i32
    %c0_i32_1 = arith.constant 0 : i32
    return %arg1, %c0_i32, %c0_i32_0 : i32, i32, i32
  }
  func.func @transform_16(%arg0: i32, %arg1: i32) -> (i32, i32, i32) {
    %c0_i32 = arith.constant 0 : i32
    %c0_i32_0 = arith.constant 0 : i32
    %c0_i32_1 = arith.constant 0 : i32
    return %arg1, %c0_i32, %c0_i32_0 : i32, i32, i32
  }
  func.func @transform_17(%arg0: i32, %arg1: i32) -> (i32, i32, i32) {
    %c0_i32 = arith.constant 0 : i32
    %c0_i32_0 = arith.constant 0 : i32
    %c0_i32_1 = arith.constant 0 : i32
    return %arg1, %c0_i32, %c0_i32_0 : i32, i32, i32
  }
  func.func @transform_18(%arg0: i32, %arg1: i32) -> (i32, i32, i32) {
    %c0_i32 = arith.constant 0 : i32
    %c0_i32_0 = arith.constant 0 : i32
    %c0_i32_1 = arith.constant 0 : i32
    return %arg1, %c0_i32, %c0_i32_0 : i32, i32, i32
  }
  func.func @transform_19(%arg0: i32, %arg1: i32) -> (i32, i32, i32) {
    %c0_i32 = arith.constant 0 : i32
    %c0_i32_0 = arith.constant 0 : i32
    %c0_i32_1 = arith.constant 0 : i32
    return %arg1, %c0_i32, %c0_i32_0 : i32, i32, i32
  }
  func.func @transform_20(%arg0: i32, %arg1: i32) -> (i32, i32, i32) {
    %c0_i32 = arith.constant 0 : i32
    %c0_i32_0 = arith.constant 0 : i32
    %c0_i32_1 = arith.constant 0 : i32
    return %arg1, %c0_i32, %c0_i32_0 : i32, i32, i32
  }
  func.func @transform_21(%arg0: i32, %arg1: i32) -> (i32, i32) {
    %c0_i32 = arith.constant 0 : i32
    %c0_i32_0 = arith.constant 0 : i32
    %c0_i32_1 = arith.constant 0 : i32
    return %c0_i32, %c0_i32_0 : i32, i32
  }
  func.func @transform_22(%arg0: i32, %arg1: i32) -> (i32, i32) {
    %c0_i32 = arith.constant 0 : i32
    %c0_i32_0 = arith.constant 0 : i32
    %c0_i32_1 = arith.constant 0 : i32
    return %c0_i32, %c0_i32_0 : i32, i32
  }
  func.func @transform_23(%arg0: i32, %arg1: i32) -> (i32, i32, i32) {
    %c0_i32 = arith.constant 0 : i32
    %c0_i32_0 = arith.constant 0 : i32
    %c0_i32_1 = arith.constant 0 : i32
    return %arg0, %c0_i32, %c0_i32_0 : i32, i32, i32
  }
}

</mosaic_0001>

<llo_original>
// kernel: trans_decoder.1
$region0: #{trans_decoder.1}
  #allocation0 [shape = 'u32[]', space=smem, size = 0x4, offset = 0x4, fixed_abs, tag = 'smem constant byte address 0x4 - core index']
  #allocation1 [shape = 'u32[144,128]{1,0:T(1,128)}', space=vmem, size = 0x12000, scoped, tag = 'internal scratch']
  #allocation2 [shape = 'f32[8,32]{1,0:T(8,128)}', space=vmem, size = 0x1000, scoped, tag = 'scratch operand']
  %s0 = inlined_call_operand.vmem [shape: f32[2,8,32], index: 0, kind: input, shape index: {}]
  %s1 = inlined_call_operand.vmem [shape: f32[2,16,32], index: 1, kind: input, shape index: {}]
  %s2 = inlined_call_operand.vmem [shape: f32[8,32], index: 2, kind: input, shape index: {}]
  %s3 = inlined_call_operand.vmem [shape: f32[16,32], index: 3, kind: input, shape index: {}]
  %s4 = inlined_call_operand.vmem [shape: f32[2,1,32], index: 4, kind: input, shape index: {}]
  %s5 = inlined_call_operand.vmem [shape: f32[2,1,32], index: 5, kind: input, shape index: {}]
  %s6 = inlined_call_operand.vmem [shape: f32[2,1,32], index: 6, kind: input, shape index: {}]
  %s7 = inlined_call_operand.vmem [shape: f32[2,1,32], index: 7, kind: input, shape index: {}]
  %s8 = inlined_call_operand.vmem [shape: f32[2,1,32], index: 8, kind: input, shape index: {}]
  %s9 = inlined_call_operand.vmem [shape: bf16[2,32,96], index: 9, kind: input, shape index: {}]
  %s10 = inlined_call_operand.vmem [shape: f32[2,1,96], index: 10, kind: input, shape index: {}]
  %s11 = inlined_call_operand.vmem [shape: bf16[2,32,32], index: 11, kind: input, shape index: {}]
  %s12 = inlined_call_operand.vmem [shape: f32[2,1,32], index: 12, kind: input, shape index: {}]
  %s13 = inlined_call_operand.vmem [shape: bf16[2,32,96], index: 13, kind: input, shape index: {}]
  %s14 = inlined_call_operand.vmem [shape: f32[2,1,96], index: 14, kind: input, shape index: {}]
  %s15 = inlined_call_operand.vmem [shape: bf16[2,32,32], index: 15, kind: input, shape index: {}]
  %s16 = inlined_call_operand.vmem [shape: f32[2,1,32], index: 16, kind: input, shape index: {}]
  %s17 = inlined_call_operand.vmem [shape: bf16[2,32,64], index: 17, kind: input, shape index: {}]
  %s18 = inlined_call_operand.vmem [shape: f32[2,1,64], index: 18, kind: input, shape index: {}]
  %s19 = inlined_call_operand.vmem [shape: bf16[2,64,32], index: 19, kind: input, shape index: {}]
  %s20 = inlined_call_operand.vmem [shape: f32[2,1,32], index: 20, kind: input, shape index: {}]
  %s21 = inlined_call_operand.vmem [shape: f32[1,32], index: 21, kind: input, shape index: {}]
  %s22 = inlined_call_operand.vmem [shape: f32[1,32], index: 22, kind: input, shape index: {}]
  %s23 = inlined_call_operand.hbm [shape: f32[2,8,32], index: 23, kind: output, shape index: {}]
  %s24 = sld [smem:[#allocation0]]
  $region133: #{trans_decoder.1} parent=0
    _
  %s26 = ssub.s32 1, %s24
  %s27 = scalar_select 0, %s26, %s24
  $region1: #{trans_decoder.1} parent=0
    #allocation3 [shape = 'u8[8192]{0}', space=vmem, size = 0x2000, scoped, tag = 'output window, operand 0']
    #allocation4 [shape = 's32[2]{0}', space=sflag, size = 0x8, scoped, tag = 'scoped memory for trans_decoder.1']
    %28 = vsyncpa [#allocation4], 0
    %s29 = scalar_lea.sflag [#allocation4], 1
    %30 = vsyncpa %s29, 0
    loop: start=0, step=1, limit=6
    $region2: #{trans_decoder.1} parent=1 // loop_pre_header
      _
    $region3: #{trans_decoder.1} parent=1 // loop_header
      %s32 = sphi 0, %s36
      %p33 = scmp.ge.s32.totalorder %s32, 6
      %s39 = sphi 0, %s51
      %s40 = sphi 0, %s47
      %s41 = sphi 0, %s39
      %s42 = sphi 0, %s40
      %s43 = sphi 0, %s41
      %s44 = sphi 0, %s42
      %s54 = sphi 0, %s56
      %s57 = sphi 0, %s54
      %s58 = sphi 0, %s57
      %s74 = sphi 0, %s58
      %s80 = sphi 0, %s82
      %s83 = sphi 0, %s80
      %s84 = sphi 0, %s83
      %s100 = sphi 0, %s84
      %s104 = sphi 0, %s104
      %s106 = sphi 0, %s104
      %s107 = sphi 0, %s106
      %s121 = sphi 0, %s107
      %s125 = sphi 0, %s125
      %s127 = sphi 0, %s125
      %s128 = sphi 0, %s127
      %s142 = sphi 0, %s128
      %s148 = sphi 0, %s150
      %s151 = sphi 0, %s148
      %s152 = sphi 0, %s151
      %s168 = sphi 0, %s152
      %s174 = sphi 0, %s176
      %s177 = sphi 0, %s174
      %s178 = sphi 0, %s177
      %s194 = sphi 0, %s178
      %s200 = sphi 0, %s202
      %s203 = sphi 0, %s200
      %s204 = sphi 0, %s203
      %s220 = sphi 0, %s204
      %s226 = sphi 0, %s228
      %s229 = sphi 0, %s226
      %s230 = sphi 0, %s229
      %s246 = sphi 0, %s230
      %s252 = sphi 0, %s254
      %s255 = sphi 0, %s252
      %s256 = sphi 0, %s255
      %s272 = sphi 0, %s256
      %s278 = sphi 0, %s280
      %s281 = sphi 0, %s278
      %s282 = sphi 0, %s281
      %s298 = sphi 0, %s282
      %s304 = sphi 0, %s306
      %s307 = sphi 0, %s304
      %s308 = sphi 0, %s307
      %s324 = sphi 0, %s308
      %s330 = sphi 0, %s332
      %s333 = sphi 0, %s330
      %s334 = sphi 0, %s333
      %s350 = sphi 0, %s334
      %s356 = sphi 0, %s358
      %s359 = sphi 0, %s356
      %s360 = sphi 0, %s359
      %s376 = sphi 0, %s360
      %s382 = sphi 0, %s384
      %s385 = sphi 0, %s382
      %s386 = sphi 0, %s385
      %s402 = sphi 0, %s386
      %s408 = sphi 0, %s410
      %s411 = sphi 0, %s408
      %s412 = sphi 0, %s411
      %s428 = sphi 0, %s412
      %s434 = sphi 0, %s436
      %s437 = sphi 0, %s434
      %s438 = sphi 0, %s437
      %s454 = sphi 0, %s438
      %s460 = sphi 0, %s462
      %s463 = sphi 0, %s460
      %s464 = sphi 0, %s463
      %s480 = sphi 0, %s464
      %s486 = sphi 0, %s488
      %s489 = sphi 0, %s486
      %s490 = sphi 0, %s489
      %s506 = sphi 0, %s490
      %s512 = sphi 0, %s514
      %s515 = sphi 0, %s512
      %s516 = sphi 0, %s515
      %s532 = sphi 0, %s516
      %s538 = sphi 0, %s540
      %s541 = sphi 0, %s538
      %s542 = sphi 0, %s541
      %s558 = sphi 0, %s542
      %s564 = sphi 0, %s566
      %s567 = sphi 0, %s564
      %s568 = sphi 0, %s567
      %s584 = sphi 0, %s568
      %s588 = sphi 0, %s588
      %s590 = sphi 0, %s588
      %s591 = sphi 0, %s590
      %s605 = sphi 0, %s591
      %s609 = sphi 0, %s609
      %s611 = sphi 0, %s609
      %s612 = sphi 0, %s611
      %s626 = sphi 0, %s612
      %s632 = sphi 0, %s634
      %s635 = sphi 0, %s632
      %s636 = sphi 0, %s635
      %s652 = sphi 0, %s636
    $region4: #{trans_decoder.1} parent=1 // loop_header_branch
      %35 = sbr.rel (%p33) target = $region8
    $region5: #{trans_decoder.1} parent=1 // loop_body
      %s37 = ssub.s32 %s32, 1
      %s38 = ssub.s32 %s32, 2
      %s45 = sadd.s32 1, %s40
      %p46 = scmp.ge.s32.totalorder %s45, 2
      %s47 = scalar_select %p46, 0, %s45
      %s48 = sadd.s32 1, %s39
      %s49 = scalar_select %p46, %s48, %s39
      %p50 = scmp.ge.s32.totalorder %s49, 2
      %s51 = scalar_select %p50, 0, %s49
      %s52 = ssub.s32 %s39, %s51
      %p53 = scmp.eq.s32.totalorder %s52, 0
      %s55 = sadd.s32 %s54, 1
      %s56 = scalar_select %p53, %s54, %s55
      %p59 = pneg %p53
      %p60 = scmp.eq.s32.totalorder %s32, 3
      %p61 = por %p59, %p60
      %p62 = scmp.ne.s32.totalorder %s54, %s57
      %p63 = scmp.eq.s32.totalorder %s32, 0
      %p64 = por %p62, %p63
      %p65 = scmp.ne.s32.totalorder %s54, %s57
      %p66 = scmp.eq.s32.totalorder %s37, 3
      %p67 = por %p65, %p66
      %p68 = scmp.ne.s32.totalorder %s57, %s58
      %p69 = scmp.eq.s32.totalorder %s37, 0
      %p70 = por %p68, %p69
      %p71 = scmp.ne.s32.totalorder %s57, %s58
      %p72 = scmp.eq.s32.totalorder %s38, 3
      %p73 = por %p71, %p72
      %p75 = scmp.ne.s32.totalorder %s58, %s74
      %p76 = scmp.eq.s32.totalorder %s38, 0
      %p77 = por %p75, %p76
      %s78 = ssub.s32 %s39, %s51
      %p79 = scmp.eq.s32.totalorder %s78, 0
      %s81 = sadd.s32 %s80, 1
      %s82 = scalar_select %p79, %s80, %s81
      %p85 = pneg %p79
      %p86 = scmp.eq.s32.totalorder %s32, 3
      %p87 = por %p85, %p86
      %p88 = scmp.ne.s32.totalorder %s80, %s83
      %p89 = scmp.eq.s32.totalorder %s32, 0
      %p90 = por %p88, %p89
      %p91 = scmp.ne.s32.totalorder %s80, %s83
      %p92 = scmp.eq.s32.totalorder %s37, 3
      %p93 = por %p91, %p92
      %p94 = scmp.ne.s32.totalorder %s83, %s84
      %p95 = scmp.eq.s32.totalorder %s37, 0
      %p96 = por %p94, %p95
      %p97 = scmp.ne.s32.totalorder %s83, %s84
      %p98 = scmp.eq.s32.totalorder %s38, 3
      %p99 = por %p97, %p98
      %p101 = scmp.ne.s32.totalorder %s84, %s100
      %p102 = scmp.eq.s32.totalorder %s38, 0
      %p103 = por %p101, %p102
      %s105 = sadd.s32 %s104, 1
      %p108 = scmp.eq.s32.totalorder %s32, 3
      %p109 = scmp.ne.s32.totalorder %s104, %s106
      %p110 = scmp.eq.s32.totalorder %s32, 0
      %p111 = por %p109, %p110
      %p112 = scmp.ne.s32.totalorder %s104, %s106
      %p113 = scmp.eq.s32.totalorder %s37, 3
      %p114 = por %p112, %p113
      %p115 = scmp.ne.s32.totalorder %s106, %s107
      %p116 = scmp.eq.s32.totalorder %s37, 0
      %p117 = por %p115, %p116
      %p118 = scmp.ne.s32.totalorder %s106, %s107
      %p119 = scmp.eq.s32.totalorder %s38, 3
      %p120 = por %p118, %p119
      %p122 = scmp.ne.s32.totalorder %s107, %s121
      %p123 = scmp.eq.s32.totalorder %s38, 0
      %p124 = por %p122, %p123
      %s126 = sadd.s32 %s125, 1
      %p129 = scmp.eq.s32.totalorder %s32, 3
      %p130 = scmp.ne.s32.totalorder %s125, %s127
      %p131 = scmp.eq.s32.totalorder %s32, 0
      %p132 = por %p130, %p131
      %p133 = scmp.ne.s32.totalorder %s125, %s127
      %p134 = scmp.eq.s32.totalorder %s37, 3
      %p135 = por %p133, %p134
      %p136 = scmp.ne.s32.totalorder %s127, %s128
      %p137 = scmp.eq.s32.totalorder %s37, 0
      %p138 = por %p136, %p137
      %p139 = scmp.ne.s32.totalorder %s127, %s128
      %p140 = scmp.eq.s32.totalorder %s38, 3
      %p141 = por %p139, %p140
      %p143 = scmp.ne.s32.totalorder %s128, %s142
      %p144 = scmp.eq.s32.totalorder %s38, 0
      %p145 = por %p143, %p144
      %s146 = ssub.s32 %s40, %s47
      %p147 = scmp.eq.s32.totalorder %s146, 0
      %s149 = sadd.s32 %s148, 1
      %s150 = scalar_select %p147, %s148, %s149
      %p153 = pneg %p147
      %p154 = scmp.eq.s32.totalorder %s32, 3
      %p155 = por %p153, %p154
      %p156 = scmp.ne.s32.totalorder %s148, %s151
      %p157 = scmp.eq.s32.totalorder %s32, 0
      %p158 = por %p156, %p157
      %p159 = scmp.ne.s32.totalorder %s148, %s151
      %p160 = scmp.eq.s32.totalorder %s37, 3
      %p161 = por %p159, %p160
      %p162 = scmp.ne.s32.totalorder %s151, %s152
      %p163 = scmp.eq.s32.totalorder %s37, 0
      %p164 = por %p162, %p163
      %p165 = scmp.ne.s32.totalorder %s151, %s152
      %p166 = scmp.eq.s32.totalorder %s38, 3
      %p167 = por %p165, %p166
      %p169 = scmp.ne.s32.totalorder %s152, %s168
      %p170 = scmp.eq.s32.totalorder %s38, 0
      %p171 = por %p169, %p170
      %s172 = ssub.s32 %s40, %s47
      %p173 = scmp.eq.s32.totalorder %s172, 0
      %s175 = sadd.s32 %s174, 1
      %s176 = scalar_select %p173, %s174, %s175
      %p179 = pneg %p173
      %p180 = scmp.eq.s32.totalorder %s32, 3
      %p181 = por %p179, %p180
      %p182 = scmp.ne.s32.totalorder %s174, %s177
      %p183 = scmp.eq.s32.totalorder %s32, 0
      %p184 = por %p182, %p183
      %p185 = scmp.ne.s32.totalorder %s174, %s177
      %p186 = scmp.eq.s32.totalorder %s37, 3
      %p187 = por %p185, %p186
      %p188 = scmp.ne.s32.totalorder %s177, %s178
      %p189 = scmp.eq.s32.totalorder %s37, 0
      %p190 = por %p188, %p189
      %p191 = scmp.ne.s32.totalorder %s177, %s178
      %p192 = scmp.eq.s32.totalorder %s38, 3
      %p193 = por %p191, %p192
      %p195 = scmp.ne.s32.totalorder %s178, %s194
      %p196 = scmp.eq.s32.totalorder %s38, 0
      %p197 = por %p195, %p196
      %s198 = ssub.s32 %s40, %s47
      %p199 = scmp.eq.s32.totalorder %s198, 0
      %s201 = sadd.s32 %s200, 1
      %s202 = scalar_select %p199, %s200, %s201
      %p205 = pneg %p199
      %p206 = scmp.eq.s32.totalorder %s32, 3
      %p207 = por %p205, %p206
      %p208 = scmp.ne.s32.totalorder %s200, %s203
      %p209 = scmp.eq.s32.totalorder %s32, 0
      %p210 = por %p208, %p209
      %p211 = scmp.ne.s32.totalorder %s200, %s203
      %p212 = scmp.eq.s32.totalorder %s37, 3
      %p213 = por %p211, %p212
      %p214 = scmp.ne.s32.totalorder %s203, %s204
      %p215 = scmp.eq.s32.totalorder %s37, 0
      %p216 = por %p214, %p215
      %p217 = scmp.ne.s32.totalorder %s203, %s204
      %p218 = scmp.eq.s32.totalorder %s38, 3
      %p219 = por %p217, %p218
      %p221 = scmp.ne.s32.totalorder %s204, %s220
      %p222 = scmp.eq.s32.totalorder %s38, 0
      %p223 = por %p221, %p222
      %s224 = ssub.s32 %s40, %s47
      %p225 = scmp.eq.s32.totalorder %s224, 0
      %s227 = sadd.s32 %s226, 1
      %s228 = scalar_select %p225, %s226, %s227
      %p231 = pneg %p225
      %p232 = scmp.eq.s32.totalorder %s32, 3
      %p233 = por %p231, %p232
      %p234 = scmp.ne.s32.totalorder %s226, %s229
      %p235 = scmp.eq.s32.totalorder %s32, 0
      %p236 = por %p234, %p235
      %p237 = scmp.ne.s32.totalorder %s226, %s229
      %p238 = scmp.eq.s32.totalorder %s37, 3
      %p239 = por %p237, %p238
      %p240 = scmp.ne.s32.totalorder %s229, %s230
      %p241 = scmp.eq.s32.totalorder %s37, 0
      %p242 = por %p240, %p241
      %p243 = scmp.ne.s32.totalorder %s229, %s230
      %p244 = scmp.eq.s32.totalorder %s38, 3
      %p245 = por %p243, %p244
      %p247 = scmp.ne.s32.totalorder %s230, %s246
      %p248 = scmp.eq.s32.totalorder %s38, 0
      %p249 = por %p247, %p248
      %s250 = ssub.s32 %s40, %s47
      %p251 = scmp.eq.s32.totalorder %s250, 0
      %s253 = sadd.s32 %s252, 1
      %s254 = scalar_select %p251, %s252, %s253
      %p257 = pneg %p251
      %p258 = scmp.eq.s32.totalorder %s32, 3
      %p259 = por %p257, %p258
      %p260 = scmp.ne.s32.totalorder %s252, %s255
      %p261 = scmp.eq.s32.totalorder %s32, 0
      %p262 = por %p260, %p261
      %p263 = scmp.ne.s32.totalorder %s252, %s255
      %p264 = scmp.eq.s32.totalorder %s37, 3
      %p265 = por %p263, %p264
      %p266 = scmp.ne.s32.totalorder %s255, %s256
      %p267 = scmp.eq.s32.totalorder %s37, 0
      %p268 = por %p266, %p267
      %p269 = scmp.ne.s32.totalorder %s255, %s256
      %p270 = scmp.eq.s32.totalorder %s38, 3
      %p271 = por %p269, %p270
      %p273 = scmp.ne.s32.totalorder %s256, %s272
      %p274 = scmp.eq.s32.totalorder %s38, 0
      %p275 = por %p273, %p274
      %s276 = ssub.s32 %s40, %s47
      %p277 = scmp.eq.s32.totalorder %s276, 0
      %s279 = sadd.s32 %s278, 1
      %s280 = scalar_select %p277, %s278, %s279
      %p283 = pneg %p277
      %p284 = scmp.eq.s32.totalorder %s32, 3
      %p285 = por %p283, %p284
      %p286 = scmp.ne.s32.totalorder %s278, %s281
      %p287 = scmp.eq.s32.totalorder %s32, 0
      %p288 = por %p286, %p287
      %p289 = scmp.ne.s32.totalorder %s278, %s281
      %p290 = scmp.eq.s32.totalorder %s37, 3
      %p291 = por %p289, %p290
      %p292 = scmp.ne.s32.totalorder %s281, %s282
      %p293 = scmp.eq.s32.totalorder %s37, 0
      %p294 = por %p292, %p293
      %p295 = scmp.ne.s32.totalorder %s281, %s282
      %p296 = scmp.eq.s32.totalorder %s38, 3
      %p297 = por %p295, %p296
      %p299 = scmp.ne.s32.totalorder %s282, %s298
      %p300 = scmp.eq.s32.totalorder %s38, 0
      %p301 = por %p299, %p300
      %s302 = ssub.s32 %s40, %s47
      %p303 = scmp.eq.s32.totalorder %s302, 0
      %s305 = sadd.s32 %s304, 1
      %s306 = scalar_select %p303, %s304, %s305
      %p309 = pneg %p303
      %p310 = scmp.eq.s32.totalorder %s32, 3
      %p311 = por %p309, %p310
      %p312 = scmp.ne.s32.totalorder %s304, %s307
      %p313 = scmp.eq.s32.totalorder %s32, 0
      %p314 = por %p312, %p313
      %p315 = scmp.ne.s32.totalorder %s304, %s307
      %p316 = scmp.eq.s32.totalorder %s37, 3
      %p317 = por %p315, %p316
      %p318 = scmp.ne.s32.totalorder %s307, %s308
      %p319 = scmp.eq.s32.totalorder %s37, 0
      %p320 = por %p318, %p319
      %p321 = scmp.ne.s32.totalorder %s307, %s308
      %p322 = scmp.eq.s32.totalorder %s38, 3
      %p323 = por %p321, %p322
      %p325 = scmp.ne.s32.totalorder %s308, %s324
      %p326 = scmp.eq.s32.totalorder %s38, 0
      %p327 = por %p325, %p326
      %s328 = ssub.s32 %s40, %s47
      %p329 = scmp.eq.s32.totalorder %s328, 0
      %s331 = sadd.s32 %s330, 1
      %s332 = scalar_select %p329, %s330, %s331
      %p335 = pneg %p329
      %p336 = scmp.eq.s32.totalorder %s32, 3
      %p337 = por %p335, %p336
      %p338 = scmp.ne.s32.totalorder %s330, %s333
      %p339 = scmp.eq.s32.totalorder %s32, 0
      %p340 = por %p338, %p339
      %p341 = scmp.ne.s32.totalorder %s330, %s333
      %p342 = scmp.eq.s32.totalorder %s37, 3
      %p343 = por %p341, %p342
      %p344 = scmp.ne.s32.totalorder %s333, %s334
      %p345 = scmp.eq.s32.totalorder %s37, 0
      %p346 = por %p344, %p345
      %p347 = scmp.ne.s32.totalorder %s333, %s334
      %p348 = scmp.eq.s32.totalorder %s38, 3
      %p349 = por %p347, %p348
      %p351 = scmp.ne.s32.totalorder %s334, %s350
      %p352 = scmp.eq.s32.totalorder %s38, 0
      %p353 = por %p351, %p352
      %s354 = ssub.s32 %s40, %s47
      %p355 = scmp.eq.s32.totalorder %s354, 0
      %s357 = sadd.s32 %s356, 1
      %s358 = scalar_select %p355, %s356, %s357
      %p361 = pneg %p355
      %p362 = scmp.eq.s32.totalorder %s32, 3
      %p363 = por %p361, %p362
      %p364 = scmp.ne.s32.totalorder %s356, %s359
      %p365 = scmp.eq.s32.totalorder %s32, 0
      %p366 = por %p364, %p365
      %p367 = scmp.ne.s32.totalorder %s356, %s359
      %p368 = scmp.eq.s32.totalorder %s37, 3
      %p369 = por %p367, %p368
      %p370 = scmp.ne.s32.totalorder %s359, %s360
      %p371 = scmp.eq.s32.totalorder %s37, 0
      %p372 = por %p370, %p371
      %p373 = scmp.ne.s32.totalorder %s359, %s360
      %p374 = scmp.eq.s32.totalorder %s38, 3
      %p375 = por %p373, %p374
      %p377 = scmp.ne.s32.totalorder %s360, %s376
      %p378 = scmp.eq.s32.totalorder %s38, 0
      %p379 = por %p377, %p378
      %s380 = ssub.s32 %s40, %s47
      %p381 = scmp.eq.s32.totalorder %s380, 0
      %s383 = sadd.s32 %s382, 1
      %s384 = scalar_select %p381, %s382, %s383
      %p387 = pneg %p381
      %p388 = scmp.eq.s32.totalorder %s32, 3
      %p389 = por %p387, %p388
      %p390 = scmp.ne.s32.totalorder %s382, %s385
      %p391 = scmp.eq.s32.totalorder %s32, 0
      %p392 = por %p390, %p391
      %p393 = scmp.ne.s32.totalorder %s382, %s385
      %p394 = scmp.eq.s32.totalorder %s37, 3
      %p395 = por %p393, %p394
      %p396 = scmp.ne.s32.totalorder %s385, %s386
      %p397 = scmp.eq.s32.totalorder %s37, 0
      %p398 = por %p396, %p397
      %p399 = scmp.ne.s32.totalorder %s385, %s386
      %p400 = scmp.eq.s32.totalorder %s38, 3
      %p401 = por %p399, %p400
      %p403 = scmp.ne.s32.totalorder %s386, %s402
      %p404 = scmp.eq.s32.totalorder %s38, 0
      %p405 = por %p403, %p404
      %s406 = ssub.s32 %s40, %s47
      %p407 = scmp.eq.s32.totalorder %s406, 0
      %s409 = sadd.s32 %s408, 1
      %s410 = scalar_select %p407, %s408, %s409
      %p413 = pneg %p407
      %p414 = scmp.eq.s32.totalorder %s32, 3
      %p415 = por %p413, %p414
      %p416 = scmp.ne.s32.totalorder %s408, %s411
      %p417 = scmp.eq.s32.totalorder %s32, 0
      %p418 = por %p416, %p417
      %p419 = scmp.ne.s32.totalorder %s408, %s411
      %p420 = scmp.eq.s32.totalorder %s37, 3
      %p421 = por %p419, %p420
      %p422 = scmp.ne.s32.totalorder %s411, %s412
      %p423 = scmp.eq.s32.totalorder %s37, 0
      %p424 = por %p422, %p423
      %p425 = scmp.ne.s32.totalorder %s411, %s412
      %p426 = scmp.eq.s32.totalorder %s38, 3
      %p427 = por %p425, %p426
      %p429 = scmp.ne.s32.totalorder %s412, %s428
      %p430 = scmp.eq.s32.totalorder %s38, 0
      %p431 = por %p429, %p430
      %s432 = ssub.s32 %s40, %s47
      %p433 = scmp.eq.s32.totalorder %s432, 0
      %s435 = sadd.s32 %s434, 1
      %s436 = scalar_select %p433, %s434, %s435
      %p439 = pneg %p433
      %p440 = scmp.eq.s32.totalorder %s32, 3
      %p441 = por %p439, %p440
      %p442 = scmp.ne.s32.totalorder %s434, %s437
      %p443 = scmp.eq.s32.totalorder %s32, 0
      %p444 = por %p442, %p443
      %p445 = scmp.ne.s32.totalorder %s434, %s437
      %p446 = scmp.eq.s32.totalorder %s37, 3
      %p447 = por %p445, %p446
      %p448 = scmp.ne.s32.totalorder %s437, %s438
      %p449 = scmp.eq.s32.totalorder %s37, 0
      %p450 = por %p448, %p449
      %p451 = scmp.ne.s32.totalorder %s437, %s438
      %p452 = scmp.eq.s32.totalorder %s38, 3
      %p453 = por %p451, %p452
      %p455 = scmp.ne.s32.totalorder %s438, %s454
      %p456 = scmp.eq.s32.totalorder %s38, 0
      %p457 = por %p455, %p456
      %s458 = ssub.s32 %s40, %s47
      %p459 = scmp.eq.s32.totalorder %s458, 0
      %s461 = sadd.s32 %s460, 1
      %s462 = scalar_select %p459, %s460, %s461
      %p465 = pneg %p459
      %p466 = scmp.eq.s32.totalorder %s32, 3
      %p467 = por %p465, %p466
      %p468 = scmp.ne.s32.totalorder %s460, %s463
      %p469 = scmp.eq.s32.totalorder %s32, 0
      %p470 = por %p468, %p469
      %p471 = scmp.ne.s32.totalorder %s460, %s463
      %p472 = scmp.eq.s32.totalorder %s37, 3
      %p473 = por %p471, %p472
      %p474 = scmp.ne.s32.totalorder %s463, %s464
      %p475 = scmp.eq.s32.totalorder %s37, 0
      %p476 = por %p474, %p475
      %p477 = scmp.ne.s32.totalorder %s463, %s464
      %p478 = scmp.eq.s32.totalorder %s38, 3
      %p479 = por %p477, %p478
      %p481 = scmp.ne.s32.totalorder %s464, %s480
      %p482 = scmp.eq.s32.totalorder %s38, 0
      %p483 = por %p481, %p482
      %s484 = ssub.s32 %s40, %s47
      %p485 = scmp.eq.s32.totalorder %s484, 0
      %s487 = sadd.s32 %s486, 1
      %s488 = scalar_select %p485, %s486, %s487
      %p491 = pneg %p485
      %p492 = scmp.eq.s32.totalorder %s32, 3
      %p493 = por %p491, %p492
      %p494 = scmp.ne.s32.totalorder %s486, %s489
      %p495 = scmp.eq.s32.totalorder %s32, 0
      %p496 = por %p494, %p495
      %p497 = scmp.ne.s32.totalorder %s486, %s489
      %p498 = scmp.eq.s32.totalorder %s37, 3
      %p499 = por %p497, %p498
      %p500 = scmp.ne.s32.totalorder %s489, %s490
      %p501 = scmp.eq.s32.totalorder %s37, 0
      %p502 = por %p500, %p501
      %p503 = scmp.ne.s32.totalorder %s489, %s490
      %p504 = scmp.eq.s32.totalorder %s38, 3
      %p505 = por %p503, %p504
      %p507 = scmp.ne.s32.totalorder %s490, %s506
      %p508 = scmp.eq.s32.totalorder %s38, 0
      %p509 = por %p507, %p508
      %s510 = ssub.s32 %s40, %s47
      %p511 = scmp.eq.s32.totalorder %s510, 0
      %s513 = sadd.s32 %s512, 1
      %s514 = scalar_select %p511, %s512, %s513
      %p517 = pneg %p511
      %p518 = scmp.eq.s32.totalorder %s32, 3
      %p519 = por %p517, %p518
      %p520 = scmp.ne.s32.totalorder %s512, %s515
      %p521 = scmp.eq.s32.totalorder %s32, 0
      %p522 = por %p520, %p521
      %p523 = scmp.ne.s32.totalorder %s512, %s515
      %p524 = scmp.eq.s32.totalorder %s37, 3
      %p525 = por %p523, %p524
      %p526 = scmp.ne.s32.totalorder %s515, %s516
      %p527 = scmp.eq.s32.totalorder %s37, 0
      %p528 = por %p526, %p527
      %p529 = scmp.ne.s32.totalorder %s515, %s516
      %p530 = scmp.eq.s32.totalorder %s38, 3
      %p531 = por %p529, %p530
      %p533 = scmp.ne.s32.totalorder %s516, %s532
      %p534 = scmp.eq.s32.totalorder %s38, 0
      %p535 = por %p533, %p534
      %s536 = ssub.s32 %s40, %s47
      %p537 = scmp.eq.s32.totalorder %s536, 0
      %s539 = sadd.s32 %s538, 1
      %s540 = scalar_select %p537, %s538, %s539
      %p543 = pneg %p537
      %p544 = scmp.eq.s32.totalorder %s32, 3
      %p545 = por %p543, %p544
      %p546 = scmp.ne.s32.totalorder %s538, %s541
      %p547 = scmp.eq.s32.totalorder %s32, 0
      %p548 = por %p546, %p547
      %p549 = scmp.ne.s32.totalorder %s538, %s541
      %p550 = scmp.eq.s32.totalorder %s37, 3
      %p551 = por %p549, %p550
      %p552 = scmp.ne.s32.totalorder %s541, %s542
      %p553 = scmp.eq.s32.totalorder %s37, 0
      %p554 = por %p552, %p553
      %p555 = scmp.ne.s32.totalorder %s541, %s542
      %p556 = scmp.eq.s32.totalorder %s38, 3
      %p557 = por %p555, %p556
      %p559 = scmp.ne.s32.totalorder %s542, %s558
      %p560 = scmp.eq.s32.totalorder %s38, 0
      %p561 = por %p559, %p560
      %s562 = ssub.s32 %s40, %s47
      %p563 = scmp.eq.s32.totalorder %s562, 0
      %s565 = sadd.s32 %s564, 1
      %s566 = scalar_select %p563, %s564, %s565
      %p569 = pneg %p563
      %p570 = scmp.eq.s32.totalorder %s32, 3
      %p571 = por %p569, %p570
      %p572 = scmp.ne.s32.totalorder %s564, %s567
      %p573 = scmp.eq.s32.totalorder %s32, 0
      %p574 = por %p572, %p573
      %p575 = scmp.ne.s32.totalorder %s564, %s567
      %p576 = scmp.eq.s32.totalorder %s37, 3
      %p577 = por %p575, %p576
      %p578 = scmp.ne.s32.totalorder %s567, %s568
      %p579 = scmp.eq.s32.totalorder %s37, 0
      %p580 = por %p578, %p579
      %p581 = scmp.ne.s32.totalorder %s567, %s568
      %p582 = scmp.eq.s32.totalorder %s38, 3
      %p583 = por %p581, %p582
      %p585 = scmp.ne.s32.totalorder %s568, %s584
      %p586 = scmp.eq.s32.totalorder %s38, 0
      %p587 = por %p585, %p586
      %s589 = sadd.s32 %s588, 1
      %p592 = scmp.eq.s32.totalorder %s32, 3
      %p593 = scmp.ne.s32.totalorder %s588, %s590
      %p594 = scmp.eq.s32.totalorder %s32, 0
      %p595 = por %p593, %p594
      %p596 = scmp.ne.s32.totalorder %s588, %s590
      %p597 = scmp.eq.s32.totalorder %s37, 3
      %p598 = por %p596, %p597
      %p599 = scmp.ne.s32.totalorder %s590, %s591
      %p600 = scmp.eq.s32.totalorder %s37, 0
      %p601 = por %p599, %p600
      %p602 = scmp.ne.s32.totalorder %s590, %s591
      %p603 = scmp.eq.s32.totalorder %s38, 3
      %p604 = por %p602, %p603
      %p606 = scmp.ne.s32.totalorder %s591, %s605
      %p607 = scmp.eq.s32.totalorder %s38, 0
      %p608 = por %p606, %p607
      %s610 = sadd.s32 %s609, 1
      %p613 = scmp.eq.s32.totalorder %s32, 3
      %p614 = scmp.ne.s32.totalorder %s609, %s611
      %p615 = scmp.eq.s32.totalorder %s32, 0
      %p616 = por %p614, %p615
      %p617 = scmp.ne.s32.totalorder %s609, %s611
      %p618 = scmp.eq.s32.totalorder %s37, 3
      %p619 = por %p617, %p618
      %p620 = scmp.ne.s32.totalorder %s611, %s612
      %p621 = scmp.eq.s32.totalorder %s37, 0
      %p622 = por %p620, %p621
      %p623 = scmp.ne.s32.totalorder %s611, %s612
      %p624 = scmp.eq.s32.totalorder %s38, 3
      %p625 = por %p623, %p624
      %p627 = scmp.ne.s32.totalorder %s612, %s626
      %p628 = scmp.eq.s32.totalorder %s38, 0
      %p629 = por %p627, %p628
      %s630 = ssub.s32 %s39, %s51
      %p631 = scmp.eq.s32.totalorder %s630, 0
      %s633 = sadd.s32 %s632, 1
      %s634 = scalar_select %p631, %s632, %s633
      %p637 = pneg %p631
      %p638 = scmp.eq.s32.totalorder %s32, 3
      %p639 = por %p637, %p638
      %p640 = scmp.ne.s32.totalorder %s632, %s635
      %p641 = scmp.eq.s32.totalorder %s32, 0
      %p642 = por %p640, %p641
      %p643 = scmp.ne.s32.totalorder %s632, %s635
      %p644 = scmp.eq.s32.totalorder %s37, 3
      %p645 = por %p643, %p644
      %p646 = scmp.ne.s32.totalorder %s635, %s636
      %p647 = scmp.eq.s32.totalorder %s37, 0
      %p648 = por %p646, %p647
      %p649 = scmp.ne.s32.totalorder %s635, %s636
      %p650 = scmp.eq.s32.totalorder %s38, 3
      %p651 = por %p649, %p650
      %p653 = scmp.ne.s32.totalorder %s636, %s652
      %p654 = scmp.eq.s32.totalorder %s38, 0
      %p655 = por %p653, %p654
      %p656 = scmp.le.s32.totalorder 1, %s32
      %p657 = scmp.lt.s32.totalorder %s32, 5
      %p658 = pnand %p656, %p657
      %p659 = pneg %p658
      // Predicated region
      $region9: #{trans_decoder.1} parent=5 // pred_check
        _
      $region10: #{trans_decoder.1} parent=5 // pred_check_branch
        %661 = sbr.rel (%p658) target = $region12
      $region11: #{trans_decoder.1} parent=5 // pred_region
        %s662 = ssub.s32 %s32, 1
        // Predicated region
        $region13: #{trans_decoder.1} parent=11 // pred_check
          %p663 = pneg %p117
        $region14: #{trans_decoder.1} parent=11 // pred_check_branch
          %665 = sbr.rel (%p663) target = $region16
        $region15: #{trans_decoder.1} parent=11 // pred_region
          _
        $region16: #{trans_decoder.1} parent=11 // pred_fallthru
          _
        // Predicated region
        $region17: #{trans_decoder.1} parent=11 // pred_check
          %p666 = pneg %p138
        $region18: #{trans_decoder.1} parent=11 // pred_check_branch
          %668 = sbr.rel (%p666) target = $region20
        $region19: #{trans_decoder.1} parent=11 // pred_region
          _
        $region20: #{trans_decoder.1} parent=11 // pred_fallthru
          _
        // Predicated region
        $region21: #{trans_decoder.1} parent=11 // pred_check
          %p669 = pneg %p601
        $region22: #{trans_decoder.1} parent=11 // pred_check_branch
          %671 = sbr.rel (%p669) target = $region24
        $region23: #{trans_decoder.1} parent=11 // pred_region
          _
        $region24: #{trans_decoder.1} parent=11 // pred_fallthru
          _
        // Predicated region
        $region25: #{trans_decoder.1} parent=11 // pred_check
          %p672 = pneg %p622
        $region26: #{trans_decoder.1} parent=11 // pred_check_branch
          %674 = sbr.rel (%p672) target = $region28
        $region27: #{trans_decoder.1} parent=11 // pred_region
          _
        $region28: #{trans_decoder.1} parent=11 // pred_fallthru
          _
      $region12: #{trans_decoder.1} parent=5 // pred_fallthru
        _
      %p675 = scmp.lt.s32.totalorder %s32, 4
      // Predicated region
      $region29: #{trans_decoder.1} parent=5 // pred_check
        %p676 = pneg %p675
      $region30: #{trans_decoder.1} parent=5 // pred_check_branch
        %678 = sbr.rel (%p676) target = $region32
      $region31: #{trans_decoder.1} parent=5 // pred_region
        // Predicated region
        $region33: #{trans_decoder.1} parent=31 // pred_check
          %p679 = pneg %p64
        $region34: #{trans_decoder.1} parent=31 // pred_check_branch
          %681 = sbr.rel (%p679) target = $region36
        $region35: #{trans_decoder.1} parent=31 // pred_region
          %p682 = scmp.lt.s32.totalorder %s39, 1
          %s683 = scalar_select %p682, %s39, 1
          %s684 = smul.addr %s683, 8
          %s685 = scalar_lea.vmem %s0, %s684
        $region36: #{trans_decoder.1} parent=31 // pred_fallthru
          _
        // Predicated region
        $region37: #{trans_decoder.1} parent=31 // pred_check
          %p686 = pneg %p90
        $region38: #{trans_decoder.1} parent=31 // pred_check_branch
          %688 = sbr.rel (%p686) target = $region40
        $region39: #{trans_decoder.1} parent=31 // pred_region
          %p689 = scmp.lt.s32.totalorder %s39, 1
          %s690 = scalar_select %p689, %s39, 1
          %s691 = smul.addr %s690, 2
          %s692 = smul.addr %s691, 8
          %s693 = scalar_lea.vmem %s1, %s692
        $region40: #{trans_decoder.1} parent=31 // pred_fallthru
          _
        // Predicated region
        $region41: #{trans_decoder.1} parent=31 // pred_check
          %p694 = pneg %p158
        $region42: #{trans_decoder.1} parent=31 // pred_check_branch
          %696 = sbr.rel (%p694) target = $region44
        $region43: #{trans_decoder.1} parent=31 // pred_region
          %p697 = scmp.lt.s32.totalorder %s40, 1
          %s698 = scalar_select %p697, %s40, 1
          %s699 = scalar_lea.vmem %s4, %s698
        $region44: #{trans_decoder.1} parent=31 // pred_fallthru
          _
        // Predicated region
        $region45: #{trans_decoder.1} parent=31 // pred_check
          %p700 = pneg %p184
        $region46: #{trans_decoder.1} parent=31 // pred_check_branch
          %702 = sbr.rel (%p700) target = $region48
        $region47: #{trans_decoder.1} parent=31 // pred_region
          %p703 = scmp.lt.s32.totalorder %s40, 1
          %s704 = scalar_select %p703, %s40, 1
          %s705 = scalar_lea.vmem %s5, %s704
        $region48: #{trans_decoder.1} parent=31 // pred_fallthru
          _
        // Predicated region
        $region49: #{trans_decoder.1} parent=31 // pred_check
          %p706 = pneg %p210
        $region50: #{trans_decoder.1} parent=31 // pred_check_branch
          %708 = sbr.rel (%p706) target = $region52
        $region51: #{trans_decoder.1} parent=31 // pred_region
          %p709 = scmp.lt.s32.totalorder %s40, 1
          %s710 = scalar_select %p709, %s40, 1
          %s711 = scalar_lea.vmem %s6, %s710
        $region52: #{trans_decoder.1} parent=31 // pred_fallthru
          _
        // Predicated region
        $region53: #{trans_decoder.1} parent=31 // pred_check
          %p712 = pneg %p236
        $region54: #{trans_decoder.1} parent=31 // pred_check_branch
          %714 = sbr.rel (%p712) target = $region56
        $region55: #{trans_decoder.1} parent=31 // pred_region
          %p715 = scmp.lt.s32.totalorder %s40, 1
          %s716 = scalar_select %p715, %s40, 1
          %s717 = scalar_lea.vmem %s7, %s716
        $region56: #{trans_decoder.1} parent=31 // pred_fallthru
          _
        // Predicated region
        $region57: #{trans_decoder.1} parent=31 // pred_check
          %p718 = pneg %p262
        $region58: #{trans_decoder.1} parent=31 // pred_check_branch
          %720 = sbr.rel (%p718) target = $region60
        $region59: #{trans_decoder.1} parent=31 // pred_region
          %p721 = scmp.lt.s32.totalorder %s40, 1
          %s722 = scalar_select %p721, %s40, 1
          %s723 = scalar_lea.vmem %s8, %s722
        $region60: #{trans_decoder.1} parent=31 // pred_fallthru
          _
        // Predicated region
        $region61: #{trans_decoder.1} parent=31 // pred_check
          %p724 = pneg %p288
        $region62: #{trans_decoder.1} parent=31 // pred_check_branch
          %726 = sbr.rel (%p724) target = $region64
        $region63: #{trans_decoder.1} parent=31 // pred_region
          %p727 = scmp.lt.s32.totalorder %s40, 1
          %s728 = scalar_select %p727, %s40, 1
          %s729 = smul.addr %s728, 4
          %s730 = smul.addr %s729, 4
          %s731 = scalar_lea.vmem %s9, %s730
        $region64: #{trans_decoder.1} parent=31 // pred_fallthru
          _
        // Predicated region
        $region65: #{trans_decoder.1} parent=31 // pred_check
          %p732 = pneg %p314
        $region66: #{trans_decoder.1} parent=31 // pred_check_branch
          %734 = sbr.rel (%p732) target = $region68
        $region67: #{trans_decoder.1} parent=31 // pred_region
          %p735 = scmp.lt.s32.totalorder %s40, 1
          %s736 = scalar_select %p735, %s40, 1
          %s737 = scalar_lea.vmem %s10, %s736
        $region68: #{trans_decoder.1} parent=31 // pred_fallthru
          _
        // Predicated region
        $region69: #{trans_decoder.1} parent=31 // pred_check
          %p738 = pneg %p340
        $region70: #{trans_decoder.1} parent=31 // pred_check_branch
          %740 = sbr.rel (%p738) target = $region72
        $region71: #{trans_decoder.1} parent=31 // pred_region
          %p741 = scmp.lt.s32.totalorder %s40, 1
          %s742 = scalar_select %p741, %s40, 1
          %s743 = smul.addr %s742, 4
          %s744 = smul.addr %s743, 4
          %s745 = scalar_lea.vmem %s11, %s744
        $region72: #{trans_decoder.1} parent=31 // pred_fallthru
          _
        // Predicated region
        $region73: #{trans_decoder.1} parent=31 // pred_check
          %p746 = pneg %p366
        $region74: #{trans_decoder.1} parent=31 // pred_check_branch
          %748 = sbr.rel (%p746) target = $region76
        $region75: #{trans_decoder.1} parent=31 // pred_region
          %p749 = scmp.lt.s32.totalorder %s40, 1
          %s750 = scalar_select %p749, %s40, 1
          %s751 = scalar_lea.vmem %s12, %s750
        $region76: #{trans_decoder.1} parent=31 // pred_fallthru
          _
        // Predicated region
        $region77: #{trans_decoder.1} parent=31 // pred_check
          %p752 = pneg %p392
        $region78: #{trans_decoder.1} parent=31 // pred_check_branch
          %754 = sbr.rel (%p752) target = $region80
        $region79: #{trans_decoder.1} parent=31 // pred_region
          %p755 = scmp.lt.s32.totalorder %s40, 1
          %s756 = scalar_select %p755, %s40, 1
          %s757 = smul.addr %s756, 4
          %s758 = smul.addr %s757, 4
          %s759 = scalar_lea.vmem %s13, %s758
        $region80: #{trans_decoder.1} parent=31 // pred_fallthru
          _
        // Predicated region
        $region81: #{trans_decoder.1} parent=31 // pred_check
          %p760 = pneg %p418
        $region82: #{trans_decoder.1} parent=31 // pred_check_branch
          %762 = sbr.rel (%p760) target = $region84
        $region83: #{trans_decoder.1} parent=31 // pred_region
          %p763 = scmp.lt.s32.totalorder %s40, 1
          %s764 = scalar_select %p763, %s40, 1
          %s765 = scalar_lea.vmem %s14, %s764
        $region84: #{trans_decoder.1} parent=31 // pred_fallthru
          _
        // Predicated region
        $region85: #{trans_decoder.1} parent=31 // pred_check
          %p766 = pneg %p444
        $region86: #{trans_decoder.1} parent=31 // pred_check_branch
          %768 = sbr.rel (%p766) target = $region88
        $region87: #{trans_decoder.1} parent=31 // pred_region
          %p769 = scmp.lt.s32.totalorder %s40, 1
          %s770 = scalar_select %p769, %s40, 1
          %s771 = smul.addr %s770, 4
          %s772 = smul.addr %s771, 4
          %s773 = scalar_lea.vmem %s15, %s772
        $region88: #{trans_decoder.1} parent=31 // pred_fallthru
          _
        // Predicated region
        $region89: #{trans_decoder.1} parent=31 // pred_check
          %p774 = pneg %p470
        $region90: #{trans_decoder.1} parent=31 // pred_check_branch
          %776 = sbr.rel (%p774) target = $region92
        $region91: #{trans_decoder.1} parent=31 // pred_region
          %p777 = scmp.lt.s32.totalorder %s40, 1
          %s778 = scalar_select %p777, %s40, 1
          %s779 = scalar_lea.vmem %s16, %s778
        $region92: #{trans_decoder.1} parent=31 // pred_fallthru
          _
        // Predicated region
        $region93: #{trans_decoder.1} parent=31 // pred_check
          %p780 = pneg %p496
        $region94: #{trans_decoder.1} parent=31 // pred_check_branch
          %782 = sbr.rel (%p780) target = $region96
        $region95: #{trans_decoder.1} parent=31 // pred_region
          %p783 = scmp.lt.s32.totalorder %s40, 1
          %s784 = scalar_select %p783, %s40, 1
          %s785 = smul.addr %s784, 4
          %s786 = smul.addr %s785, 4
          %s787 = scalar_lea.vmem %s17, %s786
        $region96: #{trans_decoder.1} parent=31 // pred_fallthru
          _
        // Predicated region
        $region97: #{trans_decoder.1} parent=31 // pred_check
          %p788 = pneg %p522
        $region98: #{trans_decoder.1} parent=31 // pred_check_branch
          %790 = sbr.rel (%p788) target = $region100
        $region99: #{trans_decoder.1} parent=31 // pred_region
          %p791 = scmp.lt.s32.totalorder %s40, 1
          %s792 = scalar_select %p791, %s40, 1
          %s793 = scalar_lea.vmem %s18, %s792
        $region100: #{trans_decoder.1} parent=31 // pred_fallthru
          _
        // Predicated region
        $region101: #{trans_decoder.1} parent=31 // pred_check
          %p794 = pneg %p548
        $region102: #{trans_decoder.1} parent=31 // pred_check_branch
          %796 = sbr.rel (%p794) target = $region104
        $region103: #{trans_decoder.1} parent=31 // pred_region
          %p797 = scmp.lt.s32.totalorder %s40, 1
          %s798 = scalar_select %p797, %s40, 1
          %s799 = smul.addr %s798, 8
          %s800 = smul.addr %s799, 4
          %s801 = scalar_lea.vmem %s19, %s800
        $region104: #{trans_decoder.1} parent=31 // pred_fallthru
          _
        // Predicated region
        $region105: #{trans_decoder.1} parent=31 // pred_check
          %p802 = pneg %p574
        $region106: #{trans_decoder.1} parent=31 // pred_check_branch
          %804 = sbr.rel (%p802) target = $region108
        $region107: #{trans_decoder.1} parent=31 // pred_region
          %p805 = scmp.lt.s32.totalorder %s40, 1
          %s806 = scalar_select %p805, %s40, 1
          %s807 = scalar_lea.vmem %s20, %s806
        $region108: #{trans_decoder.1} parent=31 // pred_fallthru
          _
      $region32: #{trans_decoder.1} parent=5 // pred_fallthru
        _
      %p808 = scmp.le.s32.totalorder 1, %s32
      %p809 = scmp.lt.s32.totalorder %s32, 5
      %p810 = pnand %p808, %p809
      %p811 = pneg %p810
      // Predicated region
      $region109: #{trans_decoder.1} parent=5 // pred_check
        _
      $region110: #{trans_decoder.1} parent=5 // pred_check_branch
        %813 = sbr.rel (%p810) target = $region112
      $region111: #{trans_decoder.1} parent=5 // pred_region
        %s814 = ssub.s32 %s32, 1
        %p815 = scmp.lt.s32.totalorder %s41, 1
        %s816 = scalar_select %p815, %s41, 1
        %s817 = smul.addr %s816, 8
        %s818 = scalar_lea.vmem %s0, %s817
        %p819 = pneg %p70
        %p820 = pneg %p67
        %p821 = scmp.lt.s32.totalorder %s41, 1
        %s822 = scalar_select %p821, %s41, 1
        %s823 = smul.addr %s822, 2
        %s824 = smul.addr %s823, 8
        %s825 = scalar_lea.vmem %s1, %s824
        %p826 = pneg %p96
        %p827 = pneg %p93
        %p828 = pneg %p117
        %p829 = pneg %p114
        %p830 = pneg %p138
        %p831 = pneg %p135
        %p832 = scmp.lt.s32.totalorder %s42, 1
        %s833 = scalar_select %p832, %s42, 1
        %s834 = scalar_lea.vmem %s4, %s833
        %p835 = pneg %p164
        %p836 = pneg %p161
        %p837 = scmp.lt.s32.totalorder %s42, 1
        %s838 = scalar_select %p837, %s42, 1
        %s839 = scalar_lea.vmem %s5, %s838
        %p840 = pneg %p190
        %p841 = pneg %p187
        %p842 = scmp.lt.s32.totalorder %s42, 1
        %s843 = scalar_select %p842, %s42, 1
        %s844 = scalar_lea.vmem %s6, %s843
        %p845 = pneg %p216
        %p846 = pneg %p213
        %p847 = scmp.lt.s32.totalorder %s42, 1
        %s848 = scalar_select %p847, %s42, 1
        %s849 = scalar_lea.vmem %s7, %s848
        %p850 = pneg %p242
        %p851 = pneg %p239
        %p852 = scmp.lt.s32.totalorder %s42, 1
        %s853 = scalar_select %p852, %s42, 1
        %s854 = scalar_lea.vmem %s8, %s853
        %p855 = pneg %p268
        %p856 = pneg %p265
        %p857 = scmp.lt.s32.totalorder %s42, 1
        %s858 = scalar_select %p857, %s42, 1
        %s859 = smul.addr %s858, 4
        %s860 = smul.addr %s859, 4
        %s861 = scalar_lea.vmem %s9, %s860
        %p862 = pneg %p294
        %p863 = pneg %p291
        %p864 = scmp.lt.s32.totalorder %s42, 1
        %s865 = scalar_select %p864, %s42, 1
        %s866 = scalar_lea.vmem %s10, %s865
        %p867 = pneg %p320
        %p868 = pneg %p317
        %p869 = scmp.lt.s32.totalorder %s42, 1
        %s870 = scalar_select %p869, %s42, 1
        %s871 = smul.addr %s870, 4
        %s872 = smul.addr %s871, 4
        %s873 = scalar_lea.vmem %s11, %s872
        %p874 = pneg %p346
        %p875 = pneg %p343
        %p876 = scmp.lt.s32.totalorder %s42, 1
        %s877 = scalar_select %p876, %s42, 1
        %s878 = scalar_lea.vmem %s12, %s877
        %p879 = pneg %p372
        %p880 = pneg %p369
        %p881 = scmp.lt.s32.totalorder %s42, 1
        %s882 = scalar_select %p881, %s42, 1
        %s883 = smul.addr %s882, 4
        %s884 = smul.addr %s883, 4
        %s885 = scalar_lea.vmem %s13, %s884
        %p886 = pneg %p398
        %p887 = pneg %p395
        %p888 = scmp.lt.s32.totalorder %s42, 1
        %s889 = scalar_select %p888, %s42, 1
        %s890 = scalar_lea.vmem %s14, %s889
        %p891 = pneg %p424
        %p892 = pneg %p421
        %p893 = scmp.lt.s32.totalorder %s42, 1
        %s894 = scalar_select %p893, %s42, 1
        %s895 = smul.addr %s894, 4
        %s896 = smul.addr %s895, 4
        %s897 = scalar_lea.vmem %s15, %s896
        %p898 = pneg %p450
        %p899 = pneg %p447
        %p900 = scmp.lt.s32.totalorder %s42, 1
        %s901 = scalar_select %p900, %s42, 1
        %s902 = scalar_lea.vmem %s16, %s901
        %p903 = pneg %p476
        %p904 = pneg %p473
        %p905 = scmp.lt.s32.totalorder %s42, 1
        %s906 = scalar_select %p905, %s42, 1
        %s907 = smul.addr %s906, 4
        %s908 = smul.addr %s907, 4
        %s909 = scalar_lea.vmem %s17, %s908
        %p910 = pneg %p502
        %p911 = pneg %p499
        %p912 = scmp.lt.s32.totalorder %s42, 1
        %s913 = scalar_select %p912, %s42, 1
        %s914 = scalar_lea.vmem %s18, %s913
        %p915 = pneg %p528
        %p916 = pneg %p525
        %p917 = scmp.lt.s32.totalorder %s42, 1
        %s918 = scalar_select %p917, %s42, 1
        %s919 = smul.addr %s918, 8
        %s920 = smul.addr %s919, 4
        %s921 = scalar_lea.vmem %s19, %s920
        %p922 = pneg %p554
        %p923 = pneg %p551
        %p924 = scmp.lt.s32.totalorder %s42, 1
        %s925 = scalar_select %p924, %s42, 1
        %s926 = scalar_lea.vmem %s20, %s925
        %p927 = pneg %p580
        %p928 = pneg %p577
        %p929 = pneg %p601
        %p930 = pneg %p598
        %p931 = pneg %p622
        %p932 = pneg %p619
        %p933 = pneg %p648
        %p934 = pneg %p645
        %s935 = sand.u32 %s635, 1
        %s936 = scalar_lea.sflag [#allocation4], %s935
        %s937 = sand.u32 %s635, 1
        %s938 = smul.addr %s937, 8
        %s939 = scalar_lea.vmem [#allocation3], %s938
        %p940 = scmp.lt.s32.totalorder %s41, 1
        %s941 = scalar_select %p940, %s41, 1
        %s942 = smul.addr %s941, 8
        %s943 = scalar_lea.vmem %s0, %s942
        %p944 = scmp.lt.s32.totalorder %s41, 1
        %s945 = scalar_select %p944, %s41, 1
        %s946 = smul.addr %s945, 2
        %s947 = smul.addr %s946, 8
        %s948 = scalar_lea.vmem %s1, %s947
        %p949 = scmp.lt.s32.totalorder %s42, 1
        %s950 = scalar_select %p949, %s42, 1
        %s951 = scalar_lea.vmem %s4, %s950
        %p952 = scmp.lt.s32.totalorder %s42, 1
        %s953 = scalar_select %p952, %s42, 1
        %s954 = scalar_lea.vmem %s5, %s953
        %p955 = scmp.lt.s32.totalorder %s42, 1
        %s956 = scalar_select %p955, %s42, 1
        %s957 = scalar_lea.vmem %s6, %s956
        %p958 = scmp.lt.s32.totalorder %s42, 1
        %s959 = scalar_select %p958, %s42, 1
        %s960 = scalar_lea.vmem %s7, %s959
        %p961 = scmp.lt.s32.totalorder %s42, 1
        %s962 = scalar_select %p961, %s42, 1
        %s963 = scalar_lea.vmem %s8, %s962
        %p964 = scmp.lt.s32.totalorder %s42, 1
        %s965 = scalar_select %p964, %s42, 1
        %s966 = smul.addr %s965, 4
        %s967 = smul.addr %s966, 4
        %s968 = scalar_lea.vmem %s9, %s967
        %p969 = scmp.lt.s32.totalorder %s42, 1
        %s970 = scalar_select %p969, %s42, 1
        %s971 = scalar_lea.vmem %s10, %s970
        %p972 = scmp.lt.s32.totalorder %s42, 1
        %s973 = scalar_select %p972, %s42, 1
        %s974 = smul.addr %s973, 4
        %s975 = smul.addr %s974, 4
        %s976 = scalar_lea.vmem %s11, %s975
        %p977 = scmp.lt.s32.totalorder %s42, 1
        %s978 = scalar_select %p977, %s42, 1
        %s979 = scalar_lea.vmem %s12, %s978
        %p980 = scmp.lt.s32.totalorder %s42, 1
        %s981 = scalar_select %p980, %s42, 1
        %s982 = smul.addr %s981, 4
        %s983 = smul.addr %s982, 4
        %s984 = scalar_lea.vmem %s13, %s983
        %p985 = scmp.lt.s32.totalorder %s42, 1
        %s986 = scalar_select %p985, %s42, 1
        %s987 = scalar_lea.vmem %s14, %s986
        %p988 = scmp.lt.s32.totalorder %s42, 1
        %s989 = scalar_select %p988, %s42, 1
        %s990 = smul.addr %s989, 4
        %s991 = smul.addr %s990, 4
        %s992 = scalar_lea.vmem %s15, %s991
        %p993 = scmp.lt.s32.totalorder %s42, 1
        %s994 = scalar_select %p993, %s42, 1
        %s995 = scalar_lea.vmem %s16, %s994
        %p996 = scmp.lt.s32.totalorder %s42, 1
        %s997 = scalar_select %p996, %s42, 1
        %s998 = smul.addr %s997, 4
        %s999 = smul.addr %s998, 4
        %s1000 = scalar_lea.vmem %s17, %s999
        %p1001 = scmp.lt.s32.totalorder %s42, 1
        %s1002 = scalar_select %p1001, %s42, 1
        %s1003 = scalar_lea.vmem %s18, %s1002
        %p1004 = scmp.lt.s32.totalorder %s42, 1
        %s1005 = scalar_select %p1004, %s42, 1
        %s1006 = smul.addr %s1005, 8
        %s1007 = smul.addr %s1006, 4
        %s1008 = scalar_lea.vmem %s19, %s1007
        %p1009 = scmp.lt.s32.totalorder %s42, 1
        %s1010 = scalar_select %p1009, %s42, 1
        %s1011 = scalar_lea.vmem %s20, %s1010
        %p1013 = scmp.eq.s32.totalorder %s42, 0
        // Predicated region
        $region113: #{trans_decoder.1} parent=111 // pred_check
          %p1014 = pneg %p1013
        $region114: #{trans_decoder.1} parent=111 // pred_check_branch
          %1016 = sbr.rel (%p1014) target = $region116
        $region115: #{trans_decoder.1} parent=111 // pred_region
          %v1017 = vld [vmem:[%s943] sm:$0xff]
          %vm1018 = vcmask 261120
          %1019 = vst.msk [vmem:[#allocation2] sm:$0xff] %vm1018, %v1017
        $region116: #{trans_decoder.1} parent=111 // pred_fallthru
          _
        %v1020 = vld [vmem:[%s948] sm:$0xff]
        %v1021 = vld [vmem:[%s948 + $0x8] sm:$0xff]
        %v1022 = vld [vmem:[%s2] sm:$0xff]
        %v1023 = vld [vmem:[%s3] sm:$0xff]
        %v1024 = vld [vmem:[%s3 + $0x8] sm:$0xff]
        %v1025 = vadd.f32 %v1020, %v1023
        %v1026 = vadd.f32 %v1021, %v1024
        %v1027 = vld [vmem:[%s951] sm:$0x1]
        %v1028 = vld [vmem:[%s954] sm:$0x1]
        %v1029 = vld [vmem:[%s957] sm:$0x1]
        %v1030 = vld [vmem:[%s960] sm:$0x1]
        %v1031 = vld [vmem:[%s963] sm:$0x1]
        %v1032 = vld [vmem:[#allocation2] sm:$0xff]
        %vm1033 = vcmask 261120
        %v1034 = vsel %vm1033, %v1032, 0.0
        %1035 = vadd.xlane.f32.xlu0 %v1034
        %v1036 = vpop.xlane.xlu0 %1035
        %v1037 = vrcp.pop 32.0
        %v1038 = vmul.f32 %v1036, %v1037
        %v1039 = vsub.f32 %v1032, %v1038
        %v1040 = vmul.f32 %v1039, %v1039
        %v1041 = vsel %vm1033, %v1040, 0.0
        %1042 = vadd.xlane.f32.xlu0 %v1041
        %v1043 = vpop.xlane.xlu0 %1042
        %v1044 = vmul.f32 %v1043, %v1037
        %v1045 = vadd.f32 %v1044, 1e-05
        %v1046 = vrsqrt.pop %v1045
        %v1047 = vmul.f32 %v1039, %v1046
        %v1049 = vlaneseq
        %v1050 = vshrl.u32 %v1049, 7
        %v1051 = vsub.s32 0, %v1050
        %v1052 = vrot.slane %v1027, %v1051
        %v1054 = vmul.f32 %v1047, %v1052
        %v1056 = vlaneseq
        %v1057 = vshrl.u32 %v1056, 7
        %v1058 = vsub.s32 0, %v1057
        %v1059 = vrot.slane %v1028, %v1058
        %v1061 = vadd.f32 %v1054, %v1059
        %v1062 = vadd.f32 %v1061, %v1022
        %v1063 = vld [vmem:[%s968] sm:$0xf]
        %v1064 = vld [vmem:[%s968 + $0x4] sm:$0xf]
        %v1065 = vld [vmem:[%s968 + $0x8] sm:$0xf]
        %v1066 = vld [vmem:[%s968 + $0xc] sm:$0xf]
        %v1067 = vld [vmem:[%s971] sm:$0x1]
        %v1068 = vld [vmem:[%s976] sm:$0xf]
        %v1069 = vld [vmem:[%s976 + $0x4] sm:$0xf]
        %v1070 = vld [vmem:[%s976 + $0x8] sm:$0xf]
        %v1071 = vld [vmem:[%s976 + $0xc] sm:$0xf]
        %v1072 = vld [vmem:[%s979] sm:$0x1]
        %v1073 = vpack.c.bf16 %v1062, %v1062
        %v1075 = vlaneseq
        %v1076 = vshrl.u32 %v1075, 7
        %v1077 = vsub.s32 0, %v1076
        %v1078 = vrot.slane %v1067, %v1077
        %v1084 = vunpack.c.l.b16 %v1063
        %v1085 = vunpack.c.l.b16 %v1064
        %v1086 = vunpack.c.l.b16 %v1065
        %v1087 = vunpack.c.l.b16 %v1066
        %v1088 = vpack.c.b16 %v1085, %v1084
        %v1089 = vpack.c.b16 %v1087, %v1086
        %v1093 = vsel %vm1033, %v1073, 0
        %1095 = vmatprep.subr.bf16.mxu0 0
        %1096 = vmatpush1.bf16.msra.mxu0 0
        %1097 = vmatprep.subr.bf16.mxu0 0
        %1098 = vmatpush1.bf16.msra.mxu0 0
        %1099 = vmatprep.subr.bf16.mxu0 0
        %1100 = vmatpush1.bf16.msra.mxu0 0
        %1101 = vmatprep.subr.bf16.mxu0 0
        %1102 = vmatpush1.bf16.msra.mxu0 0
        %1103 = vmatprep.subr.bf16.mxu0 0
        %1104 = vmatpush1.bf16.msra.mxu0 0
        %1105 = vmatprep.subr.bf16.mxu0 0
        %1106 = vmatpush1.bf16.msra.mxu0 0
        %1107 = vmatprep.subr.bf16.mxu0 0
        %1108 = vmatpush1.bf16.msra.mxu0 %v1089
        %1109 = vmatprep.subr.bf16.mxu0 0
        %1110 = vmatpush1.bf16.msra.mxu0 %v1088
        %1111 = vmatprep.subr.bf16.mxu0 0
        %1112 = vmatpush2.bf16.msra.mxu0 0
        %1113 = vmatprep.subr.bf16.mxu0 0
        %1114 = vmatpush2.bf16.msra.mxu0 0
        %1115 = vmatprep.subr.bf16.mxu0 0
        %1116 = vmatpush2.bf16.msra.mxu0 0
        %1117 = vmatprep.subr.bf16.mxu0 0
        %1118 = vmatpush2.bf16.msra.mxu0 0
        %1119 = vmatprep.subr.bf16.mxu0 0
        %1120 = vmatpush2.bf16.msra.mxu0 0
        %1121 = vmatprep.subr.bf16.mxu0 0
        %1122 = vmatpush2.bf16.msra.mxu0 0
        %1123 = vmatprep.subr.bf16.mxu0 0
        %1124 = vmatpush2.bf16.msra.mxu0 0
        %1125 = vmatprep.subr.bf16.mxu0 0
        %1126 = vmatpush2.bf16.msra.mxu0 0
        %1127 = vmatprep.mubr.bf16.mxu0 0
        %1128 = vmatmul.mubr.bf16.gmra.mxu0 %v1093
        %v1129 = vpop.f32.mrf.mxu0
        %v1130 = vadd.f32 %v1078, %v1129
        %v1131 = vpop.f32.mrf.mxu0
        %v1132 = vpop.f32.mrf.mxu0
        %v1133 = vpop.f32.mrf.mxu0
        %1134 = vdwg.mxu0
        %1135 = vrot.lane.b32.xlu0 %v1088, 96
        %v1136 = vpop.permute.xlu0 %1135
        %1137 = vrot.lane.b32.xlu0 %v1089, 96
        %v1138 = vpop.permute.xlu0 %1137
        %1141 = vrot.lane.b32.xlu0 %v1078, 96
        %v1142 = vpop.permute.xlu0 %1141
        %1144 = vmatprep.subr.bf16.mxu0 0
        %1145 = vmatpush1.bf16.msra.mxu0 0
        %1146 = vmatprep.subr.bf16.mxu0 0
        %1147 = vmatpush1.bf16.msra.mxu0 0
        %1148 = vmatprep.subr.bf16.mxu0 0
        %1149 = vmatpush1.bf16.msra.mxu0 0
        %1150 = vmatprep.subr.bf16.mxu0 0
        %1151 = vmatpush1.bf16.msra.mxu0 0
        %1152 = vmatprep.subr.bf16.mxu0 0
        %1153 = vmatpush1.bf16.msra.mxu0 0
        %1154 = vmatprep.subr.bf16.mxu0 0
        %1155 = vmatpush1.bf16.msra.mxu0 0
        %1156 = vmatprep.subr.bf16.mxu0 0
        %1157 = vmatpush1.bf16.msra.mxu0 %v1138
        %1158 = vmatprep.subr.bf16.mxu0 0
        %1159 = vmatpush1.bf16.msra.mxu0 %v1136
        %1160 = vmatprep.subr.bf16.mxu0 0
        %1161 = vmatpush2.bf16.msra.mxu0 0
        %1162 = vmatprep.subr.bf16.mxu0 0
        %1163 = vmatpush2.bf16.msra.mxu0 0
        %1164 = vmatprep.subr.bf16.mxu0 0
        %1165 = vmatpush2.bf16.msra.mxu0 0
        %1166 = vmatprep.subr.bf16.mxu0 0
        %1167 = vmatpush2.bf16.msra.mxu0 0
        %1168 = vmatprep.subr.bf16.mxu0 0
        %1169 = vmatpush2.bf16.msra.mxu0 0
        %1170 = vmatprep.subr.bf16.mxu0 0
        %1171 = vmatpush2.bf16.msra.mxu0 0
        %1172 = vmatprep.subr.bf16.mxu0 0
        %1173 = vmatpush2.bf16.msra.mxu0 0
        %1174 = vmatprep.subr.bf16.mxu0 0
        %1175 = vmatpush2.bf16.msra.mxu0 0
        %1176 = vmatprep.mubr.bf16.mxu0 0
        %1177 = vmatmul.mubr.bf16.gmra.mxu0 %v1093
        %v1178 = vpop.f32.mrf.mxu0
        %v1179 = vadd.f32 %v1142, %v1178
        %v1180 = vpop.f32.mrf.mxu0
        %v1181 = vpop.f32.mrf.mxu0
        %v1182 = vpop.f32.mrf.mxu0
        %1183 = vdwg.mxu0
        %v1184 = vpack.c.bf16 %v1061, %v1061
        %1185 = vrot.lane.b32.xlu0 %v1088, 64
        %v1186 = vpop.permute.xlu0 %1185
        %1187 = vrot.lane.b32.xlu0 %v1089, 64
        %v1188 = vpop.permute.xlu0 %1187
        %1191 = vrot.lane.b32.xlu0 %v1078, 64
        %v1192 = vpop.permute.xlu0 %1191
        %v1195 = vsel %vm1033, %v1184, 0
        %1197 = vmatprep.subr.bf16.mxu0 0
        %1198 = vmatpush1.bf16.msra.mxu0 0
        %1199 = vmatprep.subr.bf16.mxu0 0
        %1200 = vmatpush1.bf16.msra.mxu0 0
        %1201 = vmatprep.subr.bf16.mxu0 0
        %1202 = vmatpush1.bf16.msra.mxu0 0
        %1203 = vmatprep.subr.bf16.mxu0 0
        %1204 = vmatpush1.bf16.msra.mxu0 0
        %1205 = vmatprep.subr.bf16.mxu0 0
        %1206 = vmatpush1.bf16.msra.mxu0 0
        %1207 = vmatprep.subr.bf16.mxu0 0
        %1208 = vmatpush1.bf16.msra.mxu0 0
        %1209 = vmatprep.subr.bf16.mxu0 0
        %1210 = vmatpush1.bf16.msra.mxu0 %v1188
        %1211 = vmatprep.subr.bf16.mxu0 0
        %1212 = vmatpush1.bf16.msra.mxu0 %v1186
        %1213 = vmatprep.subr.bf16.mxu0 0
        %1214 = vmatpush2.bf16.msra.mxu0 0
        %1215 = vmatprep.subr.bf16.mxu0 0
        %1216 = vmatpush2.bf16.msra.mxu0 0
        %1217 = vmatprep.subr.bf16.mxu0 0
        %1218 = vmatpush2.bf16.msra.mxu0 0
        %1219 = vmatprep.subr.bf16.mxu0 0
        %1220 = vmatpush2.bf16.msra.mxu0 0
        %1221 = vmatprep.subr.bf16.mxu0 0
        %1222 = vmatpush2.bf16.msra.mxu0 0
        %1223 = vmatprep.subr.bf16.mxu0 0
        %1224 = vmatpush2.bf16.msra.mxu0 0
        %1225 = vmatprep.subr.bf16.mxu0 0
        %1226 = vmatpush2.bf16.msra.mxu0 0
        %1227 = vmatprep.subr.bf16.mxu0 0
        %1228 = vmatpush2.bf16.msra.mxu0 0
        %1229 = vmatprep.mubr.bf16.mxu0 0
        %1230 = vmatmul.mubr.bf16.gmra.mxu0 %v1195
        %v1231 = vpop.f32.mrf.mxu0
        %v1232 = vadd.f32 %v1192, %v1231
        %v1233 = vpop.f32.mrf.mxu0
        %v1234 = vpop.f32.mrf.mxu0
        %v1235 = vpop.f32.mrf.mxu0
        %1236 = vdwg.mxu0
        %v1237 = vmul.f32 %v1130, 0.35355338
        %v1238 = vpack.c.bf16 %v1237, %v1237
        %v1239 = vpack.c.bf16 %v1179, %v1179
        %vm1240 = vcmask 64512
        %v1242 = vsel %vm1240, %v1238, 0
        %v1245 = vsel %vm1240, %v1239, 0
        %1247 = vmatprep.subr.bf16.mxu0 0
        %1248 = vmatpush1.bf16.xpose.msra.mxu0 0
        %1249 = vmatprep.subr.bf16.mxu0 0
        %1250 = vmatpush1.bf16.xpose.msra.mxu0 0
        %1251 = vmatprep.subr.bf16.mxu0 0
        %1252 = vmatpush1.bf16.xpose.msra.mxu0 0
        %1253 = vmatprep.subr.bf16.mxu0 0
        %1254 = vmatpush1.bf16.xpose.msra.mxu0 0
        %1255 = vmatprep.subr.bf16.mxu0 0
        %1256 = vmatpush1.bf16.xpose.msra.mxu0 0
        %1257 = vmatprep.subr.bf16.mxu0 0
        %1258 = vmatpush1.bf16.xpose.msra.mxu0 0
        %1259 = vmatprep.subr.bf16.mxu0 0
        %1260 = vmatpush1.bf16.xpose.msra.mxu0 0
        %1261 = vmatprep.subr.bf16.mxu0 0
        %1262 = vmatpush1.bf16.xpose.msra.mxu0 %v1245
        %1263 = vmatprep.subr.bf16.mxu0 0
        %1264 = vmatpush2.bf16.xpose.msra.mxu0 0
        %1265 = vmatprep.subr.bf16.mxu0 0
        %1266 = vmatpush2.bf16.xpose.msra.mxu0 0
        %1267 = vmatprep.subr.bf16.mxu0 0
        %1268 = vmatpush2.bf16.xpose.msra.mxu0 0
        %1269 = vmatprep.subr.bf16.mxu0 0
        %1270 = vmatpush2.bf16.xpose.msra.mxu0 0
        %1271 = vmatprep.subr.bf16.mxu0 0
        %1272 = vmatpush2.bf16.xpose.msra.mxu0 0
        %1273 = vmatprep.subr.bf16.mxu0 0
        %1274 = vmatpush2.bf16.xpose.msra.mxu0 0
        %1275 = vmatprep.subr.bf16.mxu0 0
        %1276 = vmatpush2.bf16.xpose.msra.mxu0 0
        %1277 = vmatprep.subr.bf16.mxu0 0
        %1278 = vmatpush2.bf16.xpose.msra.mxu0 0
        %1279 = vmatprep.mubr.bf16.mxu0 0
        %1280 = vmatmul.mubr.bf16.gmra.mxu0 %v1242
        %v1281 = vpop.f32.mrf.mxu0
        %v1282 = vadd.f32 0.0, %v1281
        %v1283 = vpop.f32.mrf.mxu0
        %v1284 = vpop.f32.mrf.mxu0
        %v1285 = vpop.f32.mrf.mxu0
        %1286 = vdwg.mxu0
        %v1287 = vsel %vm1240, %v1282, -inf
        %1288 = vmax.xlane.f32.xlu0 %v1287
        %v1289 = vpop.xlane.xlu0 %1288
        %v1290 = vsub.f32 %v1282, %v1289
        %v1291 = vmul.f32 %v1290, 1.442695
        %v1292 = vpow.pop %v1291
        %v1293 = vsel %vm1240, %v1292, 0.0
        %1294 = vadd.xlane.f32.xlu0 %v1293
        %v1295 = vpop.xlane.xlu0 %1294
        %v1296 = vrcp.pop %v1295
        %v1297 = vmul.f32 %v1292, %v1296
        %v1298 = vpack.c.bf16 %v1232, %v1232
        %v1299 = vpack.c.bf16 %v1297, %v1297
        %v1301 = vsel %vm1240, %v1299, 0
        %vm1303 = vcmask 1043456
        %v1305 = vsel %vm1303, %v1298, 0
        %1307 = vmatprep.subr.bf16.mxu0 0
        %1308 = vmatpush1.bf16.msra.mxu0 0
        %1309 = vmatprep.subr.bf16.mxu0 0
        %1310 = vmatpush1.bf16.msra.mxu0 0
        %1311 = vmatprep.subr.bf16.mxu0 0
        %1312 = vmatpush1.bf16.msra.mxu0 0
        %1313 = vmatprep.subr.bf16.mxu0 0
        %1314 = vmatpush1.bf16.msra.mxu0 0
        %1315 = vmatprep.subr.bf16.mxu0 0
        %1316 = vmatpush1.bf16.msra.mxu0 0
        %1317 = vmatprep.subr.bf16.mxu0 0
        %1318 = vmatpush1.bf16.msra.mxu0 0
        %1319 = vmatprep.subr.bf16.mxu0 0
        %1320 = vmatpush1.bf16.msra.mxu0 0
        %1321 = vmatprep.subr.bf16.mxu0 0
        %1322 = vmatpush1.bf16.msra.mxu0 %v1305
        %1323 = vmatprep.subr.bf16.mxu0 0
        %1324 = vmatpush2.bf16.msra.mxu0 0
        %1325 = vmatprep.subr.bf16.mxu0 0
        %1326 = vmatpush2.bf16.msra.mxu0 0
        %1327 = vmatprep.subr.bf16.mxu0 0
        %1328 = vmatpush2.bf16.msra.mxu0 0
        %1329 = vmatprep.subr.bf16.mxu0 0
        %1330 = vmatpush2.bf16.msra.mxu0 0
        %1331 = vmatprep.subr.bf16.mxu0 0
        %1332 = vmatpush2.bf16.msra.mxu0 0
        %1333 = vmatprep.subr.bf16.mxu0 0
        %1334 = vmatpush2.bf16.msra.mxu0 0
        %1335 = vmatprep.subr.bf16.mxu0 0
        %1336 = vmatpush2.bf16.msra.mxu0 0
        %1337 = vmatprep.subr.bf16.mxu0 0
        %1338 = vmatpush2.bf16.msra.mxu0 0
        %1339 = vmatprep.mubr.bf16.mxu0 0
        %1340 = vmatmul.mubr.bf16.gmra.mxu0 %v1301
        %v1341 = vpop.f32.mrf.mxu0
        %v1342 = vadd.f32 0.0, %v1341
        %v1343 = vpop.f32.mrf.mxu0
        %v1344 = vpop.f32.mrf.mxu0
        %v1345 = vpop.f32.mrf.mxu0
        %1346 = vdwg.mxu0
        %1348 = vrot.lane.b32.xlu0 %v1238, 120
        %v1349 = vpop.permute.xlu0 %1348
        %1351 = vrot.lane.b32.xlu0 %v1239, 120
        %v1352 = vpop.permute.xlu0 %1351
        %v1354 = vsel %vm1240, %v1349, 0
        %v1357 = vsel %vm1240, %v1352, 0
        %1359 = vmatprep.subr.bf16.mxu0 0
        %1360 = vmatpush1.bf16.xpose.msra.mxu0 0
        %1361 = vmatprep.subr.bf16.mxu0 0
        %1362 = vmatpush1.bf16.xpose.msra.mxu0 0
        %1363 = vmatprep.subr.bf16.mxu0 0
        %1364 = vmatpush1.bf16.xpose.msra.mxu0 0
        %1365 = vmatprep.subr.bf16.mxu0 0
        %1366 = vmatpush1.bf16.xpose.msra.mxu0 0
        %1367 = vmatprep.subr.bf16.mxu0 0
        %1368 = vmatpush1.bf16.xpose.msra.mxu0 0
        %1369 = vmatprep.subr.bf16.mxu0 0
        %1370 = vmatpush1.bf16.xpose.msra.mxu0 0
        %1371 = vmatprep.subr.bf16.mxu0 0
        %1372 = vmatpush1.bf16.xpose.msra.mxu0 0
        %1373 = vmatprep.subr.bf16.mxu0 0
        %1374 = vmatpush1.bf16.xpose.msra.mxu0 %v1357
        %1375 = vmatprep.subr.bf16.mxu0 0
        %1376 = vmatpush2.bf16.xpose.msra.mxu0 0
        %1377 = vmatprep.subr.bf16.mxu0 0
        %1378 = vmatpush2.bf16.xpose.msra.mxu0 0
        %1379 = vmatprep.subr.bf16.mxu0 0
        %1380 = vmatpush2.bf16.xpose.msra.mxu0 0
        %1381 = vmatprep.subr.bf16.mxu0 0
        %1382 = vmatpush2.bf16.xpose.msra.mxu0 0
        %1383 = vmatprep.subr.bf16.mxu0 0
        %1384 = vmatpush2.bf16.xpose.msra.mxu0 0
        %1385 = vmatprep.subr.bf16.mxu0 0
        %1386 = vmatpush2.bf16.xpose.msra.mxu0 0
        %1387 = vmatprep.subr.bf16.mxu0 0
        %1388 = vmatpush2.bf16.xpose.msra.mxu0 0
        %1389 = vmatprep.subr.bf16.mxu0 0
        %1390 = vmatpush2.bf16.xpose.msra.mxu0 0
        %1391 = vmatprep.mubr.bf16.mxu0 0
        %1392 = vmatmul.mubr.bf16.gmra.mxu0 %v1354
        %v1393 = vpop.f32.mrf.mxu0
        %v1394 = vadd.f32 0.0, %v1393
        %v1395 = vpop.f32.mrf.mxu0
        %v1396 = vpop.f32.mrf.mxu0
        %v1397 = vpop.f32.mrf.mxu0
        %1398 = vdwg.mxu0
        %v1399 = vsel %vm1240, %v1394, -inf
        %1400 = vmax.xlane.f32.xlu0 %v1399
        %v1401 = vpop.xlane.xlu0 %1400
        %v1402 = vsub.f32 %v1394, %v1401
        %v1403 = vmul.f32 %v1402, 1.442695
        %v1404 = vpow.pop %v1403
        %v1405 = vsel %vm1240, %v1404, 0.0
        %1406 = vadd.xlane.f32.xlu0 %v1405
        %v1407 = vpop.xlane.xlu0 %1406
        %v1408 = vrcp.pop %v1407
        %v1409 = vmul.f32 %v1404, %v1408
        %v1410 = vpack.c.bf16 %v1409, %v1409
        %1412 = vrot.lane.b32.xlu0 %v1298, 120
        %v1413 = vpop.permute.xlu0 %1412
        %v1415 = vsel %vm1240, %v1410, 0
        %v1418 = vsel %vm1303, %v1413, 0
        %1420 = vmatprep.subr.bf16.mxu0 0
        %1421 = vmatpush1.bf16.msra.mxu0 0
        %1422 = vmatprep.subr.bf16.mxu0 0
        %1423 = vmatpush1.bf16.msra.mxu0 0
        %1424 = vmatprep.subr.bf16.mxu0 0
        %1425 = vmatpush1.bf16.msra.mxu0 0
        %1426 = vmatprep.subr.bf16.mxu0 0
        %1427 = vmatpush1.bf16.msra.mxu0 0
        %1428 = vmatprep.subr.bf16.mxu0 0
        %1429 = vmatpush1.bf16.msra.mxu0 0
        %1430 = vmatprep.subr.bf16.mxu0 0
        %1431 = vmatpush1.bf16.msra.mxu0 0
        %1432 = vmatprep.subr.bf16.mxu0 0
        %1433 = vmatpush1.bf16.msra.mxu0 0
        %1434 = vmatprep.subr.bf16.mxu0 0
        %1435 = vmatpush1.bf16.msra.mxu0 %v1418
        %1436 = vmatprep.subr.bf16.mxu0 0
        %1437 = vmatpush2.bf16.msra.mxu0 0
        %1438 = vmatprep.subr.bf16.mxu0 0
        %1439 = vmatpush2.bf16.msra.mxu0 0
        %1440 = vmatprep.subr.bf16.mxu0 0
        %1441 = vmatpush2.bf16.msra.mxu0 0
        %1442 = vmatprep.subr.bf16.mxu0 0
        %1443 = vmatpush2.bf16.msra.mxu0 0
        %1444 = vmatprep.subr.bf16.mxu0 0
        %1445 = vmatpush2.bf16.msra.mxu0 0
        %1446 = vmatprep.subr.bf16.mxu0 0
        %1447 = vmatpush2.bf16.msra.mxu0 0
        %1448 = vmatprep.subr.bf16.mxu0 0
        %1449 = vmatpush2.bf16.msra.mxu0 0
        %1450 = vmatprep.subr.bf16.mxu0 0
        %1451 = vmatpush2.bf16.msra.mxu0 0
        %1452 = vmatprep.mubr.bf16.mxu0 0
        %1453 = vmatmul.mubr.bf16.gmra.mxu0 %v1415
        %v1454 = vpop.f32.mrf.mxu0
        %v1455 = vadd.f32 0.0, %v1454
        %v1456 = vpop.f32.mrf.mxu0
        %v1457 = vpop.f32.mrf.mxu0
        %v1458 = vpop.f32.mrf.mxu0
        %1459 = vdwg.mxu0
        %1460 = vrot.lane.b32.xlu0 %v1238, 112
        %v1461 = vpop.permute.xlu0 %1460
        %1462 = vrot.lane.b32.xlu0 %v1239, 112
        %v1463 = vpop.permute.xlu0 %1462
        %v1465 = vsel %vm1240, %v1461, 0
        %v1468 = vsel %vm1240, %v1463, 0
        %1470 = vmatprep.subr.bf16.mxu0 0
        %1471 = vmatpush1.bf16.xpose.msra.mxu0 0
        %1472 = vmatprep.subr.bf16.mxu0 0
        %1473 = vmatpush1.bf16.xpose.msra.mxu0 0
        %1474 = vmatprep.subr.bf16.mxu0 0
        %1475 = vmatpush1.bf16.xpose.msra.mxu0 0
        %1476 = vmatprep.subr.bf16.mxu0 0
        %1477 = vmatpush1.bf16.xpose.msra.mxu0 0
        %1478 = vmatprep.subr.bf16.mxu0 0
        %1479 = vmatpush1.bf16.xpose.msra.mxu0 0
        %1480 = vmatprep.subr.bf16.mxu0 0
        %1481 = vmatpush1.bf16.xpose.msra.mxu0 0
        %1482 = vmatprep.subr.bf16.mxu0 0
        %1483 = vmatpush1.bf16.xpose.msra.mxu0 0
        %1484 = vmatprep.subr.bf16.mxu0 0
        %1485 = vmatpush1.bf16.xpose.msra.mxu0 %v1468
        %1486 = vmatprep.subr.bf16.mxu0 0
        %1487 = vmatpush2.bf16.xpose.msra.mxu0 0
        %1488 = vmatprep.subr.bf16.mxu0 0
        %1489 = vmatpush2.bf16.xpose.msra.mxu0 0
        %1490 = vmatprep.subr.bf16.mxu0 0
        %1491 = vmatpush2.bf16.xpose.msra.mxu0 0
        %1492 = vmatprep.subr.bf16.mxu0 0
        %1493 = vmatpush2.bf16.xpose.msra.mxu0 0
        %1494 = vmatprep.subr.bf16.mxu0 0
        %1495 = vmatpush2.bf16.xpose.msra.mxu0 0
        %1496 = vmatprep.subr.bf16.mxu0 0
        %1497 = vmatpush2.bf16.xpose.msra.mxu0 0
        %1498 = vmatprep.subr.bf16.mxu0 0
        %1499 = vmatpush2.bf16.xpose.msra.mxu0 0
        %1500 = vmatprep.subr.bf16.mxu0 0
        %1501 = vmatpush2.bf16.xpose.msra.mxu0 0
        %1502 = vmatprep.mubr.bf16.mxu0 0
        %1503 = vmatmul.mubr.bf16.gmra.mxu0 %v1465
        %v1504 = vpop.f32.mrf.mxu0
        %v1505 = vadd.f32 0.0, %v1504
        %v1506 = vpop.f32.mrf.mxu0
        %v1507 = vpop.f32.mrf.mxu0
        %v1508 = vpop.f32.mrf.mxu0
        %1509 = vdwg.mxu0
        %v1510 = vsel %vm1240, %v1505, -inf
        %1511 = vmax.xlane.f32.xlu0 %v1510
        %v1512 = vpop.xlane.xlu0 %1511
        %v1513 = vsub.f32 %v1505, %v1512
        %v1514 = vmul.f32 %v1513, 1.442695
        %v1515 = vpow.pop %v1514
        %v1516 = vsel %vm1240, %v1515, 0.0
        %1517 = vadd.xlane.f32.xlu0 %v1516
        %v1518 = vpop.xlane.xlu0 %1517
        %v1519 = vrcp.pop %v1518
        %v1520 = vmul.f32 %v1515, %v1519
        %v1521 = vpack.c.bf16 %v1520, %v1520
        %1522 = vrot.lane.b32.xlu0 %v1298, 112
        %v1523 = vpop.permute.xlu0 %1522
        %v1525 = vsel %vm1240, %v1521, 0
        %v1528 = vsel %vm1303, %v1523, 0
        %1530 = vmatprep.subr.bf16.mxu0 0
        %1531 = vmatpush1.bf16.msra.mxu0 0
        %1532 = vmatprep.subr.bf16.mxu0 0
        %1533 = vmatpush1.bf16.msra.mxu0 0
        %1534 = vmatprep.subr.bf16.mxu0 0
        %1535 = vmatpush1.bf16.msra.mxu0 0
        %1536 = vmatprep.subr.bf16.mxu0 0
        %1537 = vmatpush1.bf16.msra.mxu0 0
        %1538 = vmatprep.subr.bf16.mxu0 0
        %1539 = vmatpush1.bf16.msra.mxu0 0
        %1540 = vmatprep.subr.bf16.mxu0 0
        %1541 = vmatpush1.bf16.msra.mxu0 0
        %1542 = vmatprep.subr.bf16.mxu0 0
        %1543 = vmatpush1.bf16.msra.mxu0 0
        %1544 = vmatprep.subr.bf16.mxu0 0
        %1545 = vmatpush1.bf16.msra.mxu0 %v1528
        %1546 = vmatprep.subr.bf16.mxu0 0
        %1547 = vmatpush2.bf16.msra.mxu0 0
        %1548 = vmatprep.subr.bf16.mxu0 0
        %1549 = vmatpush2.bf16.msra.mxu0 0
        %1550 = vmatprep.subr.bf16.mxu0 0
        %1551 = vmatpush2.bf16.msra.mxu0 0
        %1552 = vmatprep.subr.bf16.mxu0 0
        %1553 = vmatpush2.bf16.msra.mxu0 0
        %1554 = vmatprep.subr.bf16.mxu0 0
        %1555 = vmatpush2.bf16.msra.mxu0 0
        %1556 = vmatprep.subr.bf16.mxu0 0
        %1557 = vmatpush2.bf16.msra.mxu0 0
        %1558 = vmatprep.subr.bf16.mxu0 0
        %1559 = vmatpush2.bf16.msra.mxu0 0
        %1560 = vmatprep.subr.bf16.mxu0 0
        %1561 = vmatpush2.bf16.msra.mxu0 0
        %1562 = vmatprep.mubr.bf16.mxu0 0
        %1563 = vmatmul.mubr.bf16.gmra.mxu0 %v1525
        %v1564 = vpop.f32.mrf.mxu0
        %v1565 = vadd.f32 0.0, %v1564
        %v1566 = vpop.f32.mrf.mxu0
        %v1567 = vpop.f32.mrf.mxu0
        %v1568 = vpop.f32.mrf.mxu0
        %1569 = vdwg.mxu0
        %1570 = vrot.lane.b32.xlu0 %v1238, 104
        %v1571 = vpop.permute.xlu0 %1570
        %1572 = vrot.lane.b32.xlu0 %v1239, 104
        %v1573 = vpop.permute.xlu0 %1572
        %v1575 = vsel %vm1240, %v1571, 0
        %v1578 = vsel %vm1240, %v1573, 0
        %1580 = vmatprep.subr.bf16.mxu0 0
        %1581 = vmatpush1.bf16.xpose.msra.mxu0 0
        %1582 = vmatprep.subr.bf16.mxu0 0
        %1583 = vmatpush1.bf16.xpose.msra.mxu0 0
        %1584 = vmatprep.subr.bf16.mxu0 0
        %1585 = vmatpush1.bf16.xpose.msra.mxu0 0
        %1586 = vmatprep.subr.bf16.mxu0 0
        %1587 = vmatpush1.bf16.xpose.msra.mxu0 0
        %1588 = vmatprep.subr.bf16.mxu0 0
        %1589 = vmatpush1.bf16.xpose.msra.mxu0 0
        %1590 = vmatprep.subr.bf16.mxu0 0
        %1591 = vmatpush1.bf16.xpose.msra.mxu0 0
        %1592 = vmatprep.subr.bf16.mxu0 0
        %1593 = vmatpush1.bf16.xpose.msra.mxu0 0
        %1594 = vmatprep.subr.bf16.mxu0 0
        %1595 = vmatpush1.bf16.xpose.msra.mxu0 %v1578
        %1596 = vmatprep.subr.bf16.mxu0 0
        %1597 = vmatpush2.bf16.xpose.msra.mxu0 0
        %1598 = vmatprep.subr.bf16.mxu0 0
        %1599 = vmatpush2.bf16.xpose.msra.mxu0 0
        %1600 = vmatprep.subr.bf16.mxu0 0
        %1601 = vmatpush2.bf16.xpose.msra.mxu0 0
        %1602 = vmatprep.subr.bf16.mxu0 0
        %1603 = vmatpush2.bf16.xpose.msra.mxu0 0
        %1604 = vmatprep.subr.bf16.mxu0 0
        %1605 = vmatpush2.bf16.xpose.msra.mxu0 0
        %1606 = vmatprep.subr.bf16.mxu0 0
        %1607 = vmatpush2.bf16.xpose.msra.mxu0 0
        %1608 = vmatprep.subr.bf16.mxu0 0
        %1609 = vmatpush2.bf16.xpose.msra.mxu0 0
        %1610 = vmatprep.subr.bf16.mxu0 0
        %1611 = vmatpush2.bf16.xpose.msra.mxu0 0
        %1612 = vmatprep.mubr.bf16.mxu0 0
        %1613 = vmatmul.mubr.bf16.gmra.mxu0 %v1575
        %v1614 = vpop.f32.mrf.mxu0
        %v1615 = vadd.f32 0.0, %v1614
        %v1616 = vpop.f32.mrf.mxu0
        %v1617 = vpop.f32.mrf.mxu0
        %v1618 = vpop.f32.mrf.mxu0
        %1619 = vdwg.mxu0
        %v1620 = vsel %vm1240, %v1615, -inf
        %1621 = vmax.xlane.f32.xlu0 %v1620
        %v1622 = vpop.xlane.xlu0 %1621
        %v1623 = vsub.f32 %v1615, %v1622
        %v1624 = vmul.f32 %v1623, 1.442695
        %v1625 = vpow.pop %v1624
        %v1626 = vsel %vm1240, %v1625, 0.0
        %1627 = vadd.xlane.f32.xlu0 %v1626
        %v1628 = vpop.xlane.xlu0 %1627
        %v1629 = vrcp.pop %v1628
        %v1630 = vmul.f32 %v1625, %v1629
        %v1631 = vpack.c.bf16 %v1630, %v1630
        %1632 = vrot.lane.b32.xlu0 %v1298, 104
        %v1633 = vpop.permute.xlu0 %1632
        %v1635 = vsel %vm1240, %v1631, 0
        %v1638 = vsel %vm1303, %v1633, 0
        %1640 = vmatprep.subr.bf16.mxu0 0
        %1641 = vmatpush1.bf16.msra.mxu0 0
        %1642 = vmatprep.subr.bf16.mxu0 0
        %1643 = vmatpush1.bf16.msra.mxu0 0
        %1644 = vmatprep.subr.bf16.mxu0 0
        %1645 = vmatpush1.bf16.msra.mxu0 0
        %1646 = vmatprep.subr.bf16.mxu0 0
        %1647 = vmatpush1.bf16.msra.mxu0 0
        %1648 = vmatprep.subr.bf16.mxu0 0
        %1649 = vmatpush1.bf16.msra.mxu0 0
        %1650 = vmatprep.subr.bf16.mxu0 0
        %1651 = vmatpush1.bf16.msra.mxu0 0
        %1652 = vmatprep.subr.bf16.mxu0 0
        %1653 = vmatpush1.bf16.msra.mxu0 0
        %1654 = vmatprep.subr.bf16.mxu0 0
        %1655 = vmatpush1.bf16.msra.mxu0 %v1638
        %1656 = vmatprep.subr.bf16.mxu0 0
        %1657 = vmatpush2.bf16.msra.mxu0 0
        %1658 = vmatprep.subr.bf16.mxu0 0
        %1659 = vmatpush2.bf16.msra.mxu0 0
        %1660 = vmatprep.subr.bf16.mxu0 0
        %1661 = vmatpush2.bf16.msra.mxu0 0
        %1662 = vmatprep.subr.bf16.mxu0 0
        %1663 = vmatpush2.bf16.msra.mxu0 0
        %1664 = vmatprep.subr.bf16.mxu0 0
        %1665 = vmatpush2.bf16.msra.mxu0 0
        %1666 = vmatprep.subr.bf16.mxu0 0
        %1667 = vmatpush2.bf16.msra.mxu0 0
        %1668 = vmatprep.subr.bf16.mxu0 0
        %1669 = vmatpush2.bf16.msra.mxu0 0
        %1670 = vmatprep.subr.bf16.mxu0 0
        %1671 = vmatpush2.bf16.msra.mxu0 0
        %1672 = vmatprep.mubr.bf16.mxu0 0
        %1673 = vmatmul.mubr.bf16.gmra.mxu0 %v1635
        %v1674 = vpop.f32.mrf.mxu0
        %v1675 = vadd.f32 0.0, %v1674
        %v1676 = vpop.f32.mrf.mxu0
        %v1677 = vpop.f32.mrf.mxu0
        %v1678 = vpop.f32.mrf.mxu0
        %1679 = vdwg.mxu0
        %1681 = vrot.lane.b32.xlu0 %v1455, 8
        %v1682 = vpop.permute.xlu0 %1681
        %1685 = vrot.lane.b32.xlu0 %v1565, 16
        %v1686 = vpop.permute.xlu0 %1685
        %1689 = vrot.lane.b32.xlu0 %v1675, 24
        %v1690 = vpop.permute.xlu0 %1689
        %v1692 = vsel %vm1240, %v1342, %v1682
        %vm1693 = vcmask 130048
        %v1694 = vsel %vm1693, %v1692, %v1686
        %vm1695 = vcmask 195584
        %v1696 = vsel %vm1695, %v1694, %v1690
        %v1697 = vpack.c.bf16 %v1696, %v1696
        %v1699 = vlaneseq
        %v1700 = vshrl.u32 %v1699, 7
        %v1701 = vsub.s32 0, %v1700
        %v1702 = vrot.slane %v1072, %v1701
        %v1708 = vunpack.c.l.b16 %v1068
        %v1709 = vunpack.c.l.b16 %v1069
        %v1710 = vunpack.c.l.b16 %v1070
        %v1711 = vunpack.c.l.b16 %v1071
        %v1712 = vpack.c.b16 %v1709, %v1708
        %v1713 = vpack.c.b16 %v1711, %v1710
        %v1717 = vsel %vm1033, %v1697, 0
        %1719 = vmatprep.subr.bf16.mxu0 0
        %1720 = vmatpush1.bf16.msra.mxu0 0
        %1721 = vmatprep.subr.bf16.mxu0 0
        %1722 = vmatpush1.bf16.msra.mxu0 0
        %1723 = vmatprep.subr.bf16.mxu0 0
        %1724 = vmatpush1.bf16.msra.mxu0 0
        %1725 = vmatprep.subr.bf16.mxu0 0
        %1726 = vmatpush1.bf16.msra.mxu0 0
        %1727 = vmatprep.subr.bf16.mxu0 0
        %1728 = vmatpush1.bf16.msra.mxu0 0
        %1729 = vmatprep.subr.bf16.mxu0 0
        %1730 = vmatpush1.bf16.msra.mxu0 0
        %1731 = vmatprep.subr.bf16.mxu0 0
        %1732 = vmatpush1.bf16.msra.mxu0 %v1713
        %1733 = vmatprep.subr.bf16.mxu0 0
        %1734 = vmatpush1.bf16.msra.mxu0 %v1712
        %1735 = vmatprep.subr.bf16.mxu0 0
        %1736 = vmatpush2.bf16.msra.mxu0 0
        %1737 = vmatprep.subr.bf16.mxu0 0
        %1738 = vmatpush2.bf16.msra.mxu0 0
        %1739 = vmatprep.subr.bf16.mxu0 0
        %1740 = vmatpush2.bf16.msra.mxu0 0
        %1741 = vmatprep.subr.bf16.mxu0 0
        %1742 = vmatpush2.bf16.msra.mxu0 0
        %1743 = vmatprep.subr.bf16.mxu0 0
        %1744 = vmatpush2.bf16.msra.mxu0 0
        %1745 = vmatprep.subr.bf16.mxu0 0
        %1746 = vmatpush2.bf16.msra.mxu0 0
        %1747 = vmatprep.subr.bf16.mxu0 0
        %1748 = vmatpush2.bf16.msra.mxu0 0
        %1749 = vmatprep.subr.bf16.mxu0 0
        %1750 = vmatpush2.bf16.msra.mxu0 0
        %1751 = vmatprep.mubr.bf16.mxu0 0
        %1752 = vmatmul.mubr.bf16.gmra.mxu0 %v1717
        %v1753 = vpop.f32.mrf.mxu0
        %v1754 = vadd.f32 %v1702, %v1753
        %v1755 = vpop.f32.mrf.mxu0
        %v1756 = vpop.f32.mrf.mxu0
        %v1757 = vpop.f32.mrf.mxu0
        %1758 = vdwg.mxu0
        %v1759 = vsel %vm1033, %v1754, 0.0
        %1760 = vadd.xlane.f32.xlu0 %v1759
        %v1761 = vpop.xlane.xlu0 %1760
        %v1762 = vmul.f32 %v1761, %v1037
        %v1763 = vsub.f32 %v1754, %v1762
        %v1764 = vmul.f32 %v1763, %v1763
        %v1765 = vsel %vm1033, %v1764, 0.0
        %1766 = vadd.xlane.f32.xlu0 %v1765
        %v1767 = vpop.xlane.xlu0 %1766
        %v1768 = vmul.f32 %v1767, %v1037
        %v1769 = vadd.f32 %v1768, 1e-05
        %v1770 = vrsqrt.pop %v1769
        %v1771 = vmul.f32 %v1763, %v1770
        %v1773 = vlaneseq
        %v1774 = vshrl.u32 %v1773, 7
        %v1775 = vsub.s32 0, %v1774
        %v1776 = vrot.slane %v1029, %v1775
        %v1778 = vmul.f32 %v1771, %v1776
        %v1780 = vlaneseq
        %v1781 = vshrl.u32 %v1780, 7
        %v1782 = vsub.s32 0, %v1781
        %v1783 = vrot.slane %v1030, %v1782
        %v1785 = vadd.f32 %v1778, %v1783
        %v1787 = vlaneseq
        %v1788 = vshrl.u32 %v1787, 7
        %v1789 = vsub.s32 0, %v1788
        %v1790 = vrot.slane %v1031, %v1789
        %v1792 = vmul.f32 %v1790, %v1785
        %v1793 = vadd.f32 %v1032, %v1792
        %v1794 = vsel %vm1033, %v1793, 0.0
        %1795 = vadd.xlane.f32.xlu0 %v1794
        %v1796 = vpop.xlane.xlu0 %1795
        %v1797 = vmul.f32 %v1796, %v1037
        %v1798 = vsub.f32 %v1793, %v1797
        %v1799 = vmul.f32 %v1798, %v1798
        %v1800 = vsel %vm1033, %v1799, 0.0
        %1801 = vadd.xlane.f32.xlu0 %v1800
        %v1802 = vpop.xlane.xlu0 %1801
        %v1803 = vmul.f32 %v1802, %v1037
        %v1804 = vadd.f32 %v1803, 1e-05
        %v1805 = vrsqrt.pop %v1804
        %v1806 = vmul.f32 %v1798, %v1805
        %v1807 = vmul.f32 %v1806, %v1052
        %v1808 = vadd.f32 %v1807, %v1059
        %v1809 = vadd.f32 %v1808, %v1022
        %v1810 = vld [vmem:[%s984] sm:$0xf]
        %v1811 = vld [vmem:[%s984 + $0x4] sm:$0xf]
        %v1812 = vld [vmem:[%s984 + $0x8] sm:$0xf]
        %v1813 = vld [vmem:[%s984 + $0xc] sm:$0xf]
        %v1814 = vld [vmem:[%s987] sm:$0x1]
        %v1815 = vld [vmem:[%s992] sm:$0xf]
        %v1816 = vld [vmem:[%s992 + $0x4] sm:$0xf]
        %v1817 = vld [vmem:[%s992 + $0x8] sm:$0xf]
        %v1818 = vld [vmem:[%s992 + $0xc] sm:$0xf]
        %v1819 = vld [vmem:[%s995] sm:$0x1]
        %v1820 = vpack.c.bf16 %v1809, %v1809
        %v1822 = vlaneseq
        %v1823 = vshrl.u32 %v1822, 7
        %v1824 = vsub.s32 0, %v1823
        %v1825 = vrot.slane %v1814, %v1824
        %v1831 = vunpack.c.l.b16 %v1810
        %v1832 = vunpack.c.l.b16 %v1811
        %v1833 = vunpack.c.l.b16 %v1812
        %v1834 = vunpack.c.l.b16 %v1813
        %v1835 = vpack.c.b16 %v1832, %v1831
        %v1836 = vpack.c.b16 %v1834, %v1833
        %v1840 = vsel %vm1033, %v1820, 0
        %1842 = vmatprep.subr.bf16.mxu0 0
        %1843 = vmatpush1.bf16.msra.mxu0 0
        %1844 = vmatprep.subr.bf16.mxu0 0
        %1845 = vmatpush1.bf16.msra.mxu0 0
        %1846 = vmatprep.subr.bf16.mxu0 0
        %1847 = vmatpush1.bf16.msra.mxu0 0
        %1848 = vmatprep.subr.bf16.mxu0 0
        %1849 = vmatpush1.bf16.msra.mxu0 0
        %1850 = vmatprep.subr.bf16.mxu0 0
        %1851 = vmatpush1.bf16.msra.mxu0 0
        %1852 = vmatprep.subr.bf16.mxu0 0
        %1853 = vmatpush1.bf16.msra.mxu0 0
        %1854 = vmatprep.subr.bf16.mxu0 0
        %1855 = vmatpush1.bf16.msra.mxu0 %v1836
        %1856 = vmatprep.subr.bf16.mxu0 0
        %1857 = vmatpush1.bf16.msra.mxu0 %v1835
        %1858 = vmatprep.subr.bf16.mxu0 0
        %1859 = vmatpush2.bf16.msra.mxu0 0
        %1860 = vmatprep.subr.bf16.mxu0 0
        %1861 = vmatpush2.bf16.msra.mxu0 0
        %1862 = vmatprep.subr.bf16.mxu0 0
        %1863 = vmatpush2.bf16.msra.mxu0 0
        %1864 = vmatprep.subr.bf16.mxu0 0
        %1865 = vmatpush2.bf16.msra.mxu0 0
        %1866 = vmatprep.subr.bf16.mxu0 0
        %1867 = vmatpush2.bf16.msra.mxu0 0
        %1868 = vmatprep.subr.bf16.mxu0 0
        %1869 = vmatpush2.bf16.msra.mxu0 0
        %1870 = vmatprep.subr.bf16.mxu0 0
        %1871 = vmatpush2.bf16.msra.mxu0 0
        %1872 = vmatprep.subr.bf16.mxu0 0
        %1873 = vmatpush2.bf16.msra.mxu0 0
        %1874 = vmatprep.mubr.bf16.mxu0 0
        %1875 = vmatmul.mubr.bf16.gmra.mxu0 %v1840
        %v1876 = vpop.f32.mrf.mxu0
        %v1877 = vadd.f32 %v1825, %v1876
        %v1878 = vpop.f32.mrf.mxu0
        %v1879 = vpop.f32.mrf.mxu0
        %v1880 = vpop.f32.mrf.mxu0
        %1881 = vdwg.mxu0
        %v1882 = vpack.c.bf16 %v1026, %v1025
        %1883 = vrot.lane.b32.xlu0 %v1835, 96
        %v1884 = vpop.permute.xlu0 %1883
        %1885 = vrot.lane.b32.xlu0 %v1836, 96
        %v1886 = vpop.permute.xlu0 %1885
        %1889 = vrot.lane.b32.xlu0 %v1825, 96
        %v1890 = vpop.permute.xlu0 %1889
        %v1893 = vsel %vm1033, %v1882, 0
        %1895 = vmatprep.subr.bf16.mxu0 0
        %1896 = vmatpush1.bf16.msra.mxu0 0
        %1897 = vmatprep.subr.bf16.mxu0 0
        %1898 = vmatpush1.bf16.msra.mxu0 0
        %1899 = vmatprep.subr.bf16.mxu0 0
        %1900 = vmatpush1.bf16.msra.mxu0 0
        %1901 = vmatprep.subr.bf16.mxu0 0
        %1902 = vmatpush1.bf16.msra.mxu0 0
        %1903 = vmatprep.subr.bf16.mxu0 0
        %1904 = vmatpush1.bf16.msra.mxu0 0
        %1905 = vmatprep.subr.bf16.mxu0 0
        %1906 = vmatpush1.bf16.msra.mxu0 0
        %1907 = vmatprep.subr.bf16.mxu0 0
        %1908 = vmatpush1.bf16.msra.mxu0 %v1886
        %1909 = vmatprep.subr.bf16.mxu0 0
        %1910 = vmatpush1.bf16.msra.mxu0 %v1884
        %1911 = vmatprep.subr.bf16.mxu0 0
        %1912 = vmatpush2.bf16.msra.mxu0 0
        %1913 = vmatprep.subr.bf16.mxu0 0
        %1914 = vmatpush2.bf16.msra.mxu0 0
        %1915 = vmatprep.subr.bf16.mxu0 0
        %1916 = vmatpush2.bf16.msra.mxu0 0
        %1917 = vmatprep.subr.bf16.mxu0 0
        %1918 = vmatpush2.bf16.msra.mxu0 0
        %1919 = vmatprep.subr.bf16.mxu0 0
        %1920 = vmatpush2.bf16.msra.mxu0 0
        %1921 = vmatprep.subr.bf16.mxu0 0
        %1922 = vmatpush2.bf16.msra.mxu0 0
        %1923 = vmatprep.subr.bf16.mxu0 0
        %1924 = vmatpush2.bf16.msra.mxu0 0
        %1925 = vmatprep.subr.bf16.mxu0 0
        %1926 = vmatpush2.bf16.msra.mxu0 0
        %1927 = vmatprep.mubr.bf16.mxu0 0
        %1928 = vmatmul.mubr.bf16.gmra.mxu0 %v1893
        %v1929 = vpop.f32.mrf.mxu0
        %v1930 = vadd.f32 %v1890, %v1929
        %v1931 = vpop.f32.mrf.mxu0
        %v1932 = vpop.f32.mrf.mxu0
        %v1933 = vadd.f32 %v1890, %v1932
        %v1934 = vpop.f32.mrf.mxu0
        %1935 = vdwg.mxu0
        %v1936 = vpack.c.bf16 %v1021, %v1020
        %1937 = vrot.lane.b32.xlu0 %v1835, 64
        %v1938 = vpop.permute.xlu0 %1937
        %1939 = vrot.lane.b32.xlu0 %v1836, 64
        %v1940 = vpop.permute.xlu0 %1939
        %1943 = vrot.lane.b32.xlu0 %v1825, 64
        %v1944 = vpop.permute.xlu0 %1943
        %v1947 = vsel %vm1033, %v1936, 0
        %1949 = vmatprep.subr.bf16.mxu0 0
        %1950 = vmatpush1.bf16.msra.mxu0 0
        %1951 = vmatprep.subr.bf16.mxu0 0
        %1952 = vmatpush1.bf16.msra.mxu0 0
        %1953 = vmatprep.subr.bf16.mxu0 0
        %1954 = vmatpush1.bf16.msra.mxu0 0
        %1955 = vmatprep.subr.bf16.mxu0 0
        %1956 = vmatpush1.bf16.msra.mxu0 0
        %1957 = vmatprep.subr.bf16.mxu0 0
        %1958 = vmatpush1.bf16.msra.mxu0 0
        %1959 = vmatprep.subr.bf16.mxu0 0
        %1960 = vmatpush1.bf16.msra.mxu0 0
        %1961 = vmatprep.subr.bf16.mxu0 0
        %1962 = vmatpush1.bf16.msra.mxu0 %v1940
        %1963 = vmatprep.subr.bf16.mxu0 0
        %1964 = vmatpush1.bf16.msra.mxu0 %v1938
        %1965 = vmatprep.subr.bf16.mxu0 0
        %1966 = vmatpush2.bf16.msra.mxu0 0
        %1967 = vmatprep.subr.bf16.mxu0 0
        %1968 = vmatpush2.bf16.msra.mxu0 0
        %1969 = vmatprep.subr.bf16.mxu0 0
        %1970 = vmatpush2.bf16.msra.mxu0 0
        %1971 = vmatprep.subr.bf16.mxu0 0
        %1972 = vmatpush2.bf16.msra.mxu0 0
        %1973 = vmatprep.subr.bf16.mxu0 0
        %1974 = vmatpush2.bf16.msra.mxu0 0
        %1975 = vmatprep.subr.bf16.mxu0 0
        %1976 = vmatpush2.bf16.msra.mxu0 0
        %1977 = vmatprep.subr.bf16.mxu0 0
        %1978 = vmatpush2.bf16.msra.mxu0 0
        %1979 = vmatprep.subr.bf16.mxu0 0
        %1980 = vmatpush2.bf16.msra.mxu0 0
        %1981 = vmatprep.mubr.bf16.mxu0 0
        %1982 = vmatmul.mubr.bf16.gmra.mxu0 %v1947
        %v1983 = vpop.f32.mrf.mxu0
        %v1984 = vadd.f32 %v1944, %v1983
        %v1985 = vpop.f32.mrf.mxu0
        %v1986 = vpop.f32.mrf.mxu0
        %v1987 = vadd.f32 %v1944, %v1986
        %v1988 = vpop.f32.mrf.mxu0
        %1989 = vdwg.mxu0
        %v1990 = vmul.f32 %v1877, 0.35355338
        %v1991 = vpack.c.bf16 %v1990, %v1990
        %v1992 = vpack.c.bf16 %v1933, %v1930
        %v1994 = vsel %vm1240, %v1991, 0
        %v1997 = vsel %vm1240, %v1992, 0
        %1999 = vmatprep.subr.bf16.mxu0 0
        %2000 = vmatpush1.bf16.xpose.msra.mxu0 0
        %2001 = vmatprep.subr.bf16.mxu0 0
        %2002 = vmatpush1.bf16.xpose.msra.mxu0 0
        %2003 = vmatprep.subr.bf16.mxu0 0
        %2004 = vmatpush1.bf16.xpose.msra.mxu0 0
        %2005 = vmatprep.subr.bf16.mxu0 0
        %2006 = vmatpush1.bf16.xpose.msra.mxu0 0
        %2007 = vmatprep.subr.bf16.mxu0 0
        %2008 = vmatpush1.bf16.xpose.msra.mxu0 0
        %2009 = vmatprep.subr.bf16.mxu0 0
        %2010 = vmatpush1.bf16.xpose.msra.mxu0 0
        %2011 = vmatprep.subr.bf16.mxu0 0
        %2012 = vmatpush1.bf16.xpose.msra.mxu0 0
        %2013 = vmatprep.subr.bf16.mxu0 0
        %2014 = vmatpush1.bf16.xpose.msra.mxu0 %v1997
        %2015 = vmatprep.subr.bf16.mxu0 0
        %2016 = vmatpush2.bf16.xpose.msra.mxu0 0
        %2017 = vmatprep.subr.bf16.mxu0 0
        %2018 = vmatpush2.bf16.xpose.msra.mxu0 0
        %2019 = vmatprep.subr.bf16.mxu0 0
        %2020 = vmatpush2.bf16.xpose.msra.mxu0 0
        %2021 = vmatprep.subr.bf16.mxu0 0
        %2022 = vmatpush2.bf16.xpose.msra.mxu0 0
        %2023 = vmatprep.subr.bf16.mxu0 0
        %2024 = vmatpush2.bf16.xpose.msra.mxu0 0
        %2025 = vmatprep.subr.bf16.mxu0 0
        %2026 = vmatpush2.bf16.xpose.msra.mxu0 0
        %2027 = vmatprep.subr.bf16.mxu0 0
        %2028 = vmatpush2.bf16.xpose.msra.mxu0 0
        %2029 = vmatprep.subr.bf16.mxu0 0
        %2030 = vmatpush2.bf16.xpose.msra.mxu0 0
        %2031 = vmatprep.mubr.bf16.mxu0 0
        %2032 = vmatmul.mubr.bf16.gmra.mxu0 %v1994
        %v2033 = vpop.f32.mrf.mxu0
        %v2034 = vadd.f32 0.0, %v2033
        %v2035 = vpop.f32.mrf.mxu0
        %v2036 = vpop.f32.mrf.mxu0
        %v2037 = vpop.f32.mrf.mxu0
        %2038 = vdwg.mxu0
        %v2039 = vsel %vm1693, %v2034, -inf
        %2040 = vmax.xlane.f32.xlu0 %v2039
        %v2041 = vpop.xlane.xlu0 %2040
        %v2042 = vsub.f32 %v2034, %v2041
        %v2043 = vmul.f32 %v2042, 1.442695
        %v2044 = vpow.pop %v2043
        %v2045 = vsel %vm1693, %v2044, 0.0
        %2046 = vadd.xlane.f32.xlu0 %v2045
        %v2047 = vpop.xlane.xlu0 %2046
        %v2048 = vrcp.pop %v2047
        %v2049 = vmul.f32 %v2044, %v2048
        %v2050 = vpack.c.bf16 %v1987, %v1984
        %v2051 = vpack.c.bf16 %v2049, %v2049
        %v2053 = vsel %vm1693, %v2051, 0
        %2055 = vmatprep.subr.bf16.mxu0 0
        %2056 = vmatpush1.bf16.msra.mxu0 0
        %2057 = vmatprep.subr.bf16.mxu0 0
        %2058 = vmatpush1.bf16.msra.mxu0 0
        %2059 = vmatprep.subr.bf16.mxu0 0
        %2060 = vmatpush1.bf16.msra.mxu0 0
        %2061 = vmatprep.subr.bf16.mxu0 0
        %2062 = vmatpush1.bf16.msra.mxu0 0
        %2063 = vmatprep.subr.bf16.mxu0 0
        %2064 = vmatpush1.bf16.msra.mxu0 0
        %2065 = vmatprep.subr.bf16.mxu0 0
        %2066 = vmatpush1.bf16.msra.mxu0 0
        %2067 = vmatprep.subr.bf16.mxu0 0
        %2068 = vmatpush1.bf16.msra.mxu0 0
        %2069 = vmatprep.subr.bf16.mxu0 0
        %2070 = vmatpush1.bf16.msra.mxu0 %v2050
        %2071 = vmatprep.subr.bf16.mxu0 0
        %2072 = vmatpush2.bf16.msra.mxu0 0
        %2073 = vmatprep.subr.bf16.mxu0 0
        %2074 = vmatpush2.bf16.msra.mxu0 0
        %2075 = vmatprep.subr.bf16.mxu0 0
        %2076 = vmatpush2.bf16.msra.mxu0 0
        %2077 = vmatprep.subr.bf16.mxu0 0
        %2078 = vmatpush2.bf16.msra.mxu0 0
        %2079 = vmatprep.subr.bf16.mxu0 0
        %2080 = vmatpush2.bf16.msra.mxu0 0
        %2081 = vmatprep.subr.bf16.mxu0 0
        %2082 = vmatpush2.bf16.msra.mxu0 0
        %2083 = vmatprep.subr.bf16.mxu0 0
        %2084 = vmatpush2.bf16.msra.mxu0 0
        %2085 = vmatprep.subr.bf16.mxu0 0
        %2086 = vmatpush2.bf16.msra.mxu0 0
        %2087 = vmatprep.mubr.bf16.mxu0 0
        %2088 = vmatmul.mubr.bf16.gmra.mxu0 %v2053
        %v2089 = vpop.f32.mrf.mxu0
        %v2090 = vadd.f32 0.0, %v2089
        %v2091 = vpop.f32.mrf.mxu0
        %v2092 = vpop.f32.mrf.mxu0
        %v2093 = vpop.f32.mrf.mxu0
        %2094 = vdwg.mxu0
        %2096 = vrot.lane.b32.xlu0 %v1991, 120
        %v2097 = vpop.permute.xlu0 %2096
        %2099 = vrot.lane.b32.xlu0 %v1992, 120
        %v2100 = vpop.permute.xlu0 %2099
        %v2102 = vsel %vm1240, %v2097, 0
        %v2105 = vsel %vm1240, %v2100, 0
        %2107 = vmatprep.subr.bf16.mxu0 0
        %2108 = vmatpush1.bf16.xpose.msra.mxu0 0
        %2109 = vmatprep.subr.bf16.mxu0 0
        %2110 = vmatpush1.bf16.xpose.msra.mxu0 0
        %2111 = vmatprep.subr.bf16.mxu0 0
        %2112 = vmatpush1.bf16.xpose.msra.mxu0 0
        %2113 = vmatprep.subr.bf16.mxu0 0
        %2114 = vmatpush1.bf16.xpose.msra.mxu0 0
        %2115 = vmatprep.subr.bf16.mxu0 0
        %2116 = vmatpush1.bf16.xpose.msra.mxu0 0
        %2117 = vmatprep.subr.bf16.mxu0 0
        %2118 = vmatpush1.bf16.xpose.msra.mxu0 0
        %2119 = vmatprep.subr.bf16.mxu0 0
        %2120 = vmatpush1.bf16.xpose.msra.mxu0 0
        %2121 = vmatprep.subr.bf16.mxu0 0
        %2122 = vmatpush1.bf16.xpose.msra.mxu0 %v2105
        %2123 = vmatprep.subr.bf16.mxu0 0
        %2124 = vmatpush2.bf16.xpose.msra.mxu0 0
        %2125 = vmatprep.subr.bf16.mxu0 0
        %2126 = vmatpush2.bf16.xpose.msra.mxu0 0
        %2127 = vmatprep.subr.bf16.mxu0 0
        %2128 = vmatpush2.bf16.xpose.msra.mxu0 0
        %2129 = vmatprep.subr.bf16.mxu0 0
        %2130 = vmatpush2.bf16.xpose.msra.mxu0 0
        %2131 = vmatprep.subr.bf16.mxu0 0
        %2132 = vmatpush2.bf16.xpose.msra.mxu0 0
        %2133 = vmatprep.subr.bf16.mxu0 0
        %2134 = vmatpush2.bf16.xpose.msra.mxu0 0
        %2135 = vmatprep.subr.bf16.mxu0 0
        %2136 = vmatpush2.bf16.xpose.msra.mxu0 0
        %2137 = vmatprep.subr.bf16.mxu0 0
        %2138 = vmatpush2.bf16.xpose.msra.mxu0 0
        %2139 = vmatprep.mubr.bf16.mxu0 0
        %2140 = vmatmul.mubr.bf16.gmra.mxu0 %v2102
        %v2141 = vpop.f32.mrf.mxu0
        %v2142 = vadd.f32 0.0, %v2141
        %v2143 = vpop.f32.mrf.mxu0
        %v2144 = vpop.f32.mrf.mxu0
        %v2145 = vpop.f32.mrf.mxu0
        %2146 = vdwg.mxu0
        %v2147 = vsel %vm1693, %v2142, -inf
        %2148 = vmax.xlane.f32.xlu0 %v2147
        %v2149 = vpop.xlane.xlu0 %2148
        %v2150 = vsub.f32 %v2142, %v2149
        %v2151 = vmul.f32 %v2150, 1.442695
        %v2152 = vpow.pop %v2151
        %v2153 = vsel %vm1693, %v2152, 0.0
        %2154 = vadd.xlane.f32.xlu0 %v2153
        %v2155 = vpop.xlane.xlu0 %2154
        %v2156 = vrcp.pop %v2155
        %v2157 = vmul.f32 %v2152, %v2156
        %v2158 = vpack.c.bf16 %v2157, %v2157
        %2160 = vrot.lane.b32.xlu0 %v2050, 120
        %v2161 = vpop.permute.xlu0 %2160
        %v2164 = vsel %vm1693, %v2158, 0
        %2166 = vmatprep.subr.bf16.mxu0 0
        %2167 = vmatpush1.bf16.msra.mxu0 0
        %2168 = vmatprep.subr.bf16.mxu0 0
        %2169 = vmatpush1.bf16.msra.mxu0 0
        %2170 = vmatprep.subr.bf16.mxu0 0
        %2171 = vmatpush1.bf16.msra.mxu0 0
        %2172 = vmatprep.subr.bf16.mxu0 0
        %2173 = vmatpush1.bf16.msra.mxu0 0
        %2174 = vmatprep.subr.bf16.mxu0 0
        %2175 = vmatpush1.bf16.msra.mxu0 0
        %2176 = vmatprep.subr.bf16.mxu0 0
        %2177 = vmatpush1.bf16.msra.mxu0 0
        %2178 = vmatprep.subr.bf16.mxu0 0
        %2179 = vmatpush1.bf16.msra.mxu0 0
        %2180 = vmatprep.subr.bf16.mxu0 0
        %2181 = vmatpush1.bf16.msra.mxu0 %v2161
        %2182 = vmatprep.subr.bf16.mxu0 0
        %2183 = vmatpush2.bf16.msra.mxu0 0
        %2184 = vmatprep.subr.bf16.mxu0 0
        %2185 = vmatpush2.bf16.msra.mxu0 0
        %2186 = vmatprep.subr.bf16.mxu0 0
        %2187 = vmatpush2.bf16.msra.mxu0 0
        %2188 = vmatprep.subr.bf16.mxu0 0
        %2189 = vmatpush2.bf16.msra.mxu0 0
        %2190 = vmatprep.subr.bf16.mxu0 0
        %2191 = vmatpush2.bf16.msra.mxu0 0
        %2192 = vmatprep.subr.bf16.mxu0 0
        %2193 = vmatpush2.bf16.msra.mxu0 0
        %2194 = vmatprep.subr.bf16.mxu0 0
        %2195 = vmatpush2.bf16.msra.mxu0 0
        %2196 = vmatprep.subr.bf16.mxu0 0
        %2197 = vmatpush2.bf16.msra.mxu0 0
        %2198 = vmatprep.mubr.bf16.mxu0 0
        %2199 = vmatmul.mubr.bf16.gmra.mxu0 %v2164
        %v2200 = vpop.f32.mrf.mxu0
        %v2201 = vadd.f32 0.0, %v2200
        %v2202 = vpop.f32.mrf.mxu0
        %v2203 = vpop.f32.mrf.mxu0
        %v2204 = vpop.f32.mrf.mxu0
        %2205 = vdwg.mxu0
        %2206 = vrot.lane.b32.xlu0 %v1991, 112
        %v2207 = vpop.permute.xlu0 %2206
        %2208 = vrot.lane.b32.xlu0 %v1992, 112
        %v2209 = vpop.permute.xlu0 %2208
        %v2211 = vsel %vm1240, %v2207, 0
        %v2214 = vsel %vm1240, %v2209, 0
        %2216 = vmatprep.subr.bf16.mxu0 0
        %2217 = vmatpush1.bf16.xpose.msra.mxu0 0
        %2218 = vmatprep.subr.bf16.mxu0 0
        %2219 = vmatpush1.bf16.xpose.msra.mxu0 0
        %2220 = vmatprep.subr.bf16.mxu0 0
        %2221 = vmatpush1.bf16.xpose.msra.mxu0 0
        %2222 = vmatprep.subr.bf16.mxu0 0
        %2223 = vmatpush1.bf16.xpose.msra.mxu0 0
        %2224 = vmatprep.subr.bf16.mxu0 0
        %2225 = vmatpush1.bf16.xpose.msra.mxu0 0
        %2226 = vmatprep.subr.bf16.mxu0 0
        %2227 = vmatpush1.bf16.xpose.msra.mxu0 0
        %2228 = vmatprep.subr.bf16.mxu0 0
        %2229 = vmatpush1.bf16.xpose.msra.mxu0 0
        %2230 = vmatprep.subr.bf16.mxu0 0
        %2231 = vmatpush1.bf16.xpose.msra.mxu0 %v2214
        %2232 = vmatprep.subr.bf16.mxu0 0
        %2233 = vmatpush2.bf16.xpose.msra.mxu0 0
        %2234 = vmatprep.subr.bf16.mxu0 0
        %2235 = vmatpush2.bf16.xpose.msra.mxu0 0
        %2236 = vmatprep.subr.bf16.mxu0 0
        %2237 = vmatpush2.bf16.xpose.msra.mxu0 0
        %2238 = vmatprep.subr.bf16.mxu0 0
        %2239 = vmatpush2.bf16.xpose.msra.mxu0 0
        %2240 = vmatprep.subr.bf16.mxu0 0
        %2241 = vmatpush2.bf16.xpose.msra.mxu0 0
        %2242 = vmatprep.subr.bf16.mxu0 0
        %2243 = vmatpush2.bf16.xpose.msra.mxu0 0
        %2244 = vmatprep.subr.bf16.mxu0 0
        %2245 = vmatpush2.bf16.xpose.msra.mxu0 0
        %2246 = vmatprep.subr.bf16.mxu0 0
        %2247 = vmatpush2.bf16.xpose.msra.mxu0 0
        %2248 = vmatprep.mubr.bf16.mxu0 0
        %2249 = vmatmul.mubr.bf16.gmra.mxu0 %v2211
        %v2250 = vpop.f32.mrf.mxu0
        %v2251 = vadd.f32 0.0, %v2250
        %v2252 = vpop.f32.mrf.mxu0
        %v2253 = vpop.f32.mrf.mxu0
        %v2254 = vpop.f32.mrf.mxu0
        %2255 = vdwg.mxu0
        %v2256 = vsel %vm1693, %v2251, -inf
        %2257 = vmax.xlane.f32.xlu0 %v2256
        %v2258 = vpop.xlane.xlu0 %2257
        %v2259 = vsub.f32 %v2251, %v2258
        %v2260 = vmul.f32 %v2259, 1.442695
        %v2261 = vpow.pop %v2260
        %v2262 = vsel %vm1693, %v2261, 0.0
        %2263 = vadd.xlane.f32.xlu0 %v2262
        %v2264 = vpop.xlane.xlu0 %2263
        %v2265 = vrcp.pop %v2264
        %v2266 = vmul.f32 %v2261, %v2265
        %v2267 = vpack.c.bf16 %v2266, %v2266
        %2268 = vrot.lane.b32.xlu0 %v2050, 112
        %v2269 = vpop.permute.xlu0 %2268
        %v2272 = vsel %vm1693, %v2267, 0
        %2274 = vmatprep.subr.bf16.mxu0 0
        %2275 = vmatpush1.bf16.msra.mxu0 0
        %2276 = vmatprep.subr.bf16.mxu0 0
        %2277 = vmatpush1.bf16.msra.mxu0 0
        %2278 = vmatprep.subr.bf16.mxu0 0
        %2279 = vmatpush1.bf16.msra.mxu0 0
        %2280 = vmatprep.subr.bf16.mxu0 0
        %2281 = vmatpush1.bf16.msra.mxu0 0
        %2282 = vmatprep.subr.bf16.mxu0 0
        %2283 = vmatpush1.bf16.msra.mxu0 0
        %2284 = vmatprep.subr.bf16.mxu0 0
        %2285 = vmatpush1.bf16.msra.mxu0 0
        %2286 = vmatprep.subr.bf16.mxu0 0
        %2287 = vmatpush1.bf16.msra.mxu0 0
        %2288 = vmatprep.subr.bf16.mxu0 0
        %2289 = vmatpush1.bf16.msra.mxu0 %v2269
        %2290 = vmatprep.subr.bf16.mxu0 0
        %2291 = vmatpush2.bf16.msra.mxu0 0
        %2292 = vmatprep.subr.bf16.mxu0 0
        %2293 = vmatpush2.bf16.msra.mxu0 0
        %2294 = vmatprep.subr.bf16.mxu0 0
        %2295 = vmatpush2.bf16.msra.mxu0 0
        %2296 = vmatprep.subr.bf16.mxu0 0
        %2297 = vmatpush2.bf16.msra.mxu0 0
        %2298 = vmatprep.subr.bf16.mxu0 0
        %2299 = vmatpush2.bf16.msra.mxu0 0
        %2300 = vmatprep.subr.bf16.mxu0 0
        %2301 = vmatpush2.bf16.msra.mxu0 0
        %2302 = vmatprep.subr.bf16.mxu0 0
        %2303 = vmatpush2.bf16.msra.mxu0 0
        %2304 = vmatprep.subr.bf16.mxu0 0
        %2305 = vmatpush2.bf16.msra.mxu0 0
        %2306 = vmatprep.mubr.bf16.mxu0 0
        %2307 = vmatmul.mubr.bf16.gmra.mxu0 %v2272
        %v2308 = vpop.f32.mrf.mxu0
        %v2309 = vadd.f32 0.0, %v2308
        %v2310 = vpop.f32.mrf.mxu0
        %v2311 = vpop.f32.mrf.mxu0
        %v2312 = vpop.f32.mrf.mxu0
        %2313 = vdwg.mxu0
        %2314 = vrot.lane.b32.xlu0 %v1991, 104
        %v2315 = vpop.permute.xlu0 %2314
        %2316 = vrot.lane.b32.xlu0 %v1992, 104
        %v2317 = vpop.permute.xlu0 %2316
        %v2319 = vsel %vm1240, %v2315, 0
        %v2322 = vsel %vm1240, %v2317, 0
        %2324 = vmatprep.subr.bf16.mxu0 0
        %2325 = vmatpush1.bf16.xpose.msra.mxu0 0
        %2326 = vmatprep.subr.bf16.mxu0 0
        %2327 = vmatpush1.bf16.xpose.msra.mxu0 0
        %2328 = vmatprep.subr.bf16.mxu0 0
        %2329 = vmatpush1.bf16.xpose.msra.mxu0 0
        %2330 = vmatprep.subr.bf16.mxu0 0
        %2331 = vmatpush1.bf16.xpose.msra.mxu0 0
        %2332 = vmatprep.subr.bf16.mxu0 0
        %2333 = vmatpush1.bf16.xpose.msra.mxu0 0
        %2334 = vmatprep.subr.bf16.mxu0 0
        %2335 = vmatpush1.bf16.xpose.msra.mxu0 0
        %2336 = vmatprep.subr.bf16.mxu0 0
        %2337 = vmatpush1.bf16.xpose.msra.mxu0 0
        %2338 = vmatprep.subr.bf16.mxu0 0
        %2339 = vmatpush1.bf16.xpose.msra.mxu0 %v2322
        %2340 = vmatprep.subr.bf16.mxu0 0
        %2341 = vmatpush2.bf16.xpose.msra.mxu0 0
        %2342 = vmatprep.subr.bf16.mxu0 0
        %2343 = vmatpush2.bf16.xpose.msra.mxu0 0
        %2344 = vmatprep.subr.bf16.mxu0 0
        %2345 = vmatpush2.bf16.xpose.msra.mxu0 0
        %2346 = vmatprep.subr.bf16.mxu0 0
        %2347 = vmatpush2.bf16.xpose.msra.mxu0 0
        %2348 = vmatprep.subr.bf16.mxu0 0
        %2349 = vmatpush2.bf16.xpose.msra.mxu0 0
        %2350 = vmatprep.subr.bf16.mxu0 0
        %2351 = vmatpush2.bf16.xpose.msra.mxu0 0
        %2352 = vmatprep.subr.bf16.mxu0 0
        %2353 = vmatpush2.bf16.xpose.msra.mxu0 0
        %2354 = vmatprep.subr.bf16.mxu0 0
        %2355 = vmatpush2.bf16.xpose.msra.mxu0 0
        %2356 = vmatprep.mubr.bf16.mxu0 0
        %2357 = vmatmul.mubr.bf16.gmra.mxu0 %v2319
        %v2358 = vpop.f32.mrf.mxu0
        %v2359 = vadd.f32 0.0, %v2358
        %v2360 = vpop.f32.mrf.mxu0
        %v2361 = vpop.f32.mrf.mxu0
        %v2362 = vpop.f32.mrf.mxu0
        %2363 = vdwg.mxu0
        %v2364 = vsel %vm1693, %v2359, -inf
        %2365 = vmax.xlane.f32.xlu0 %v2364
        %v2366 = vpop.xlane.xlu0 %2365
        %v2367 = vsub.f32 %v2359, %v2366
        %v2368 = vmul.f32 %v2367, 1.442695
        %v2369 = vpow.pop %v2368
        %v2370 = vsel %vm1693, %v2369, 0.0
        %2371 = vadd.xlane.f32.xlu0 %v2370
        %v2372 = vpop.xlane.xlu0 %2371
        %v2373 = vrcp.pop %v2372
        %v2374 = vmul.f32 %v2369, %v2373
        %v2375 = vpack.c.bf16 %v2374, %v2374
        %2376 = vrot.lane.b32.xlu0 %v2050, 104
        %v2377 = vpop.permute.xlu0 %2376
        %v2380 = vsel %vm1693, %v2375, 0
        %2382 = vmatprep.subr.bf16.mxu0 0
        %2383 = vmatpush1.bf16.msra.mxu0 0
        %2384 = vmatprep.subr.bf16.mxu0 0
        %2385 = vmatpush1.bf16.msra.mxu0 0
        %2386 = vmatprep.subr.bf16.mxu0 0
        %2387 = vmatpush1.bf16.msra.mxu0 0
        %2388 = vmatprep.subr.bf16.mxu0 0
        %2389 = vmatpush1.bf16.msra.mxu0 0
        %2390 = vmatprep.subr.bf16.mxu0 0
        %2391 = vmatpush1.bf16.msra.mxu0 0
        %2392 = vmatprep.subr.bf16.mxu0 0
        %2393 = vmatpush1.bf16.msra.mxu0 0
        %2394 = vmatprep.subr.bf16.mxu0 0
        %2395 = vmatpush1.bf16.msra.mxu0 0
        %2396 = vmatprep.subr.bf16.mxu0 0
        %2397 = vmatpush1.bf16.msra.mxu0 %v2377
        %2398 = vmatprep.subr.bf16.mxu0 0
        %2399 = vmatpush2.bf16.msra.mxu0 0
        %2400 = vmatprep.subr.bf16.mxu0 0
        %2401 = vmatpush2.bf16.msra.mxu0 0
        %2402 = vmatprep.subr.bf16.mxu0 0
        %2403 = vmatpush2.bf16.msra.mxu0 0
        %2404 = vmatprep.subr.bf16.mxu0 0
        %2405 = vmatpush2.bf16.msra.mxu0 0
        %2406 = vmatprep.subr.bf16.mxu0 0
        %2407 = vmatpush2.bf16.msra.mxu0 0
        %2408 = vmatprep.subr.bf16.mxu0 0
        %2409 = vmatpush2.bf16.msra.mxu0 0
        %2410 = vmatprep.subr.bf16.mxu0 0
        %2411 = vmatpush2.bf16.msra.mxu0 0
        %2412 = vmatprep.subr.bf16.mxu0 0
        %2413 = vmatpush2.bf16.msra.mxu0 0
        %2414 = vmatprep.mubr.bf16.mxu0 0
        %2415 = vmatmul.mubr.bf16.gmra.mxu0 %v2380
        %v2416 = vpop.f32.mrf.mxu0
        %v2417 = vadd.f32 0.0, %v2416
        %v2418 = vpop.f32.mrf.mxu0
        %v2419 = vpop.f32.mrf.mxu0
        %v2420 = vpop.f32.mrf.mxu0
        %2421 = vdwg.mxu0
        %2423 = vrot.lane.b32.xlu0 %v2201, 8
        %v2424 = vpop.permute.xlu0 %2423
        %2427 = vrot.lane.b32.xlu0 %v2309, 16
        %v2428 = vpop.permute.xlu0 %2427
        %2431 = vrot.lane.b32.xlu0 %v2417, 24
        %v2432 = vpop.permute.xlu0 %2431
        %v2434 = vsel %vm1240, %v2090, %v2424
        %v2435 = vsel %vm1693, %v2434, %v2428
        %v2436 = vsel %vm1695, %v2435, %v2432
        %v2437 = vpack.c.bf16 %v2436, %v2436
        %v2439 = vlaneseq
        %v2440 = vshrl.u32 %v2439, 7
        %v2441 = vsub.s32 0, %v2440
        %v2442 = vrot.slane %v1819, %v2441
        %v2448 = vunpack.c.l.b16 %v1815
        %v2449 = vunpack.c.l.b16 %v1816
        %v2450 = vunpack.c.l.b16 %v1817
        %v2451 = vunpack.c.l.b16 %v1818
        %v2452 = vpack.c.b16 %v2449, %v2448
        %v2453 = vpack.c.b16 %v2451, %v2450
        %v2457 = vsel %vm1033, %v2437, 0
        %2459 = vmatprep.subr.bf16.mxu0 0
        %2460 = vmatpush1.bf16.msra.mxu0 0
        %2461 = vmatprep.subr.bf16.mxu0 0
        %2462 = vmatpush1.bf16.msra.mxu0 0
        %2463 = vmatprep.subr.bf16.mxu0 0
        %2464 = vmatpush1.bf16.msra.mxu0 0
        %2465 = vmatprep.subr.bf16.mxu0 0
        %2466 = vmatpush1.bf16.msra.mxu0 0
        %2467 = vmatprep.subr.bf16.mxu0 0
        %2468 = vmatpush1.bf16.msra.mxu0 0
        %2469 = vmatprep.subr.bf16.mxu0 0
        %2470 = vmatpush1.bf16.msra.mxu0 0
        %2471 = vmatprep.subr.bf16.mxu0 0
        %2472 = vmatpush1.bf16.msra.mxu0 %v2453
        %2473 = vmatprep.subr.bf16.mxu0 0
        %2474 = vmatpush1.bf16.msra.mxu0 %v2452
        %2475 = vmatprep.subr.bf16.mxu0 0
        %2476 = vmatpush2.bf16.msra.mxu0 0
        %2477 = vmatprep.subr.bf16.mxu0 0
        %2478 = vmatpush2.bf16.msra.mxu0 0
        %2479 = vmatprep.subr.bf16.mxu0 0
        %2480 = vmatpush2.bf16.msra.mxu0 0
        %2481 = vmatprep.subr.bf16.mxu0 0
        %2482 = vmatpush2.bf16.msra.mxu0 0
        %2483 = vmatprep.subr.bf16.mxu0 0
        %2484 = vmatpush2.bf16.msra.mxu0 0
        %2485 = vmatprep.subr.bf16.mxu0 0
        %2486 = vmatpush2.bf16.msra.mxu0 0
        %2487 = vmatprep.subr.bf16.mxu0 0
        %2488 = vmatpush2.bf16.msra.mxu0 0
        %2489 = vmatprep.subr.bf16.mxu0 0
        %2490 = vmatpush2.bf16.msra.mxu0 0
        %2491 = vmatprep.mubr.bf16.mxu0 0
        %2492 = vmatmul.mubr.bf16.gmra.mxu0 %v2457
        %v2493 = vpop.f32.mrf.mxu0
        %v2494 = vadd.f32 %v2442, %v2493
        %v2495 = vpop.f32.mrf.mxu0
        %v2496 = vpop.f32.mrf.mxu0
        %v2497 = vpop.f32.mrf.mxu0
        %2498 = vdwg.mxu0
        %v2499 = vsel %vm1033, %v2494, 0.0
        %2500 = vadd.xlane.f32.xlu0 %v2499
        %v2501 = vpop.xlane.xlu0 %2500
        %v2502 = vmul.f32 %v2501, %v1037
        %v2503 = vsub.f32 %v2494, %v2502
        %v2504 = vmul.f32 %v2503, %v2503
        %v2505 = vsel %vm1033, %v2504, 0.0
        %2506 = vadd.xlane.f32.xlu0 %v2505
        %v2507 = vpop.xlane.xlu0 %2506
        %v2508 = vmul.f32 %v2507, %v1037
        %v2509 = vadd.f32 %v2508, 1e-05
        %v2510 = vrsqrt.pop %v2509
        %v2511 = vmul.f32 %v2503, %v2510
        %v2512 = vmul.f32 %v2511, %v1776
        %v2513 = vadd.f32 %v2512, %v1783
        %v2514 = vmul.f32 %v1790, %v2513
        %v2515 = vadd.f32 %v1793, %v2514
        %v2516 = vsel %vm1033, %v2515, 0.0
        %2517 = vadd.xlane.f32.xlu0 %v2516
        %v2518 = vpop.xlane.xlu0 %2517
        %v2519 = vmul.f32 %v2518, %v1037
        %v2520 = vsub.f32 %v2515, %v2519
        %v2521 = vmul.f32 %v2520, %v2520
        %v2522 = vsel %vm1033, %v2521, 0.0
        %2523 = vadd.xlane.f32.xlu0 %v2522
        %v2524 = vpop.xlane.xlu0 %2523
        %v2525 = vmul.f32 %v2524, %v1037
        %v2526 = vadd.f32 %v2525, 1e-05
        %v2527 = vrsqrt.pop %v2526
        %v2528 = vmul.f32 %v2520, %v2527
        %v2529 = vmul.f32 %v2528, %v1052
        %v2530 = vadd.f32 %v2529, %v1059
        %v2531 = vld [vmem:[%s1000] sm:$0xf]
        %v2532 = vld [vmem:[%s1000 + $0x4] sm:$0xf]
        %v2533 = vld [vmem:[%s1000 + $0x8] sm:$0xf]
        %v2534 = vld [vmem:[%s1000 + $0xc] sm:$0xf]
        %v2535 = vpack.c.bf16 %v2530, %v2530
        %v2536 = vld [vmem:[%s1003] sm:$0x1]
        %v2538 = vlaneseq
        %v2539 = vshrl.u32 %v2538, 7
        %v2540 = vsub.s32 0, %v2539
        %v2541 = vrot.slane %v2536, %v2540
        %v2547 = vunpack.c.l.b16 %v2531
        %v2548 = vunpack.c.l.b16 %v2532
        %v2549 = vunpack.c.l.b16 %v2533
        %v2550 = vunpack.c.l.b16 %v2534
        %v2551 = vpack.c.b16 %v2548, %v2547
        %v2552 = vpack.c.b16 %v2550, %v2549
        %v2556 = vsel %vm1033, %v2535, 0
        %2558 = vmatprep.subr.bf16.mxu0 0
        %2559 = vmatpush1.bf16.msra.mxu0 0
        %2560 = vmatprep.subr.bf16.mxu0 0
        %2561 = vmatpush1.bf16.msra.mxu0 0
        %2562 = vmatprep.subr.bf16.mxu0 0
        %2563 = vmatpush1.bf16.msra.mxu0 0
        %2564 = vmatprep.subr.bf16.mxu0 0
        %2565 = vmatpush1.bf16.msra.mxu0 0
        %2566 = vmatprep.subr.bf16.mxu0 0
        %2567 = vmatpush1.bf16.msra.mxu0 0
        %2568 = vmatprep.subr.bf16.mxu0 0
        %2569 = vmatpush1.bf16.msra.mxu0 0
        %2570 = vmatprep.subr.bf16.mxu0 0
        %2571 = vmatpush1.bf16.msra.mxu0 %v2552
        %2572 = vmatprep.subr.bf16.mxu0 0
        %2573 = vmatpush1.bf16.msra.mxu0 %v2551
        %2574 = vmatprep.subr.bf16.mxu0 0
        %2575 = vmatpush2.bf16.msra.mxu0 0
        %2576 = vmatprep.subr.bf16.mxu0 0
        %2577 = vmatpush2.bf16.msra.mxu0 0
        %2578 = vmatprep.subr.bf16.mxu0 0
        %2579 = vmatpush2.bf16.msra.mxu0 0
        %2580 = vmatprep.subr.bf16.mxu0 0
        %2581 = vmatpush2.bf16.msra.mxu0 0
        %2582 = vmatprep.subr.bf16.mxu0 0
        %2583 = vmatpush2.bf16.msra.mxu0 0
        %2584 = vmatprep.subr.bf16.mxu0 0
        %2585 = vmatpush2.bf16.msra.mxu0 0
        %2586 = vmatprep.subr.bf16.mxu0 0
        %2587 = vmatpush2.bf16.msra.mxu0 0
        %2588 = vmatprep.subr.bf16.mxu0 0
        %2589 = vmatpush2.bf16.msra.mxu0 0
        %2590 = vmatprep.mubr.bf16.mxu0 0
        %2591 = vmatmul.mubr.bf16.gmra.mxu0 %v2556
        %v2592 = vpop.f32.mrf.mxu0
        %v2593 = vadd.f32 %v2541, %v2592
        %v2594 = vpop.f32.mrf.mxu0
        %v2595 = vpop.f32.mrf.mxu0
        %v2596 = vpop.f32.mrf.mxu0
        %2597 = vdwg.mxu0
        %v2598 = vmax.f32 %v2593, 0.0
        %v2599 = vld [vmem:[%s1008] sm:$0xf]
        %v2600 = vld [vmem:[%s1008 + $0x4] sm:$0xf]
        %v2601 = vld [vmem:[%s1008 + $0x8] sm:$0xf]
        %v2602 = vld [vmem:[%s1008 + $0xc] sm:$0xf]
        %v2603 = vld [vmem:[%s1008 + $0x10] sm:$0xf]
        %v2604 = vld [vmem:[%s1008 + $0x14] sm:$0xf]
        %v2605 = vld [vmem:[%s1008 + $0x18] sm:$0xf]
        %v2606 = vld [vmem:[%s1008 + $0x1c] sm:$0xf]
        %v2607 = vpack.c.bf16 %v2598, %v2598
        %v2608 = vld [vmem:[%s1011] sm:$0x1]
        %v2610 = vlaneseq
        %v2611 = vshrl.u32 %v2610, 7
        %v2612 = vsub.s32 0, %v2611
        %v2613 = vrot.slane %v2608, %v2612
        %v2623 = vunpack.c.l.b16 %v2599
        %v2624 = vunpack.c.l.b16 %v2600
        %v2625 = vunpack.c.l.b16 %v2601
        %v2626 = vunpack.c.l.b16 %v2602
        %v2627 = vunpack.c.l.b16 %v2603
        %v2628 = vunpack.c.l.b16 %v2604
        %v2629 = vunpack.c.l.b16 %v2605
        %v2630 = vunpack.c.l.b16 %v2606
        %v2631 = vpack.c.b16 %v2624, %v2623
        %v2632 = vpack.c.b16 %v2626, %v2625
        %v2633 = vpack.c.b16 %v2628, %v2627
        %v2634 = vpack.c.b16 %v2630, %v2629
        %vm2639 = vcmask 523264
        %v2641 = vsel %vm2639, %v2607, 0
        %2643 = vmatprep.subr.bf16.mxu0 0
        %2644 = vmatpush1.bf16.msra.mxu0 0
        %2645 = vmatprep.subr.bf16.mxu0 0
        %2646 = vmatpush1.bf16.msra.mxu0 0
        %2647 = vmatprep.subr.bf16.mxu0 0
        %2648 = vmatpush1.bf16.msra.mxu0 0
        %2649 = vmatprep.subr.bf16.mxu0 0
        %2650 = vmatpush1.bf16.msra.mxu0 0
        %2651 = vmatprep.subr.bf16.mxu0 0
        %2652 = vmatpush1.bf16.msra.mxu0 %v2634
        %2653 = vmatprep.subr.bf16.mxu0 0
        %2654 = vmatpush1.bf16.msra.mxu0 %v2633
        %2655 = vmatprep.subr.bf16.mxu0 0
        %2656 = vmatpush1.bf16.msra.mxu0 %v2632
        %2657 = vmatprep.subr.bf16.mxu0 0
        %2658 = vmatpush1.bf16.msra.mxu0 %v2631
        %2659 = vmatprep.subr.bf16.mxu0 0
        %2660 = vmatpush2.bf16.msra.mxu0 0
        %2661 = vmatprep.subr.bf16.mxu0 0
        %2662 = vmatpush2.bf16.msra.mxu0 0
        %2663 = vmatprep.subr.bf16.mxu0 0
        %2664 = vmatpush2.bf16.msra.mxu0 0
        %2665 = vmatprep.subr.bf16.mxu0 0
        %2666 = vmatpush2.bf16.msra.mxu0 0
        %2667 = vmatprep.subr.bf16.mxu0 0
        %2668 = vmatpush2.bf16.msra.mxu0 0
        %2669 = vmatprep.subr.bf16.mxu0 0
        %2670 = vmatpush2.bf16.msra.mxu0 0
        %2671 = vmatprep.subr.bf16.mxu0 0
        %2672 = vmatpush2.bf16.msra.mxu0 0
        %2673 = vmatprep.subr.bf16.mxu0 0
        %2674 = vmatpush2.bf16.msra.mxu0 0
        %2675 = vmatprep.mubr.bf16.mxu0 0
        %2676 = vmatmul.mubr.bf16.gmra.mxu0 %v2641
        %v2677 = vpop.f32.mrf.mxu0
        %v2678 = vadd.f32 %v2613, %v2677
        %v2679 = vpop.f32.mrf.mxu0
        %v2680 = vpop.f32.mrf.mxu0
        %v2681 = vpop.f32.mrf.mxu0
        %2682 = vdwg.mxu0
        %v2683 = vsel %vm1033, %v2678, 0.0
        %2684 = vadd.xlane.f32.xlu0 %v2683
        %v2685 = vpop.xlane.xlu0 %2684
        %v2686 = vmul.f32 %v2685, %v1037
        %v2687 = vsub.f32 %v2678, %v2686
        %v2688 = vmul.f32 %v2687, %v2687
        %v2689 = vsel %vm1033, %v2688, 0.0
        %2690 = vadd.xlane.f32.xlu0 %v2689
        %v2691 = vpop.xlane.xlu0 %2690
        %v2692 = vmul.f32 %v2691, %v1037
        %v2693 = vadd.f32 %v2692, 1e-05
        %v2694 = vrsqrt.pop %v2693
        %v2695 = vmul.f32 %v2687, %v2694
        %v2696 = vmul.f32 %v2695, %v1776
        %v2697 = vadd.f32 %v2696, %v1783
        %v2698 = vmul.f32 %v1790, %v2697
        %v2699 = vadd.f32 %v2515, %v2698
        %2700 = vst.msk [vmem:[#allocation2] sm:$0xff] %vm1033, %v2699
        %p2701 = scmp.eq.s32.totalorder %s42, 1
        // Predicated region
        $region117: #{trans_decoder.1} parent=111 // pred_check
          %p2702 = pneg %p2701
        $region118: #{trans_decoder.1} parent=111 // pred_check_branch
          %2704 = sbr.rel (%p2702) target = $region120
        $region119: #{trans_decoder.1} parent=111 // pred_region
          %v2705 = vld [vmem:[%s21] sm:$0x1]
          %v2706 = vld [vmem:[%s22] sm:$0x1]
          %v2707 = vsel %vm1033, %v2699, 0.0
          %2708 = vadd.xlane.f32.xlu0 %v2707
          %v2709 = vpop.xlane.xlu0 %2708
          %v2710 = vmul.f32 %v2709, %v1037
          %v2711 = vsub.f32 %v2699, %v2710
          %v2712 = vmul.f32 %v2711, %v2711
          %v2713 = vsel %vm1033, %v2712, 0.0
          %2714 = vadd.xlane.f32.xlu0 %v2713
          %v2715 = vpop.xlane.xlu0 %2714
          %v2716 = vmul.f32 %v2715, %v1037
          %v2717 = vadd.f32 %v2716, 1e-05
          %v2718 = vrsqrt.pop %v2717
          %v2719 = vmul.f32 %v2711, %v2718
          %v2721 = vlaneseq
          %v2722 = vshrl.u32 %v2721, 7
          %v2723 = vsub.s32 0, %v2722
          %v2724 = vrot.slane %v2705, %v2723
          %v2726 = vmul.f32 %v2719, %v2724
          %v2728 = vlaneseq
          %v2729 = vshrl.u32 %v2728, 7
          %v2730 = vsub.s32 0, %v2729
          %v2731 = vrot.slane %v2706, %v2730
          %v2733 = vadd.f32 %v2726, %v2731
          %2734 = vst.msk [vmem:[%s939] sm:$0xff] %vm1033, %v2733
        $region120: #{trans_decoder.1} parent=111 // pred_fallthru
          _
        %s2735 = sand.u32 %s635, 1
        %s2736 = scalar_lea.sflag [#allocation4], %s2735
        %s2737 = sand.u32 %s635, 1
        %s2738 = smul.addr %s2737, 8
        %s2739 = scalar_lea.vmem [#allocation3], %s2738
        // Predicated region
        $region121: #{trans_decoder.1} parent=111 // pred_check
          %p2740 = pneg %p645
        $region122: #{trans_decoder.1} parent=111 // pred_check_branch
          %2742 = sbr.rel (%p2740) target = $region124
        $region123: #{trans_decoder.1} parent=111 // pred_region
          %s2744 = ssub.s32 128, 128
          %2745 = vsyncadd %s2736, %s2744
          %s2746 = smul.addr %s41, 128
          %s2747 = scalar_lea.hbm %s23, %s2746
          %s2749 = sshll.u32 %s2739, 4
          %s2750 = int_to_ptr.vmem [resolvable:$true] %s2749
          %2752 = dma.vmem_to_hbm [thread:$0]  %s2750, 128, %s2747, %s2736
        $region124: #{trans_decoder.1} parent=111 // pred_fallthru
          _
      $region112: #{trans_decoder.1} parent=5 // pred_fallthru
        _
      %p2753 = scmp.le.s32.totalorder 2, %s32
      // Predicated region
      $region125: #{trans_decoder.1} parent=5 // pred_check
        %p2754 = pneg %p2753
      $region126: #{trans_decoder.1} parent=5 // pred_check_branch
        %2756 = sbr.rel (%p2754) target = $region128
      $region127: #{trans_decoder.1} parent=5 // pred_region
        %s2757 = ssub.s32 %s32, 2
        // Predicated region
        $region129: #{trans_decoder.1} parent=127 // pred_check
          %p2758 = pneg %p651
        $region130: #{trans_decoder.1} parent=127 // pred_check_branch
          %2760 = sbr.rel (%p2758) target = $region132
        $region131: #{trans_decoder.1} parent=127 // pred_region
          %s2761 = sand.u32 %s636, 1
          %s2762 = scalar_lea.sflag [#allocation4], %s2761
          %s2763 = sand.u32 %s636, 1
          %s2764 = smul.addr %s2763, 8
          %s2765 = scalar_lea.vmem [#allocation3], %s2764
          %2766 = dma.done %s2762, 128
        $region132: #{trans_decoder.1} parent=127 // pred_fallthru
          _
      $region128: #{trans_decoder.1} parent=5 // pred_fallthru
        _
    $region6: #{trans_decoder.1} parent=1 // loop_footer
      %s36 = sadd.s32 1, %s32
    $region7: #{trans_decoder.1} parent=1 // loop_footer_branch
      %31 = sbr.rel target = $region3
    $region8: #{trans_decoder.1} parent=1 // loop_exit
      _
    %2767 = vsyncpa [#allocation4], 1
    %s2768 = scalar_lea.sflag [#allocation4], 1
    %2769 = vsyncpa %s2768, 1

</llo_original>
